<compile_context>
chip_gen: v6e
topology: v6e:2x2x1
jax: 0.10.0
libtpu: 0.0.40
codegen_flags: <defaults>
</compile_context>

<pallas_src>
import jax
import jax.numpy as jnp
from jax.experimental import pallas as pl
from jax.experimental.pallas import tpu as pltpu


# --------------------------------------------------------------------------- kernels

def _gcn_kernel_resident(adj_ref, xs_ref, norm_ref, o_ref, acc_ref):
    """out[i-block] = norm_i * ( adj[i-block, :] @ xs + xs[i-block] ).

    xs (= norm * x, bf16) is fully VMEM-resident (constant-index BlockSpec); the k-th
    contraction slab and the i-th self-term slab are sliced with pl.ds.  Accumulation
    happens in the f32 scratch `acc_ref`; the output block (x.dtype) is written once
    at the last k step.
    """
    i = pl.program_id(0)
    k = pl.program_id(1)
    tm = acc_ref.shape[0]
    tk = adj_ref.shape[1]

    @pl.when(k == 0)
    def _():
        row0 = pl.multiple_of(i * tm, tm)
        acc_ref[...] = xs_ref[pl.ds(row0, tm), :].astype(jnp.float32)   # self term xs_i

    col0 = pl.multiple_of(k * tk, tk)
    acc_ref[...] += jnp.dot(adj_ref[...],                               # bf16 x bf16 MXU
                            xs_ref[pl.ds(col0, tk), :],
                            preferred_element_type=jnp.float32)

    @pl.when(k == pl.num_programs(1) - 1)
    def _():
        o_ref[...] = (norm_ref[...] * acc_ref[...]).astype(o_ref.dtype)


def _gcn_kernel_streamed(adj_ref, xsk_ref, xsi_ref, norm_ref, o_ref, acc_ref):
    """Fallback when xs does not fit resident in VMEM: stream bf16 xs k-blocks."""
    k = pl.program_id(1)

    @pl.when(k == 0)
    def _():
        acc_ref[...] = xsi_ref[...].astype(jnp.float32)                 # self term xs_i

    acc_ref[...] += jnp.dot(adj_ref[...], xsk_ref[...],
                            preferred_element_type=jnp.float32)

    @pl.when(k == pl.num_programs(1) - 1)
    def _():
        o_ref[...] = (norm_ref[...] * acc_ref[...]).astype(o_ref.dtype)


# --------------------------------------------------------------------------- helpers

def _tpu_vmem_bytes():
    """Per-core VMEM capacity (bytes); conservative 64 MiB (v7x) if unknown."""
    try:
        info = pltpu.get_tpu_info()
        v = getattr(info, "vmem_capacity_bytes", None)
        if v:
            return int(v)
    except Exception:
        pass
    return 64 * 1024 * 1024


def _pick_tile(n, want, align):
    """Largest divisor of n that is <= want and a multiple of `align` (or n itself)."""
    want = min(want, n)
    if n % want == 0 and (want % align == 0 or want == n):
        return want
    for d in range(want, 0, -1):
        if n % d == 0 and (d % align == 0 or d == n):
            return d
    return n


# --------------------------------------------------------------------------- wrapper

def pure_conv_gcn(x, adj_t, *, tm=None, tk=None, force_streamed=False):
    N, F = x.shape
    assert adj_t.shape == (N, N)
    out_dtype = x.dtype

    # ---- generation-aware VMEM budget -------------------------------------------
    vmem_cap = _tpu_vmem_bytes()                       # 128 MiB v5e/v6e, 64 MiB v7x
    vmem_limit = int(min(100 << 20, max(vmem_cap - (8 << 20), 24 << 20)))

    # ---- tile sizes: adj tile >= 2 MiB (bigger on v7x: faster HBM, same overhead) -
    if tm is None:
        tm = 512
    if tk is None:
        tk = 4096 if vmem_cap <= (96 << 20) else 2048
    tm = _pick_tile(N, tm, 8)
    tk = _pick_tile(N, tk, 128)

    # ---- prepass (plain XLA): cast adj once, row-sum the bf16 copy w/ f32 accum ---
    # adj is read ~2x in HBM end-to-end instead of ~3x; 0/1 entries are exact in bf16.
    adj_c = adj_t.astype(jnp.bfloat16)
    deg = jnp.sum(adj_c, axis=-1, dtype=jnp.float32)
    norm = jax.lax.rsqrt(1.0 + deg).reshape(N, 1)
    xs = (norm * x.astype(jnp.float32)).astype(jnp.bfloat16)   # bf16 xs: bf16 MXU path
    # TODO(synk): on v7x, adj could be stored as fp8 (e4m3; 0/1 exact) to halve the
    # dominant HBM stream again, pending Mosaic fp8-dot lowering verification.

    grid = (N // tm, N // tk)
    out_shape = jax.ShapeDtypeStruct((N, F), out_dtype)
    out_spec = pl.BlockSpec((tm, F), lambda i, k: (i, 0))
    scratch = [pltpu.VMEM((tm, F), jnp.float32)]       # f32 accumulator
    cparams = pltpu.CompilerParams(
        dimension_semantics=("parallel", "arbitrary"),
        vmem_limit_bytes=vmem_limit)

    # ---- residency decision (conservative: 3 adj buffers, 2 xs buffers) ----------
    itemsize_out = jnp.dtype(out_dtype).itemsize
    fixed_bytes = (3 * tm * tk * 2            # adj stream (up to triple-buffered bf16)
                   + 2 * tm * F * itemsize_out  # output block (double-buffered)
                   + tm * F * 4                 # f32 accumulator scratch
                   + 2 * tm * 4 * 8)            # norm block (padded, tiny)
    xs_resident_bytes = 2 * N * F * 2         # worst case: double-buffered bf16 xs
    headroom = 6 << 20
    resident_ok = (not force_streamed) and \
        (fixed_bytes + xs_resident_bytes + headroom <= vmem_limit)

    def run(use_buffered):
        adj_kw = dict(pipeline_mode=pl.Buffered(3)) if use_buffered else {}
        if resident_ok:
            xs_kw = dict(pipeline_mode=pl.Buffered(1)) if use_buffered else {}
            in_specs = [
                pl.BlockSpec((tm, tk), lambda i, k: (i, k), **adj_kw),  # adj tile (bf16)
                pl.BlockSpec((N, F), lambda i, k: (0, 0), **xs_kw),     # xs, VMEM-resident
                pl.BlockSpec((tm, 1), lambda i, k: (i, 0)),             # norm, output rows
            ]
            kernel = _gcn_kernel_resident
            args = (adj_c, xs, norm)
        else:
            in_specs = [
                pl.BlockSpec((tm, tk), lambda i, k: (i, k), **adj_kw),  # adj tile (bf16)
                pl.BlockSpec((tk, F), lambda i, k: (k, 0)),             # xs, contraction rows
                pl.BlockSpec((tm, F), lambda i, k: (i, 0)),             # xs, output rows
                pl.BlockSpec((tm, 1), lambda i, k: (i, 0)),             # norm, output rows
            ]
            kernel = _gcn_kernel_streamed
            args = (adj_c, xs, xs, norm)
        return pl.pallas_call(
            kernel,
            out_shape=out_shape,
            grid_spec=pltpu.PrefetchScalarGridSpec(
                num_scalar_prefetch=0,
                grid=grid,
                in_specs=in_specs,
                out_specs=out_spec,
                scratch_shapes=scratch,
            ),
            compiler_params=cparams,
        )(*args)

    try:
        return run(True)
    except Exception:
        # pipeline_mode=pl.Buffered(...) not supported by this jax/Mosaic version:
        # fall back to default double-buffered specs (correctness identical).
        return run(False)


def pure_conv_gcn_ref(x, adj_t):
    norm = jax.lax.rsqrt(1.0 + jnp.sum(adj_t, axis=-1)).reshape(-1, 1)
    xs = norm * x
    y = adj_t @ xs + xs
    return norm * y


# --------------------------------------------------------------------------- self-test

if __name__ == "__main__":
    # Small synthetic graph: N nodes, F features (indim == outdim == F).
    N, F = 1024, 128
    key = jax.random.PRNGKey(0)
    k_adj, k_x = jax.random.split(key)

    adj_t = jax.random.bernoulli(k_adj, p=0.05, shape=(N, N)).astype(jnp.float32)
    x = jax.random.normal(k_x, (N, F), dtype=jnp.float32)

    ref = pure_conv_gcn_ref(x, adj_t)

    # Default fast path (xs resident in VMEM; tiles clamped to N).
    out = jax.block_until_ready(pure_conv_gcn(x, adj_t))
    assert out.shape == (N, F) and out.dtype == x.dtype
    assert jnp.allclose(out, ref, rtol=1e-2, atol=1e-2), "resident path mismatch"

    # Smaller tiles: exercises the multi-step k accumulation / init / finalize guards.
    out_small = jax.block_until_ready(pure_conv_gcn(x, adj_t, tm=256, tk=256))
    assert jnp.allclose(out_small, ref, rtol=1e-2, atol=1e-2), "small-tile path mismatch"

    # Streamed fallback (the path large graphs hit when xs does not fit in VMEM).
    out_str = jax.block_until_ready(
        pure_conv_gcn(x, adj_t, tm=256, tk=512, force_streamed=True))
    assert jnp.allclose(out_str, ref, rtol=1e-2, atol=1e-2), "streamed path mismatch"

    # TODO(synk): aggr='mean'/'max'/'sum' branches and indim != outdim (Linear) are not
    # implemented (the module is configured as aggr='gcn' with lin = Identity).
    print("KERNEL_OK")
</pallas_src>

<mosaic_0001>
module attributes {stable_mosaic.version = 11 : i64} {
  func.func @_gcn_kernel_resident(%arg0: i32, %arg1: i32, %arg2: memref<512x1024xbf16, #tpu.memory_space<vmem>>, %arg3: memref<1024x128xbf16, #tpu.memory_space<vmem>>, %arg4: memref<512x1xf32, #tpu.memory_space<vmem>>, %arg5: memref<512x128xf32, #tpu.memory_space<vmem>>, %arg6: memref<512x128xf32, #tpu.memory_space<vmem>>) attributes {dimension_semantics = [#tpu.dimension_semantics<parallel>, #tpu.dimension_semantics<arbitrary>], iteration_bounds = array<i64: 2, 1>, scalar_prefetch = 0 : i64, scratch_operands = 1 : i64, tpu.core_type = #tpu.core_type<tc>, window_params = [{transform_indices = @transform_0, window_bounds = array<i64: 512, 1024>}, {pipeline_mode = #tpu.pipeline_mode<synchronous>, transform_indices = @transform_1, window_bounds = array<i64: 1024, 128>}, {transform_indices = @transform_2, window_bounds = array<i64: 512, 1>}, {transform_indices = @transform_3, window_bounds = array<i64: 512, 128>}]} {
    %c0_i32 = arith.constant 0 : i32
    %0 = arith.cmpi eq, %arg1, %c0_i32 : i32
    %1 = arith.extui %0 : i1 to i32
    %c0_i32_0 = arith.constant 0 : i32
    %2 = arith.cmpi ne, %1, %c0_i32_0 : i32
    scf.if %2 {
      %c512_i32 = arith.constant 512 : i32
      %15 = arith.muli %arg0, %c512_i32 : i32
      %16 = tpu.assume_multiple %15, 512 : i32
      %17 = arith.index_cast %16 : i32 to index
      %c0_9 = arith.constant 0 : index
      %18 = vector.load %arg3[%17, %c0_9] : memref<1024x128xbf16, #tpu.memory_space<vmem>>, vector<512x128xbf16>
      %19 = arith.extf %18 : vector<512x128xbf16> to vector<512x128xf32>
      %c0_10 = arith.constant 0 : index
      %c0_11 = arith.constant 0 : index
      %20 = vector.load %arg6[%c0_10, %c0_11] : memref<512x128xf32, #tpu.memory_space<vmem>>, vector<512x128xf32>
      tpu.vector_store %arg6[%c0_10, %c0_11], %19 {strides = array<i32>} : memref<512x128xf32, #tpu.memory_space<vmem>>, vector<512x128xf32>,
    } else {
    }
    %c1024_i32 = arith.constant 1024 : i32
    %3 = arith.muli %arg1, %c1024_i32 : i32
    %4 = tpu.assume_multiple %3, 1024 : i32
    %c0 = arith.constant 0 : index
    %c0_1 = arith.constant 0 : index
    %5 = vector.load %arg6[%c0, %c0_1] : memref<512x128xf32, #tpu.memory_space<vmem>>, vector<512x128xf32>
    %c0_2 = arith.constant 0 : index
    %c0_3 = arith.constant 0 : index
    %6 = vector.load %arg2[%c0_2, %c0_3] : memref<512x1024xbf16, #tpu.memory_space<vmem>>, vector<512x1024xbf16>
    %7 = arith.index_cast %4 : i32 to index
    %c0_4 = arith.constant 0 : index
    %8 = vector.load %arg3[%7, %c0_4] : memref<1024x128xbf16, #tpu.memory_space<vmem>>, vector<1024x128xbf16>
    %cst = arith.constant dense<0.000000e+00> : vector<512x128xf32>
    %9 = tpu.matmul %6, %8, %cst {dimension_numbers = #tpu.dot_dimension_numbers<[1], [0], [0], [1], [0, 0, 1, 1], [], []>} : vector<512x1024xbf16>, vector<1024x128xbf16>, vector<512x128xf32> -> vector<512x128xf32>
    %10 = arith.addf %5, %9 : vector<512x128xf32>
    %c0_5 = arith.constant 0 : index
    %c0_6 = arith.constant 0 : index
    %11 = vector.load %arg6[%c0_5, %c0_6] : memref<512x128xf32, #tpu.memory_space<vmem>>, vector<512x128xf32>
    tpu.vector_store %arg6[%c0_5, %c0_6], %10 {strides = array<i32>} : memref<512x128xf32, #tpu.memory_space<vmem>>, vector<512x128xf32>,
    %c0_i32_7 = arith.constant 0 : i32
    %12 = arith.cmpi eq, %arg1, %c0_i32_7 : i32
    %13 = arith.extui %12 : i1 to i32
    %c0_i32_8 = arith.constant 0 : i32
    %14 = arith.cmpi ne, %13, %c0_i32_8 : i32
    scf.if %14 {
      %c0_9 = arith.constant 0 : index
      %c0_10 = arith.constant 0 : index
      %15 = vector.load %arg4[%c0_9, %c0_10] : memref<512x1xf32, #tpu.memory_space<vmem>>, vector<512x1xf32>
      %c0_11 = arith.constant 0 : index
      %c0_12 = arith.constant 0 : index
      %16 = vector.load %arg6[%c0_11, %c0_12] : memref<512x128xf32, #tpu.memory_space<vmem>>, vector<512x128xf32>
      %17 = vector.broadcast %15 : vector<512x1xf32> to vector<512x128xf32>
      %18 = arith.mulf %17, %16 : vector<512x128xf32>
      %c0_13 = arith.constant 0 : index
      %c0_14 = arith.constant 0 : index
      %19 = vector.load %arg5[%c0_13, %c0_14] : memref<512x128xf32, #tpu.memory_space<vmem>>, vector<512x128xf32>
      tpu.vector_store %arg5[%c0_13, %c0_14], %18 {strides = array<i32>} : memref<512x128xf32, #tpu.memory_space<vmem>>, vector<512x128xf32>,
    } else {
    }
    return
  }
  func.func @transform_0(%arg0: i32, %arg1: i32) -> (i32, i32) {
    %c0_i32 = arith.constant 0 : i32
    return %arg0, %arg1 : i32, i32
  }
  func.func @transform_1(%arg0: i32, %arg1: i32) -> (i32, i32) {
    %c0_i32 = arith.constant 0 : i32
    %c0_i32_0 = arith.constant 0 : i32
    %c0_i32_1 = arith.constant 0 : i32
    return %c0_i32, %c0_i32_0 : i32, i32
  }
  func.func @transform_2(%arg0: i32, %arg1: i32) -> (i32, i32) {
    %c0_i32 = arith.constant 0 : i32
    %c0_i32_0 = arith.constant 0 : i32
    return %arg0, %c0_i32 : i32, i32
  }
  func.func @transform_3(%arg0: i32, %arg1: i32) -> (i32, i32) {
    %c0_i32 = arith.constant 0 : i32
    %c0_i32_0 = arith.constant 0 : i32
    return %arg0, %c0_i32 : i32, i32
  }
}

</mosaic_0001>

<llo_original>
// kernel: tpu_custom_call.1
$region0: #{tpu_custom_call.1}
  #allocation0 [shape = 'u32[]', space=smem, size = 0x4, offset = 0x4, fixed_abs, tag = 'smem constant byte address 0x4 - core index']
  #allocation1 [shape = 'u32[144,128]{1,0:T(1,128)}', space=vmem, size = 0x12000, scoped, tag = 'internal scratch']
  #allocation2 [shape = 'f32[512,128]{1,0:T(8,128)}', space=vmem, size = 0x40000, scoped, tag = 'scratch operand']
  %s0 = inlined_call_operand.hbm [shape: bf16[1024,1024], index: 0, kind: input, shape index: {}]
  %s1 = inlined_call_operand.hbm [shape: bf16[1024,128], index: 1, kind: input, shape index: {}]
  %s2 = inlined_call_operand.vmem [shape: f32[1024,1], index: 2, kind: input, shape index: {}]
  %s3 = inlined_call_operand.hbm [shape: f32[1024,128], index: 3, kind: output, shape index: {}]
  %s4 = sld [smem:[#allocation0]]
  $region61: #{tpu_custom_call.1} parent=0
    _
  %s6 = ssub.s32 1, %s4
  %s7 = scalar_select 0, %s6, %s4
  $region1: #{tpu_custom_call.1} parent=0
    #allocation3 [shape = 'u8[2097152]{0}', space=vmem, size = 0x200000, scoped, tag = 'input window, operand 0']
    #allocation4 [shape = 's32[2]{0}', space=sflag, size = 0x8, scoped, tag = 'scoped memory for tpu_custom_call.1']
    #allocation5 [shape = 's32[2]{0}', space=sflag, size = 0x8, scoped, tag = 'scoped memory for tpu_custom_call.1']
    #allocation6 [shape = 'u8[262144]{0}', space=vmem, size = 0x40000, scoped, tag = 'input window, operand 1, single buffered']
    #allocation7 [shape = 's32[1]{0}', space=sflag, size = 0x4, scoped, tag = 'scoped memory for tpu_custom_call.1']
    #allocation8 [shape = 'u8[524288]{0}', space=vmem, size = 0x80000, scoped, tag = 'output window, operand 0']
    %8 = vsyncpa [#allocation4], 0
    %s9 = scalar_lea.sflag [#allocation4], 1
    %10 = vsyncpa %s9, 0
    %11 = vsyncpa [#allocation7], 0
    %12 = vsyncpa [#allocation5], 0
    %s13 = scalar_lea.sflag [#allocation5], 1
    %14 = vsyncpa %s13, 0
    loop: start=0, step=1, limit=4
    $region2: #{tpu_custom_call.1} parent=1 // loop_pre_header
      _
    $region3: #{tpu_custom_call.1} parent=1 // loop_header
      %s16 = sphi 0, %s20
      %p17 = scmp.ge.s32.totalorder %s16, 4
      %s23 = sphi 0, %s35
      %s24 = sphi 0, %s31
      %s25 = sphi 0, %s23
      %s26 = sphi 0, %s24
      %s27 = sphi 0, %s25
      %s28 = sphi 0, %s26
      %s40 = sphi 0, %s42
      %s43 = sphi 0, %s40
      %s44 = sphi 0, %s43
      %s60 = sphi 0, %s44
      %s64 = sphi 0, %s64
      %s66 = sphi 0, %s64
      %s67 = sphi 0, %s66
      %s81 = sphi 0, %s67
      %s87 = sphi 0, %s89
      %s90 = sphi 0, %s87
      %s91 = sphi 0, %s90
      %s107 = sphi 0, %s91
      %s113 = sphi 0, %s115
      %s116 = sphi 0, %s113
      %s117 = sphi 0, %s116
      %s133 = sphi 0, %s117
    $region4: #{tpu_custom_call.1} parent=1 // loop_header_branch
      %19 = sbr.rel (%p17) target = $region8
    $region5: #{tpu_custom_call.1} parent=1 // loop_body
      %s21 = ssub.s32 %s16, 1
      %s22 = ssub.s32 %s16, 2
      %s29 = sadd.s32 1, %s24
      %p30 = scmp.ge.s32.totalorder %s29, 1
      %s31 = scalar_select %p30, 0, %s29
      %s32 = sadd.s32 1, %s23
      %s33 = scalar_select %p30, %s32, %s23
      %p34 = scmp.ge.s32.totalorder %s33, 2
      %s35 = scalar_select %p34, 0, %s33
      %s36 = ssub.s32 %s23, %s35
      %s37 = ssub.s32 %s24, %s31
      %s38 = sor.u32 %s36, %s37
      %p39 = scmp.eq.s32.totalorder %s38, 0
      %s41 = sadd.s32 %s40, 1
      %s42 = scalar_select %p39, %s40, %s41
      %p45 = pneg %p39
      %p46 = scmp.eq.s32.totalorder %s16, 1
      %p47 = por %p45, %p46
      %p48 = scmp.ne.s32.totalorder %s40, %s43
      %p49 = scmp.eq.s32.totalorder %s16, 0
      %p50 = por %p48, %p49
      %p51 = scmp.ne.s32.totalorder %s40, %s43
      %p52 = scmp.eq.s32.totalorder %s21, 1
      %p53 = por %p51, %p52
      %p54 = scmp.ne.s32.totalorder %s43, %s44
      %p55 = scmp.eq.s32.totalorder %s21, 0
      %p56 = por %p54, %p55
      %p57 = scmp.ne.s32.totalorder %s43, %s44
      %p58 = scmp.eq.s32.totalorder %s22, 1
      %p59 = por %p57, %p58
      %p61 = scmp.ne.s32.totalorder %s44, %s60
      %p62 = scmp.eq.s32.totalorder %s22, 0
      %p63 = por %p61, %p62
      %s65 = sadd.s32 %s64, 1
      %p68 = scmp.eq.s32.totalorder %s16, 1
      %p69 = scmp.ne.s32.totalorder %s64, %s66
      %p70 = scmp.eq.s32.totalorder %s16, 0
      %p71 = por %p69, %p70
      %p72 = scmp.ne.s32.totalorder %s64, %s66
      %p73 = scmp.eq.s32.totalorder %s21, 1
      %p74 = por %p72, %p73
      %p75 = scmp.ne.s32.totalorder %s66, %s67
      %p76 = scmp.eq.s32.totalorder %s21, 0
      %p77 = por %p75, %p76
      %p78 = scmp.ne.s32.totalorder %s66, %s67
      %p79 = scmp.eq.s32.totalorder %s22, 1
      %p80 = por %p78, %p79
      %p82 = scmp.ne.s32.totalorder %s67, %s81
      %p83 = scmp.eq.s32.totalorder %s22, 0
      %p84 = por %p82, %p83
      %s85 = ssub.s32 %s23, %s35
      %p86 = scmp.eq.s32.totalorder %s85, 0
      %s88 = sadd.s32 %s87, 1
      %s89 = scalar_select %p86, %s87, %s88
      %p92 = pneg %p86
      %p93 = scmp.eq.s32.totalorder %s16, 1
      %p94 = por %p92, %p93
      %p95 = scmp.ne.s32.totalorder %s87, %s90
      %p96 = scmp.eq.s32.totalorder %s16, 0
      %p97 = por %p95, %p96
      %p98 = scmp.ne.s32.totalorder %s87, %s90
      %p99 = scmp.eq.s32.totalorder %s21, 1
      %p100 = por %p98, %p99
      %p101 = scmp.ne.s32.totalorder %s90, %s91
      %p102 = scmp.eq.s32.totalorder %s21, 0
      %p103 = por %p101, %p102
      %p104 = scmp.ne.s32.totalorder %s90, %s91
      %p105 = scmp.eq.s32.totalorder %s22, 1
      %p106 = por %p104, %p105
      %p108 = scmp.ne.s32.totalorder %s91, %s107
      %p109 = scmp.eq.s32.totalorder %s22, 0
      %p110 = por %p108, %p109
      %s111 = ssub.s32 %s23, %s35
      %p112 = scmp.eq.s32.totalorder %s111, 0
      %s114 = sadd.s32 %s113, 1
      %s115 = scalar_select %p112, %s113, %s114
      %p118 = pneg %p112
      %p119 = scmp.eq.s32.totalorder %s16, 1
      %p120 = por %p118, %p119
      %p121 = scmp.ne.s32.totalorder %s113, %s116
      %p122 = scmp.eq.s32.totalorder %s16, 0
      %p123 = por %p121, %p122
      %p124 = scmp.ne.s32.totalorder %s113, %s116
      %p125 = scmp.eq.s32.totalorder %s21, 1
      %p126 = por %p124, %p125
      %p127 = scmp.ne.s32.totalorder %s116, %s117
      %p128 = scmp.eq.s32.totalorder %s21, 0
      %p129 = por %p127, %p128
      %p130 = scmp.ne.s32.totalorder %s116, %s117
      %p131 = scmp.eq.s32.totalorder %s22, 1
      %p132 = por %p130, %p131
      %p134 = scmp.ne.s32.totalorder %s117, %s133
      %p135 = scmp.eq.s32.totalorder %s22, 0
      %p136 = por %p134, %p135
      %p137 = scmp.le.s32.totalorder 1, %s16
      %p138 = scmp.lt.s32.totalorder %s16, 3
      %p139 = pnand %p137, %p138
      %p140 = pneg %p139
      // Predicated region
      $region9: #{tpu_custom_call.1} parent=5 // pred_check
        _
      $region10: #{tpu_custom_call.1} parent=5 // pred_check_branch
        %142 = sbr.rel (%p139) target = $region12
      $region11: #{tpu_custom_call.1} parent=5 // pred_region
        %s143 = ssub.s32 %s16, 1
        // Predicated region
        $region13: #{tpu_custom_call.1} parent=11 // pred_check
          %p144 = pneg %p77
        $region14: #{tpu_custom_call.1} parent=11 // pred_check_branch
          %146 = sbr.rel (%p144) target = $region16
        $region15: #{tpu_custom_call.1} parent=11 // pred_region
          %s148 = ssub.s32 8192, 8192
          %149 = vsyncadd [#allocation7], %s148
          %s150 = sshll.u32 [#allocation6], 4
          %s151 = int_to_ptr.vmem [resolvable:$true] %s150
          %156 = dma.hbm_to_vmem [thread:$0]  %s1, 8192, %s151, [#allocation7], 64, 64, 4
        $region16: #{tpu_custom_call.1} parent=11 // pred_fallthru
          _
      $region12: #{tpu_custom_call.1} parent=5 // pred_fallthru
        _
      %p157 = scmp.lt.s32.totalorder %s16, 2
      // Predicated region
      $region17: #{tpu_custom_call.1} parent=5 // pred_check
        %p158 = pneg %p157
      $region18: #{tpu_custom_call.1} parent=5 // pred_check_branch
        %160 = sbr.rel (%p158) target = $region20
      $region19: #{tpu_custom_call.1} parent=5 // pred_region
        // Predicated region
        $region21: #{tpu_custom_call.1} parent=19 // pred_check
          %p161 = pneg %p50
        $region22: #{tpu_custom_call.1} parent=19 // pred_check_branch
          %163 = sbr.rel (%p161) target = $region24
        $region23: #{tpu_custom_call.1} parent=19 // pred_region
          %s164 = sand.u32 %s40, 1
          %s165 = scalar_lea.sflag [#allocation4], %s164
          %s166 = sand.u32 %s40, 1
          %s167 = smul.addr %s166, 2048
          %s168 = scalar_lea.vmem [#allocation3], %s167
          %s169 = smul.u32 64, %s23
          %s170 = smul.u32 8, %s24
          %s172 = ssub.s32 32768, 32768
          %173 = vsyncadd %s165, %s172
          %s174 = smul.addr %s169, 8
          %s175 = sadd.s32 %s170, %s174
          %s176 = smul.addr %s175, 64
          %s177 = scalar_lea.hbm %s0, %s176
          %s178 = sshll.u32 %s168, 4
          %s179 = int_to_ptr.vmem [resolvable:$true] %s178
          %184 = dma.hbm_to_vmem [thread:$0]  %s177, 32768, %s179, %s165, 512, 512, 32
        $region24: #{tpu_custom_call.1} parent=19 // pred_fallthru
          _
        // Predicated region
        $region25: #{tpu_custom_call.1} parent=19 // pred_check
          %p185 = pneg %p97
        $region26: #{tpu_custom_call.1} parent=19 // pred_check_branch
          %187 = sbr.rel (%p185) target = $region28
        $region27: #{tpu_custom_call.1} parent=19 // pred_region
          %s188 = smul.u32 64, %s23
          %p189 = scmp.lt.s32.totalorder %s188, 127
          %s190 = scalar_select %p189, %s188, 127
          %s191 = smul.addr %s190, 8
          %s192 = scalar_lea.vmem %s2, %s191
          %s193 = smul.u32 64, %s23
        $region28: #{tpu_custom_call.1} parent=19 // pred_fallthru
          _
      $region20: #{tpu_custom_call.1} parent=5 // pred_fallthru
        _
      %p194 = scmp.le.s32.totalorder 1, %s16
      %p195 = scmp.lt.s32.totalorder %s16, 3
      %p196 = pnand %p194, %p195
      %p197 = pneg %p196
      // Predicated region
      $region29: #{tpu_custom_call.1} parent=5 // pred_check
        _
      $region30: #{tpu_custom_call.1} parent=5 // pred_check_branch
        %199 = sbr.rel (%p196) target = $region32
      $region31: #{tpu_custom_call.1} parent=5 // pred_region
        %s200 = ssub.s32 %s16, 1
        %s201 = sand.u32 %s43, 1
        %s202 = scalar_lea.sflag [#allocation4], %s201
        %s203 = sand.u32 %s43, 1
        %s204 = smul.addr %s203, 2048
        %s205 = scalar_lea.vmem [#allocation3], %s204
        // Predicated region
        $region33: #{tpu_custom_call.1} parent=31 // pred_check
          %p206 = pneg %p56
        $region34: #{tpu_custom_call.1} parent=31 // pred_check_branch
          %208 = sbr.rel (%p206) target = $region36
        $region35: #{tpu_custom_call.1} parent=31 // pred_region
          %209 = dma.done %s202, 32768
        $region36: #{tpu_custom_call.1} parent=31 // pred_fallthru
          _
        // Predicated region
        $region37: #{tpu_custom_call.1} parent=31 // pred_check
          %p210 = pneg %p77
        $region38: #{tpu_custom_call.1} parent=31 // pred_check_branch
          %212 = sbr.rel (%p210) target = $region40
        $region39: #{tpu_custom_call.1} parent=31 // pred_region
          %213 = dma.done [#allocation7], 8192
        $region40: #{tpu_custom_call.1} parent=31 // pred_fallthru
          _
        %s214 = sand.u32 %s43, 1
        %s215 = scalar_lea.sflag [#allocation4], %s214
        %s216 = sand.u32 %s43, 1
        %s217 = smul.addr %s216, 2048
        %s218 = scalar_lea.vmem [#allocation3], %s217
        %p219 = pneg %p56
        %p220 = pneg %p53
        %p221 = pneg %p77
        %p222 = pneg %p74
        %s223 = smul.u32 64, %s25
        %p224 = scmp.lt.s32.totalorder %s223, 127
        %s225 = scalar_select %p224, %s223, 127
        %s226 = smul.addr %s225, 8
        %s227 = scalar_lea.vmem %s2, %s226
        %p228 = pneg %p103
        %p229 = pneg %p100
        %p230 = pneg %p129
        %p231 = pneg %p126
        %s232 = sand.u32 %s116, 1
        %s233 = scalar_lea.sflag [#allocation5], %s232
        %s234 = sand.u32 %s116, 1
        %s235 = smul.addr %s234, 512
        %s236 = scalar_lea.vmem [#allocation8], %s235
        %s237 = smul.u32 64, %s25
        %s238 = smul.u32 8, %s26
        %s239 = smul.u32 64, %s25
        %p240 = scmp.lt.s32.totalorder %s239, 127
        %s241 = scalar_select %p240, %s239, 127
        %s242 = smul.addr %s241, 8
        %s243 = scalar_lea.vmem %s2, %s242
        %s244 = smul.u32 64, %s25
        %s245 = smul.u32 64, %s25
        %p247 = scmp.eq.s32.totalorder %s26, 0
        // Predicated region
        $region41: #{tpu_custom_call.1} parent=31 // pred_check
          %p248 = pneg %p247
        $region42: #{tpu_custom_call.1} parent=31 // pred_check_branch
          %250 = sbr.rel (%p248) target = $region44
        $region43: #{tpu_custom_call.1} parent=31 // pred_region
          %s251 = smul.u32 %s25, 512
          %s252 = sshra.s32 %s251, 3
          %s253 = sand.u32 %s251, 7
          %s254 = smul.addr %s252, 4
          %s255 = scalar_lea.vmem [#allocation6], %s254
          %v256 = vld [vmem:[%s255] sm:$0xf]
          %v257 = vld [vmem:[%s255 + $0x4] sm:$0xf]
          %v258 = vld [vmem:[%s255 + $0x8] sm:$0xf]
          %v259 = vld [vmem:[%s255 + $0xc] sm:$0xf]
          %v260 = vld [vmem:[%s255 + $0x10] sm:$0xf]
          %v261 = vld [vmem:[%s255 + $0x14] sm:$0xf]
          %v262 = vld [vmem:[%s255 + $0x18] sm:$0xf]
          %v263 = vld [vmem:[%s255 + $0x1c] sm:$0xf]
          %v264 = vld [vmem:[%s255 + $0x20] sm:$0xf]
          %v265 = vld [vmem:[%s255 + $0x24] sm:$0xf]
          %v266 = vld [vmem:[%s255 + $0x28] sm:$0xf]
          %v267 = vld [vmem:[%s255 + $0x2c] sm:$0xf]
          %v268 = vld [vmem:[%s255 + $0x30] sm:$0xf]
          %v269 = vld [vmem:[%s255 + $0x34] sm:$0xf]
          %v270 = vld [vmem:[%s255 + $0x38] sm:$0xf]
          %v271 = vld [vmem:[%s255 + $0x3c] sm:$0xf]
          %v272 = vld [vmem:[%s255 + $0x40] sm:$0xf]
          %v273 = vld [vmem:[%s255 + $0x44] sm:$0xf]
          %v274 = vld [vmem:[%s255 + $0x48] sm:$0xf]
          %v275 = vld [vmem:[%s255 + $0x4c] sm:$0xf]
          %v276 = vld [vmem:[%s255 + $0x50] sm:$0xf]
          %v277 = vld [vmem:[%s255 + $0x54] sm:$0xf]
          %v278 = vld [vmem:[%s255 + $0x58] sm:$0xf]
          %v279 = vld [vmem:[%s255 + $0x5c] sm:$0xf]
          %v280 = vld [vmem:[%s255 + $0x60] sm:$0xf]
          %v281 = vld [vmem:[%s255 + $0x64] sm:$0xf]
          %v282 = vld [vmem:[%s255 + $0x68] sm:$0xf]
          %v283 = vld [vmem:[%s255 + $0x6c] sm:$0xf]
          %v284 = vld [vmem:[%s255 + $0x70] sm:$0xf]
          %v285 = vld [vmem:[%s255 + $0x74] sm:$0xf]
          %v286 = vld [vmem:[%s255 + $0x78] sm:$0xf]
          %v287 = vld [vmem:[%s255 + $0x7c] sm:$0xf]
          %v288 = vld [vmem:[%s255 + $0x80] sm:$0xf]
          %v289 = vld [vmem:[%s255 + $0x84] sm:$0xf]
          %v290 = vld [vmem:[%s255 + $0x88] sm:$0xf]
          %v291 = vld [vmem:[%s255 + $0x8c] sm:$0xf]
          %v292 = vld [vmem:[%s255 + $0x90] sm:$0xf]
          %v293 = vld [vmem:[%s255 + $0x94] sm:$0xf]
          %v294 = vld [vmem:[%s255 + $0x98] sm:$0xf]
          %v295 = vld [vmem:[%s255 + $0x9c] sm:$0xf]
          %v296 = vld [vmem:[%s255 + $0xa0] sm:$0xf]
          %v297 = vld [vmem:[%s255 + $0xa4] sm:$0xf]
          %v298 = vld [vmem:[%s255 + $0xa8] sm:$0xf]
          %v299 = vld [vmem:[%s255 + $0xac] sm:$0xf]
          %v300 = vld [vmem:[%s255 + $0xb0] sm:$0xf]
          %v301 = vld [vmem:[%s255 + $0xb4] sm:$0xf]
          %v302 = vld [vmem:[%s255 + $0xb8] sm:$0xf]
          %v303 = vld [vmem:[%s255 + $0xbc] sm:$0xf]
          %v304 = vld [vmem:[%s255 + $0xc0] sm:$0xf]
          %v305 = vld [vmem:[%s255 + $0xc4] sm:$0xf]
          %v306 = vld [vmem:[%s255 + $0xc8] sm:$0xf]
          %v307 = vld [vmem:[%s255 + $0xcc] sm:$0xf]
          %v308 = vld [vmem:[%s255 + $0xd0] sm:$0xf]
          %v309 = vld [vmem:[%s255 + $0xd4] sm:$0xf]
          %v310 = vld [vmem:[%s255 + $0xd8] sm:$0xf]
          %v311 = vld [vmem:[%s255 + $0xdc] sm:$0xf]
          %v312 = vld [vmem:[%s255 + $0xe0] sm:$0xf]
          %v313 = vld [vmem:[%s255 + $0xe4] sm:$0xf]
          %v314 = vld [vmem:[%s255 + $0xe8] sm:$0xf]
          %v315 = vld [vmem:[%s255 + $0xec] sm:$0xf]
          %v316 = vld [vmem:[%s255 + $0xf0] sm:$0xf]
          %v317 = vld [vmem:[%s255 + $0xf4] sm:$0xf]
          %v318 = vld [vmem:[%s255 + $0xf8] sm:$0xf]
          %v319 = vld [vmem:[%s255 + $0xfc] sm:$0xf]
          %v320 = vunpack.c.l.bf16 %v256
          %v321 = vunpack.c.l.bf16 %v257
          %v322 = vunpack.c.l.bf16 %v258
          %v323 = vunpack.c.l.bf16 %v259
          %v324 = vunpack.c.l.bf16 %v260
          %v325 = vunpack.c.l.bf16 %v261
          %v326 = vunpack.c.l.bf16 %v262
          %v327 = vunpack.c.l.bf16 %v263
          %v328 = vunpack.c.l.bf16 %v264
          %v329 = vunpack.c.l.bf16 %v265
          %v330 = vunpack.c.l.bf16 %v266
          %v331 = vunpack.c.l.bf16 %v267
          %v332 = vunpack.c.l.bf16 %v268
          %v333 = vunpack.c.l.bf16 %v269
          %v334 = vunpack.c.l.bf16 %v270
          %v335 = vunpack.c.l.bf16 %v271
          %v336 = vunpack.c.l.bf16 %v272
          %v337 = vunpack.c.l.bf16 %v273
          %v338 = vunpack.c.l.bf16 %v274
          %v339 = vunpack.c.l.bf16 %v275
          %v340 = vunpack.c.l.bf16 %v276
          %v341 = vunpack.c.l.bf16 %v277
          %v342 = vunpack.c.l.bf16 %v278
          %v343 = vunpack.c.l.bf16 %v279
          %v344 = vunpack.c.l.bf16 %v280
          %v345 = vunpack.c.l.bf16 %v281
          %v346 = vunpack.c.l.bf16 %v282
          %v347 = vunpack.c.l.bf16 %v283
          %v348 = vunpack.c.l.bf16 %v284
          %v349 = vunpack.c.l.bf16 %v285
          %v350 = vunpack.c.l.bf16 %v286
          %v351 = vunpack.c.l.bf16 %v287
          %v352 = vunpack.c.l.bf16 %v288
          %v353 = vunpack.c.l.bf16 %v289
          %v354 = vunpack.c.l.bf16 %v290
          %v355 = vunpack.c.l.bf16 %v291
          %v356 = vunpack.c.l.bf16 %v292
          %v357 = vunpack.c.l.bf16 %v293
          %v358 = vunpack.c.l.bf16 %v294
          %v359 = vunpack.c.l.bf16 %v295
          %v360 = vunpack.c.l.bf16 %v296
          %v361 = vunpack.c.l.bf16 %v297
          %v362 = vunpack.c.l.bf16 %v298
          %v363 = vunpack.c.l.bf16 %v299
          %v364 = vunpack.c.l.bf16 %v300
          %v365 = vunpack.c.l.bf16 %v301
          %v366 = vunpack.c.l.bf16 %v302
          %v367 = vunpack.c.l.bf16 %v303
          %v368 = vunpack.c.l.bf16 %v304
          %v369 = vunpack.c.l.bf16 %v305
          %v370 = vunpack.c.l.bf16 %v306
          %v371 = vunpack.c.l.bf16 %v307
          %v372 = vunpack.c.l.bf16 %v308
          %v373 = vunpack.c.l.bf16 %v309
          %v374 = vunpack.c.l.bf16 %v310
          %v375 = vunpack.c.l.bf16 %v311
          %v376 = vunpack.c.l.bf16 %v312
          %v377 = vunpack.c.l.bf16 %v313
          %v378 = vunpack.c.l.bf16 %v314
          %v379 = vunpack.c.l.bf16 %v315
          %v380 = vunpack.c.l.bf16 %v316
          %v381 = vunpack.c.l.bf16 %v317
          %v382 = vunpack.c.l.bf16 %v318
          %v383 = vunpack.c.l.bf16 %v319
          %384 = vst [vmem:[#allocation2] sm:$0xff] %v320
          %385 = vst [vmem:[#allocation2 + $0x8] sm:$0xff] %v321
          %386 = vst [vmem:[#allocation2 + $0x10] sm:$0xff] %v322
          %387 = vst [vmem:[#allocation2 + $0x18] sm:$0xff] %v323
          %388 = vst [vmem:[#allocation2 + $0x20] sm:$0xff] %v324
          %389 = vst [vmem:[#allocation2 + $0x28] sm:$0xff] %v325
          %390 = vst [vmem:[#allocation2 + $0x30] sm:$0xff] %v326
          %391 = vst [vmem:[#allocation2 + $0x38] sm:$0xff] %v327
          %392 = vst [vmem:[#allocation2 + $0x40] sm:$0xff] %v328
          %393 = vst [vmem:[#allocation2 + $0x48] sm:$0xff] %v329
          %394 = vst [vmem:[#allocation2 + $0x50] sm:$0xff] %v330
          %395 = vst [vmem:[#allocation2 + $0x58] sm:$0xff] %v331
          %396 = vst [vmem:[#allocation2 + $0x60] sm:$0xff] %v332
          %397 = vst [vmem:[#allocation2 + $0x68] sm:$0xff] %v333
          %398 = vst [vmem:[#allocation2 + $0x70] sm:$0xff] %v334
          %399 = vst [vmem:[#allocation2 + $0x78] sm:$0xff] %v335
          %400 = vst [vmem:[#allocation2 + $0x80] sm:$0xff] %v336
          %401 = vst [vmem:[#allocation2 + $0x88] sm:$0xff] %v337
          %402 = vst [vmem:[#allocation2 + $0x90] sm:$0xff] %v338
          %403 = vst [vmem:[#allocation2 + $0x98] sm:$0xff] %v339
          %404 = vst [vmem:[#allocation2 + $0xa0] sm:$0xff] %v340
          %405 = vst [vmem:[#allocation2 + $0xa8] sm:$0xff] %v341
          %406 = vst [vmem:[#allocation2 + $0xb0] sm:$0xff] %v342
          %407 = vst [vmem:[#allocation2 + $0xb8] sm:$0xff] %v343
          %408 = vst [vmem:[#allocation2 + $0xc0] sm:$0xff] %v344
          %409 = vst [vmem:[#allocation2 + $0xc8] sm:$0xff] %v345
          %410 = vst [vmem:[#allocation2 + $0xd0] sm:$0xff] %v346
          %411 = vst [vmem:[#allocation2 + $0xd8] sm:$0xff] %v347
          %412 = vst [vmem:[#allocation2 + $0xe0] sm:$0xff] %v348
          %413 = vst [vmem:[#allocation2 + $0xe8] sm:$0xff] %v349
          %414 = vst [vmem:[#allocation2 + $0xf0] sm:$0xff] %v350
          %415 = vst [vmem:[#allocation2 + $0xf8] sm:$0xff] %v351
          %416 = vst [vmem:[#allocation2 + $0x100] sm:$0xff] %v352
          %417 = vst [vmem:[#allocation2 + $0x108] sm:$0xff] %v353
          %418 = vst [vmem:[#allocation2 + $0x110] sm:$0xff] %v354
          %419 = vst [vmem:[#allocation2 + $0x118] sm:$0xff] %v355
          %420 = vst [vmem:[#allocation2 + $0x120] sm:$0xff] %v356
          %421 = vst [vmem:[#allocation2 + $0x128] sm:$0xff] %v357
          %422 = vst [vmem:[#allocation2 + $0x130] sm:$0xff] %v358
          %423 = vst [vmem:[#allocation2 + $0x138] sm:$0xff] %v359
          %424 = vst [vmem:[#allocation2 + $0x140] sm:$0xff] %v360
          %425 = vst [vmem:[#allocation2 + $0x148] sm:$0xff] %v361
          %426 = vst [vmem:[#allocation2 + $0x150] sm:$0xff] %v362
          %427 = vst [vmem:[#allocation2 + $0x158] sm:$0xff] %v363
          %428 = vst [vmem:[#allocation2 + $0x160] sm:$0xff] %v364
          %429 = vst [vmem:[#allocation2 + $0x168] sm:$0xff] %v365
          %430 = vst [vmem:[#allocation2 + $0x170] sm:$0xff] %v366
          %431 = vst [vmem:[#allocation2 + $0x178] sm:$0xff] %v367
          %432 = vst [vmem:[#allocation2 + $0x180] sm:$0xff] %v368
          %433 = vst [vmem:[#allocation2 + $0x188] sm:$0xff] %v369
          %434 = vst [vmem:[#allocation2 + $0x190] sm:$0xff] %v370
          %435 = vst [vmem:[#allocation2 + $0x198] sm:$0xff] %v371
          %436 = vst [vmem:[#allocation2 + $0x1a0] sm:$0xff] %v372
          %437 = vst [vmem:[#allocation2 + $0x1a8] sm:$0xff] %v373
          %438 = vst [vmem:[#allocation2 + $0x1b0] sm:$0xff] %v374
          %439 = vst [vmem:[#allocation2 + $0x1b8] sm:$0xff] %v375
          %440 = vst [vmem:[#allocation2 + $0x1c0] sm:$0xff] %v376
          %441 = vst [vmem:[#allocation2 + $0x1c8] sm:$0xff] %v377
          %442 = vst [vmem:[#allocation2 + $0x1d0] sm:$0xff] %v378
          %443 = vst [vmem:[#allocation2 + $0x1d8] sm:$0xff] %v379
          %444 = vst [vmem:[#allocation2 + $0x1e0] sm:$0xff] %v380
          %445 = vst [vmem:[#allocation2 + $0x1e8] sm:$0xff] %v381
          %446 = vst [vmem:[#allocation2 + $0x1f0] sm:$0xff] %v382
          %447 = vst [vmem:[#allocation2 + $0x1f8] sm:$0xff] %v383
        $region44: #{tpu_custom_call.1} parent=31 // pred_fallthru
          _
        %s448 = smul.u32 %s26, 1024
        %v449 = vld [vmem:[#allocation2] sm:$0xff]
        %v450 = vld [vmem:[#allocation2 + $0x8] sm:$0xff]
        %v451 = vld [vmem:[#allocation2 + $0x10] sm:$0xff]
        %v452 = vld [vmem:[#allocation2 + $0x18] sm:$0xff]
        %v453 = vld [vmem:[#allocation2 + $0x20] sm:$0xff]
        %v454 = vld [vmem:[#allocation2 + $0x28] sm:$0xff]
        %v455 = vld [vmem:[#allocation2 + $0x30] sm:$0xff]
        %v456 = vld [vmem:[#allocation2 + $0x38] sm:$0xff]
        %v457 = vld [vmem:[#allocation2 + $0x40] sm:$0xff]
        %v458 = vld [vmem:[#allocation2 + $0x48] sm:$0xff]
        %v459 = vld [vmem:[#allocation2 + $0x50] sm:$0xff]
        %v460 = vld [vmem:[#allocation2 + $0x58] sm:$0xff]
        %v461 = vld [vmem:[#allocation2 + $0x60] sm:$0xff]
        %v462 = vld [vmem:[#allocation2 + $0x68] sm:$0xff]
        %v463 = vld [vmem:[#allocation2 + $0x70] sm:$0xff]
        %v464 = vld [vmem:[#allocation2 + $0x78] sm:$0xff]
        %v465 = vld [vmem:[#allocation2 + $0x80] sm:$0xff]
        %v466 = vld [vmem:[#allocation2 + $0x88] sm:$0xff]
        %v467 = vld [vmem:[#allocation2 + $0x90] sm:$0xff]
        %v468 = vld [vmem:[#allocation2 + $0x98] sm:$0xff]
        %v469 = vld [vmem:[#allocation2 + $0xa0] sm:$0xff]
        %v470 = vld [vmem:[#allocation2 + $0xa8] sm:$0xff]
        %v471 = vld [vmem:[#allocation2 + $0xb0] sm:$0xff]
        %v472 = vld [vmem:[#allocation2 + $0xb8] sm:$0xff]
        %v473 = vld [vmem:[#allocation2 + $0xc0] sm:$0xff]
        %v474 = vld [vmem:[#allocation2 + $0xc8] sm:$0xff]
        %v475 = vld [vmem:[#allocation2 + $0xd0] sm:$0xff]
        %v476 = vld [vmem:[#allocation2 + $0xd8] sm:$0xff]
        %v477 = vld [vmem:[#allocation2 + $0xe0] sm:$0xff]
        %v478 = vld [vmem:[#allocation2 + $0xe8] sm:$0xff]
        %v479 = vld [vmem:[#allocation2 + $0xf0] sm:$0xff]
        %v480 = vld [vmem:[#allocation2 + $0xf8] sm:$0xff]
        %v481 = vld [vmem:[#allocation2 + $0x100] sm:$0xff]
        %v482 = vld [vmem:[#allocation2 + $0x108] sm:$0xff]
        %v483 = vld [vmem:[#allocation2 + $0x110] sm:$0xff]
        %v484 = vld [vmem:[#allocation2 + $0x118] sm:$0xff]
        %v485 = vld [vmem:[#allocation2 + $0x120] sm:$0xff]
        %v486 = vld [vmem:[#allocation2 + $0x128] sm:$0xff]
        %v487 = vld [vmem:[#allocation2 + $0x130] sm:$0xff]
        %v488 = vld [vmem:[#allocation2 + $0x138] sm:$0xff]
        %v489 = vld [vmem:[#allocation2 + $0x140] sm:$0xff]
        %v490 = vld [vmem:[#allocation2 + $0x148] sm:$0xff]
        %v491 = vld [vmem:[#allocation2 + $0x150] sm:$0xff]
        %v492 = vld [vmem:[#allocation2 + $0x158] sm:$0xff]
        %v493 = vld [vmem:[#allocation2 + $0x160] sm:$0xff]
        %v494 = vld [vmem:[#allocation2 + $0x168] sm:$0xff]
        %v495 = vld [vmem:[#allocation2 + $0x170] sm:$0xff]
        %v496 = vld [vmem:[#allocation2 + $0x178] sm:$0xff]
        %v497 = vld [vmem:[#allocation2 + $0x180] sm:$0xff]
        %v498 = vld [vmem:[#allocation2 + $0x188] sm:$0xff]
        %v499 = vld [vmem:[#allocation2 + $0x190] sm:$0xff]
        %v500 = vld [vmem:[#allocation2 + $0x198] sm:$0xff]
        %v501 = vld [vmem:[#allocation2 + $0x1a0] sm:$0xff]
        %v502 = vld [vmem:[#allocation2 + $0x1a8] sm:$0xff]
        %v503 = vld [vmem:[#allocation2 + $0x1b0] sm:$0xff]
        %v504 = vld [vmem:[#allocation2 + $0x1b8] sm:$0xff]
        %v505 = vld [vmem:[#allocation2 + $0x1c0] sm:$0xff]
        %v506 = vld [vmem:[#allocation2 + $0x1c8] sm:$0xff]
        %v507 = vld [vmem:[#allocation2 + $0x1d0] sm:$0xff]
        %v508 = vld [vmem:[#allocation2 + $0x1d8] sm:$0xff]
        %v509 = vld [vmem:[#allocation2 + $0x1e0] sm:$0xff]
        %v510 = vld [vmem:[#allocation2 + $0x1e8] sm:$0xff]
        %v511 = vld [vmem:[#allocation2 + $0x1f0] sm:$0xff]
        %v512 = vld [vmem:[#allocation2 + $0x1f8] sm:$0xff]
        %v513 = vld [vmem:[%s205] sm:$0xff]
        %v514 = vld [vmem:[%s205 + $0x8] sm:$0xff]
        %v515 = vld [vmem:[%s205 + $0x10] sm:$0xff]
        %v516 = vld [vmem:[%s205 + $0x18] sm:$0xff]
        %v517 = vld [vmem:[%s205 + $0x20] sm:$0xff]
        %v518 = vld [vmem:[%s205 + $0x28] sm:$0xff]
        %v519 = vld [vmem:[%s205 + $0x30] sm:$0xff]
        %v520 = vld [vmem:[%s205 + $0x38] sm:$0xff]
        %v521 = vld [vmem:[%s205 + $0x40] sm:$0xff]
        %v522 = vld [vmem:[%s205 + $0x48] sm:$0xff]
        %v523 = vld [vmem:[%s205 + $0x50] sm:$0xff]
        %v524 = vld [vmem:[%s205 + $0x58] sm:$0xff]
        %v525 = vld [vmem:[%s205 + $0x60] sm:$0xff]
        %v526 = vld [vmem:[%s205 + $0x68] sm:$0xff]
        %v527 = vld [vmem:[%s205 + $0x70] sm:$0xff]
        %v528 = vld [vmem:[%s205 + $0x78] sm:$0xff]
        %v529 = vld [vmem:[%s205 + $0x80] sm:$0xff]
        %v530 = vld [vmem:[%s205 + $0x88] sm:$0xff]
        %v531 = vld [vmem:[%s205 + $0x90] sm:$0xff]
        %v532 = vld [vmem:[%s205 + $0x98] sm:$0xff]
        %v533 = vld [vmem:[%s205 + $0xa0] sm:$0xff]
        %v534 = vld [vmem:[%s205 + $0xa8] sm:$0xff]
        %v535 = vld [vmem:[%s205 + $0xb0] sm:$0xff]
        %v536 = vld [vmem:[%s205 + $0xb8] sm:$0xff]
        %v537 = vld [vmem:[%s205 + $0xc0] sm:$0xff]
        %v538 = vld [vmem:[%s205 + $0xc8] sm:$0xff]
        %v539 = vld [vmem:[%s205 + $0xd0] sm:$0xff]
        %v540 = vld [vmem:[%s205 + $0xd8] sm:$0xff]
        %v541 = vld [vmem:[%s205 + $0xe0] sm:$0xff]
        %v542 = vld [vmem:[%s205 + $0xe8] sm:$0xff]
        %v543 = vld [vmem:[%s205 + $0xf0] sm:$0xff]
        %v544 = vld [vmem:[%s205 + $0xf8] sm:$0xff]
        %v545 = vld [vmem:[%s205 + $0x100] sm:$0xff]
        %v546 = vld [vmem:[%s205 + $0x108] sm:$0xff]
        %v547 = vld [vmem:[%s205 + $0x110] sm:$0xff]
        %v548 = vld [vmem:[%s205 + $0x118] sm:$0xff]
        %v549 = vld [vmem:[%s205 + $0x120] sm:$0xff]
        %v550 = vld [vmem:[%s205 + $0x128] sm:$0xff]
        %v551 = vld [vmem:[%s205 + $0x130] sm:$0xff]
        %v552 = vld [vmem:[%s205 + $0x138] sm:$0xff]
        %v553 = vld [vmem:[%s205 + $0x140] sm:$0xff]
        %v554 = vld [vmem:[%s205 + $0x148] sm:$0xff]
        %v555 = vld [vmem:[%s205 + $0x150] sm:$0xff]
        %v556 = vld [vmem:[%s205 + $0x158] sm:$0xff]
        %v557 = vld [vmem:[%s205 + $0x160] sm:$0xff]
        %v558 = vld [vmem:[%s205 + $0x168] sm:$0xff]
        %v559 = vld [vmem:[%s205 + $0x170] sm:$0xff]
        %v560 = vld [vmem:[%s205 + $0x178] sm:$0xff]
        %v561 = vld [vmem:[%s205 + $0x180] sm:$0xff]
        %v562 = vld [vmem:[%s205 + $0x188] sm:$0xff]
        %v563 = vld [vmem:[%s205 + $0x190] sm:$0xff]
        %v564 = vld [vmem:[%s205 + $0x198] sm:$0xff]
        %v565 = vld [vmem:[%s205 + $0x1a0] sm:$0xff]
        %v566 = vld [vmem:[%s205 + $0x1a8] sm:$0xff]
        %v567 = vld [vmem:[%s205 + $0x1b0] sm:$0xff]
        %v568 = vld [vmem:[%s205 + $0x1b8] sm:$0xff]
        %v569 = vld [vmem:[%s205 + $0x1c0] sm:$0xff]
        %v570 = vld [vmem:[%s205 + $0x1c8] sm:$0xff]
        %v571 = vld [vmem:[%s205 + $0x1d0] sm:$0xff]
        %v572 = vld [vmem:[%s205 + $0x1d8] sm:$0xff]
        %v573 = vld [vmem:[%s205 + $0x1e0] sm:$0xff]
        %v574 = vld [vmem:[%s205 + $0x1e8] sm:$0xff]
        %v575 = vld [vmem:[%s205 + $0x1f0] sm:$0xff]
        %v576 = vld [vmem:[%s205 + $0x1f8] sm:$0xff]
        %v577 = vld [vmem:[%s205 + $0x200] sm:$0xff]
        %v578 = vld [vmem:[%s205 + $0x208] sm:$0xff]
        %v579 = vld [vmem:[%s205 + $0x210] sm:$0xff]
        %v580 = vld [vmem:[%s205 + $0x218] sm:$0xff]
        %v581 = vld [vmem:[%s205 + $0x220] sm:$0xff]
        %v582 = vld [vmem:[%s205 + $0x228] sm:$0xff]
        %v583 = vld [vmem:[%s205 + $0x230] sm:$0xff]
        %v584 = vld [vmem:[%s205 + $0x238] sm:$0xff]
        %v585 = vld [vmem:[%s205 + $0x240] sm:$0xff]
        %v586 = vld [vmem:[%s205 + $0x248] sm:$0xff]
        %v587 = vld [vmem:[%s205 + $0x250] sm:$0xff]
        %v588 = vld [vmem:[%s205 + $0x258] sm:$0xff]
        %v589 = vld [vmem:[%s205 + $0x260] sm:$0xff]
        %v590 = vld [vmem:[%s205 + $0x268] sm:$0xff]
        %v591 = vld [vmem:[%s205 + $0x270] sm:$0xff]
        %v592 = vld [vmem:[%s205 + $0x278] sm:$0xff]
        %v593 = vld [vmem:[%s205 + $0x280] sm:$0xff]
        %v594 = vld [vmem:[%s205 + $0x288] sm:$0xff]
        %v595 = vld [vmem:[%s205 + $0x290] sm:$0xff]
        %v596 = vld [vmem:[%s205 + $0x298] sm:$0xff]
        %v597 = vld [vmem:[%s205 + $0x2a0] sm:$0xff]
        %v598 = vld [vmem:[%s205 + $0x2a8] sm:$0xff]
        %v599 = vld [vmem:[%s205 + $0x2b0] sm:$0xff]
        %v600 = vld [vmem:[%s205 + $0x2b8] sm:$0xff]
        %v601 = vld [vmem:[%s205 + $0x2c0] sm:$0xff]
        %v602 = vld [vmem:[%s205 + $0x2c8] sm:$0xff]
        %v603 = vld [vmem:[%s205 + $0x2d0] sm:$0xff]
        %v604 = vld [vmem:[%s205 + $0x2d8] sm:$0xff]
        %v605 = vld [vmem:[%s205 + $0x2e0] sm:$0xff]
        %v606 = vld [vmem:[%s205 + $0x2e8] sm:$0xff]
        %v607 = vld [vmem:[%s205 + $0x2f0] sm:$0xff]
        %v608 = vld [vmem:[%s205 + $0x2f8] sm:$0xff]
        %v609 = vld [vmem:[%s205 + $0x300] sm:$0xff]
        %v610 = vld [vmem:[%s205 + $0x308] sm:$0xff]
        %v611 = vld [vmem:[%s205 + $0x310] sm:$0xff]
        %v612 = vld [vmem:[%s205 + $0x318] sm:$0xff]
        %v613 = vld [vmem:[%s205 + $0x320] sm:$0xff]
        %v614 = vld [vmem:[%s205 + $0x328] sm:$0xff]
        %v615 = vld [vmem:[%s205 + $0x330] sm:$0xff]
        %v616 = vld [vmem:[%s205 + $0x338] sm:$0xff]
        %v617 = vld [vmem:[%s205 + $0x340] sm:$0xff]
        %v618 = vld [vmem:[%s205 + $0x348] sm:$0xff]
        %v619 = vld [vmem:[%s205 + $0x350] sm:$0xff]
        %v620 = vld [vmem:[%s205 + $0x358] sm:$0xff]
        %v621 = vld [vmem:[%s205 + $0x360] sm:$0xff]
        %v622 = vld [vmem:[%s205 + $0x368] sm:$0xff]
        %v623 = vld [vmem:[%s205 + $0x370] sm:$0xff]
        %v624 = vld [vmem:[%s205 + $0x378] sm:$0xff]
        %v625 = vld [vmem:[%s205 + $0x380] sm:$0xff]
        %v626 = vld [vmem:[%s205 + $0x388] sm:$0xff]
        %v627 = vld [vmem:[%s205 + $0x390] sm:$0xff]
        %v628 = vld [vmem:[%s205 + $0x398] sm:$0xff]
        %v629 = vld [vmem:[%s205 + $0x3a0] sm:$0xff]
        %v630 = vld [vmem:[%s205 + $0x3a8] sm:$0xff]
        %v631 = vld [vmem:[%s205 + $0x3b0] sm:$0xff]
        %v632 = vld [vmem:[%s205 + $0x3b8] sm:$0xff]
        %v633 = vld [vmem:[%s205 + $0x3c0] sm:$0xff]
        %v634 = vld [vmem:[%s205 + $0x3c8] sm:$0xff]
        %v635 = vld [vmem:[%s205 + $0x3d0] sm:$0xff]
        %v636 = vld [vmem:[%s205 + $0x3d8] sm:$0xff]
        %v637 = vld [vmem:[%s205 + $0x3e0] sm:$0xff]
        %v638 = vld [vmem:[%s205 + $0x3e8] sm:$0xff]
        %v639 = vld [vmem:[%s205 + $0x3f0] sm:$0xff]
        %v640 = vld [vmem:[%s205 + $0x3f8] sm:$0xff]
        %v641 = vld [vmem:[%s205 + $0x400] sm:$0xff]
        %v642 = vld [vmem:[%s205 + $0x408] sm:$0xff]
        %v643 = vld [vmem:[%s205 + $0x410] sm:$0xff]
        %v644 = vld [vmem:[%s205 + $0x418] sm:$0xff]
        %v645 = vld [vmem:[%s205 + $0x420] sm:$0xff]
        %v646 = vld [vmem:[%s205 + $0x428] sm:$0xff]
        %v647 = vld [vmem:[%s205 + $0x430] sm:$0xff]
        %v648 = vld [vmem:[%s205 + $0x438] sm:$0xff]
        %v649 = vld [vmem:[%s205 + $0x440] sm:$0xff]
        %v650 = vld [vmem:[%s205 + $0x448] sm:$0xff]
        %v651 = vld [vmem:[%s205 + $0x450] sm:$0xff]
        %v652 = vld [vmem:[%s205 + $0x458] sm:$0xff]
        %v653 = vld [vmem:[%s205 + $0x460] sm:$0xff]
        %v654 = vld [vmem:[%s205 + $0x468] sm:$0xff]
        %v655 = vld [vmem:[%s205 + $0x470] sm:$0xff]
        %v656 = vld [vmem:[%s205 + $0x478] sm:$0xff]
        %v657 = vld [vmem:[%s205 + $0x480] sm:$0xff]
        %v658 = vld [vmem:[%s205 + $0x488] sm:$0xff]
        %v659 = vld [vmem:[%s205 + $0x490] sm:$0xff]
        %v660 = vld [vmem:[%s205 + $0x498] sm:$0xff]
        %v661 = vld [vmem:[%s205 + $0x4a0] sm:$0xff]
        %v662 = vld [vmem:[%s205 + $0x4a8] sm:$0xff]
        %v663 = vld [vmem:[%s205 + $0x4b0] sm:$0xff]
        %v664 = vld [vmem:[%s205 + $0x4b8] sm:$0xff]
        %v665 = vld [vmem:[%s205 + $0x4c0] sm:$0xff]
        %v666 = vld [vmem:[%s205 + $0x4c8] sm:$0xff]
        %v667 = vld [vmem:[%s205 + $0x4d0] sm:$0xff]
        %v668 = vld [vmem:[%s205 + $0x4d8] sm:$0xff]
        %v669 = vld [vmem:[%s205 + $0x4e0] sm:$0xff]
        %v670 = vld [vmem:[%s205 + $0x4e8] sm:$0xff]
        %v671 = vld [vmem:[%s205 + $0x4f0] sm:$0xff]
        %v672 = vld [vmem:[%s205 + $0x4f8] sm:$0xff]
        %v673 = vld [vmem:[%s205 + $0x500] sm:$0xff]
        %v674 = vld [vmem:[%s205 + $0x508] sm:$0xff]
        %v675 = vld [vmem:[%s205 + $0x510] sm:$0xff]
        %v676 = vld [vmem:[%s205 + $0x518] sm:$0xff]
        %v677 = vld [vmem:[%s205 + $0x520] sm:$0xff]
        %v678 = vld [vmem:[%s205 + $0x528] sm:$0xff]
        %v679 = vld [vmem:[%s205 + $0x530] sm:$0xff]
        %v680 = vld [vmem:[%s205 + $0x538] sm:$0xff]
        %v681 = vld [vmem:[%s205 + $0x540] sm:$0xff]
        %v682 = vld [vmem:[%s205 + $0x548] sm:$0xff]
        %v683 = vld [vmem:[%s205 + $0x550] sm:$0xff]
        %v684 = vld [vmem:[%s205 + $0x558] sm:$0xff]
        %v685 = vld [vmem:[%s205 + $0x560] sm:$0xff]
        %v686 = vld [vmem:[%s205 + $0x568] sm:$0xff]
        %v687 = vld [vmem:[%s205 + $0x570] sm:$0xff]
        %v688 = vld [vmem:[%s205 + $0x578] sm:$0xff]
        %v689 = vld [vmem:[%s205 + $0x580] sm:$0xff]
        %v690 = vld [vmem:[%s205 + $0x588] sm:$0xff]
        %v691 = vld [vmem:[%s205 + $0x590] sm:$0xff]
        %v692 = vld [vmem:[%s205 + $0x598] sm:$0xff]
        %v693 = vld [vmem:[%s205 + $0x5a0] sm:$0xff]
        %v694 = vld [vmem:[%s205 + $0x5a8] sm:$0xff]
        %v695 = vld [vmem:[%s205 + $0x5b0] sm:$0xff]
        %v696 = vld [vmem:[%s205 + $0x5b8] sm:$0xff]
        %v697 = vld [vmem:[%s205 + $0x5c0] sm:$0xff]
        %v698 = vld [vmem:[%s205 + $0x5c8] sm:$0xff]
        %v699 = vld [vmem:[%s205 + $0x5d0] sm:$0xff]
        %v700 = vld [vmem:[%s205 + $0x5d8] sm:$0xff]
        %v701 = vld [vmem:[%s205 + $0x5e0] sm:$0xff]
        %v702 = vld [vmem:[%s205 + $0x5e8] sm:$0xff]
        %v703 = vld [vmem:[%s205 + $0x5f0] sm:$0xff]
        %v704 = vld [vmem:[%s205 + $0x5f8] sm:$0xff]
        %v705 = vld [vmem:[%s205 + $0x600] sm:$0xff]
        %v706 = vld [vmem:[%s205 + $0x608] sm:$0xff]
        %v707 = vld [vmem:[%s205 + $0x610] sm:$0xff]
        %v708 = vld [vmem:[%s205 + $0x618] sm:$0xff]
        %v709 = vld [vmem:[%s205 + $0x620] sm:$0xff]
        %v710 = vld [vmem:[%s205 + $0x628] sm:$0xff]
        %v711 = vld [vmem:[%s205 + $0x630] sm:$0xff]
        %v712 = vld [vmem:[%s205 + $0x638] sm:$0xff]
        %v713 = vld [vmem:[%s205 + $0x640] sm:$0xff]
        %v714 = vld [vmem:[%s205 + $0x648] sm:$0xff]
        %v715 = vld [vmem:[%s205 + $0x650] sm:$0xff]
        %v716 = vld [vmem:[%s205 + $0x658] sm:$0xff]
        %v717 = vld [vmem:[%s205 + $0x660] sm:$0xff]
        %v718 = vld [vmem:[%s205 + $0x668] sm:$0xff]
        %v719 = vld [vmem:[%s205 + $0x670] sm:$0xff]
        %v720 = vld [vmem:[%s205 + $0x678] sm:$0xff]
        %v721 = vld [vmem:[%s205 + $0x680] sm:$0xff]
        %v722 = vld [vmem:[%s205 + $0x688] sm:$0xff]
        %v723 = vld [vmem:[%s205 + $0x690] sm:$0xff]
        %v724 = vld [vmem:[%s205 + $0x698] sm:$0xff]
        %v725 = vld [vmem:[%s205 + $0x6a0] sm:$0xff]
        %v726 = vld [vmem:[%s205 + $0x6a8] sm:$0xff]
        %v727 = vld [vmem:[%s205 + $0x6b0] sm:$0xff]
        %v728 = vld [vmem:[%s205 + $0x6b8] sm:$0xff]
        %v729 = vld [vmem:[%s205 + $0x6c0] sm:$0xff]
        %v730 = vld [vmem:[%s205 + $0x6c8] sm:$0xff]
        %v731 = vld [vmem:[%s205 + $0x6d0] sm:$0xff]
        %v732 = vld [vmem:[%s205 + $0x6d8] sm:$0xff]
        %v733 = vld [vmem:[%s205 + $0x6e0] sm:$0xff]
        %v734 = vld [vmem:[%s205 + $0x6e8] sm:$0xff]
        %v735 = vld [vmem:[%s205 + $0x6f0] sm:$0xff]
        %v736 = vld [vmem:[%s205 + $0x6f8] sm:$0xff]
        %v737 = vld [vmem:[%s205 + $0x700] sm:$0xff]
        %v738 = vld [vmem:[%s205 + $0x708] sm:$0xff]
        %v739 = vld [vmem:[%s205 + $0x710] sm:$0xff]
        %v740 = vld [vmem:[%s205 + $0x718] sm:$0xff]
        %v741 = vld [vmem:[%s205 + $0x720] sm:$0xff]
        %v742 = vld [vmem:[%s205 + $0x728] sm:$0xff]
        %v743 = vld [vmem:[%s205 + $0x730] sm:$0xff]
        %v744 = vld [vmem:[%s205 + $0x738] sm:$0xff]
        %v745 = vld [vmem:[%s205 + $0x740] sm:$0xff]
        %v746 = vld [vmem:[%s205 + $0x748] sm:$0xff]
        %v747 = vld [vmem:[%s205 + $0x750] sm:$0xff]
        %v748 = vld [vmem:[%s205 + $0x758] sm:$0xff]
        %v749 = vld [vmem:[%s205 + $0x760] sm:$0xff]
        %v750 = vld [vmem:[%s205 + $0x768] sm:$0xff]
        %v751 = vld [vmem:[%s205 + $0x770] sm:$0xff]
        %v752 = vld [vmem:[%s205 + $0x778] sm:$0xff]
        %v753 = vld [vmem:[%s205 + $0x780] sm:$0xff]
        %v754 = vld [vmem:[%s205 + $0x788] sm:$0xff]
        %v755 = vld [vmem:[%s205 + $0x790] sm:$0xff]
        %v756 = vld [vmem:[%s205 + $0x798] sm:$0xff]
        %v757 = vld [vmem:[%s205 + $0x7a0] sm:$0xff]
        %v758 = vld [vmem:[%s205 + $0x7a8] sm:$0xff]
        %v759 = vld [vmem:[%s205 + $0x7b0] sm:$0xff]
        %v760 = vld [vmem:[%s205 + $0x7b8] sm:$0xff]
        %v761 = vld [vmem:[%s205 + $0x7c0] sm:$0xff]
        %v762 = vld [vmem:[%s205 + $0x7c8] sm:$0xff]
        %v763 = vld [vmem:[%s205 + $0x7d0] sm:$0xff]
        %v764 = vld [vmem:[%s205 + $0x7d8] sm:$0xff]
        %v765 = vld [vmem:[%s205 + $0x7e0] sm:$0xff]
        %v766 = vld [vmem:[%s205 + $0x7e8] sm:$0xff]
        %v767 = vld [vmem:[%s205 + $0x7f0] sm:$0xff]
        %v768 = vld [vmem:[%s205 + $0x7f8] sm:$0xff]
        %s769 = sshra.s32 %s448, 3
        %s770 = sand.u32 %s448, 7
        %s771 = smul.addr %s769, 4
        %s772 = scalar_lea.vmem [#allocation6], %s771
        %v773 = vld [vmem:[%s772] sm:$0xf]
        %v774 = vld [vmem:[%s772 + $0x4] sm:$0xf]
        %v775 = vld [vmem:[%s772 + $0x8] sm:$0xf]
        %v776 = vld [vmem:[%s772 + $0xc] sm:$0xf]
        %v777 = vld [vmem:[%s772 + $0x10] sm:$0xf]
        %v778 = vld [vmem:[%s772 + $0x14] sm:$0xf]
        %v779 = vld [vmem:[%s772 + $0x18] sm:$0xf]
        %v780 = vld [vmem:[%s772 + $0x1c] sm:$0xf]
        %v781 = vld [vmem:[%s772 + $0x20] sm:$0xf]
        %v782 = vld [vmem:[%s772 + $0x24] sm:$0xf]
        %v783 = vld [vmem:[%s772 + $0x28] sm:$0xf]
        %v784 = vld [vmem:[%s772 + $0x2c] sm:$0xf]
        %v785 = vld [vmem:[%s772 + $0x30] sm:$0xf]
        %v786 = vld [vmem:[%s772 + $0x34] sm:$0xf]
        %v787 = vld [vmem:[%s772 + $0x38] sm:$0xf]
        %v788 = vld [vmem:[%s772 + $0x3c] sm:$0xf]
        %v789 = vld [vmem:[%s772 + $0x40] sm:$0xf]
        %v790 = vld [vmem:[%s772 + $0x44] sm:$0xf]
        %v791 = vld [vmem:[%s772 + $0x48] sm:$0xf]
        %v792 = vld [vmem:[%s772 + $0x4c] sm:$0xf]
        %v793 = vld [vmem:[%s772 + $0x50] sm:$0xf]
        %v794 = vld [vmem:[%s772 + $0x54] sm:$0xf]
        %v795 = vld [vmem:[%s772 + $0x58] sm:$0xf]
        %v796 = vld [vmem:[%s772 + $0x5c] sm:$0xf]
        %v797 = vld [vmem:[%s772 + $0x60] sm:$0xf]
        %v798 = vld [vmem:[%s772 + $0x64] sm:$0xf]
        %v799 = vld [vmem:[%s772 + $0x68] sm:$0xf]
        %v800 = vld [vmem:[%s772 + $0x6c] sm:$0xf]
        %v801 = vld [vmem:[%s772 + $0x70] sm:$0xf]
        %v802 = vld [vmem:[%s772 + $0x74] sm:$0xf]
        %v803 = vld [vmem:[%s772 + $0x78] sm:$0xf]
        %v804 = vld [vmem:[%s772 + $0x7c] sm:$0xf]
        %v805 = vld [vmem:[%s772 + $0x80] sm:$0xf]
        %v806 = vld [vmem:[%s772 + $0x84] sm:$0xf]
        %v807 = vld [vmem:[%s772 + $0x88] sm:$0xf]
        %v808 = vld [vmem:[%s772 + $0x8c] sm:$0xf]
        %v809 = vld [vmem:[%s772 + $0x90] sm:$0xf]
        %v810 = vld [vmem:[%s772 + $0x94] sm:$0xf]
        %v811 = vld [vmem:[%s772 + $0x98] sm:$0xf]
        %v812 = vld [vmem:[%s772 + $0x9c] sm:$0xf]
        %v813 = vld [vmem:[%s772 + $0xa0] sm:$0xf]
        %v814 = vld [vmem:[%s772 + $0xa4] sm:$0xf]
        %v815 = vld [vmem:[%s772 + $0xa8] sm:$0xf]
        %v816 = vld [vmem:[%s772 + $0xac] sm:$0xf]
        %v817 = vld [vmem:[%s772 + $0xb0] sm:$0xf]
        %v818 = vld [vmem:[%s772 + $0xb4] sm:$0xf]
        %v819 = vld [vmem:[%s772 + $0xb8] sm:$0xf]
        %v820 = vld [vmem:[%s772 + $0xbc] sm:$0xf]
        %v821 = vld [vmem:[%s772 + $0xc0] sm:$0xf]
        %v822 = vld [vmem:[%s772 + $0xc4] sm:$0xf]
        %v823 = vld [vmem:[%s772 + $0xc8] sm:$0xf]
        %v824 = vld [vmem:[%s772 + $0xcc] sm:$0xf]
        %v825 = vld [vmem:[%s772 + $0xd0] sm:$0xf]
        %v826 = vld [vmem:[%s772 + $0xd4] sm:$0xf]
        %v827 = vld [vmem:[%s772 + $0xd8] sm:$0xf]
        %v828 = vld [vmem:[%s772 + $0xdc] sm:$0xf]
        %v829 = vld [vmem:[%s772 + $0xe0] sm:$0xf]
        %v830 = vld [vmem:[%s772 + $0xe4] sm:$0xf]
        %v831 = vld [vmem:[%s772 + $0xe8] sm:$0xf]
        %v832 = vld [vmem:[%s772 + $0xec] sm:$0xf]
        %v833 = vld [vmem:[%s772 + $0xf0] sm:$0xf]
        %v834 = vld [vmem:[%s772 + $0xf4] sm:$0xf]
        %v835 = vld [vmem:[%s772 + $0xf8] sm:$0xf]
        %v836 = vld [vmem:[%s772 + $0xfc] sm:$0xf]
        %v837 = vld [vmem:[%s772 + $0x100] sm:$0xf]
        %v838 = vld [vmem:[%s772 + $0x104] sm:$0xf]
        %v839 = vld [vmem:[%s772 + $0x108] sm:$0xf]
        %v840 = vld [vmem:[%s772 + $0x10c] sm:$0xf]
        %v841 = vld [vmem:[%s772 + $0x110] sm:$0xf]
        %v842 = vld [vmem:[%s772 + $0x114] sm:$0xf]
        %v843 = vld [vmem:[%s772 + $0x118] sm:$0xf]
        %v844 = vld [vmem:[%s772 + $0x11c] sm:$0xf]
        %v845 = vld [vmem:[%s772 + $0x120] sm:$0xf]
        %v846 = vld [vmem:[%s772 + $0x124] sm:$0xf]
        %v847 = vld [vmem:[%s772 + $0x128] sm:$0xf]
        %v848 = vld [vmem:[%s772 + $0x12c] sm:$0xf]
        %v849 = vld [vmem:[%s772 + $0x130] sm:$0xf]
        %v850 = vld [vmem:[%s772 + $0x134] sm:$0xf]
        %v851 = vld [vmem:[%s772 + $0x138] sm:$0xf]
        %v852 = vld [vmem:[%s772 + $0x13c] sm:$0xf]
        %v853 = vld [vmem:[%s772 + $0x140] sm:$0xf]
        %v854 = vld [vmem:[%s772 + $0x144] sm:$0xf]
        %v855 = vld [vmem:[%s772 + $0x148] sm:$0xf]
        %v856 = vld [vmem:[%s772 + $0x14c] sm:$0xf]
        %v857 = vld [vmem:[%s772 + $0x150] sm:$0xf]
        %v858 = vld [vmem:[%s772 + $0x154] sm:$0xf]
        %v859 = vld [vmem:[%s772 + $0x158] sm:$0xf]
        %v860 = vld [vmem:[%s772 + $0x15c] sm:$0xf]
        %v861 = vld [vmem:[%s772 + $0x160] sm:$0xf]
        %v862 = vld [vmem:[%s772 + $0x164] sm:$0xf]
        %v863 = vld [vmem:[%s772 + $0x168] sm:$0xf]
        %v864 = vld [vmem:[%s772 + $0x16c] sm:$0xf]
        %v865 = vld [vmem:[%s772 + $0x170] sm:$0xf]
        %v866 = vld [vmem:[%s772 + $0x174] sm:$0xf]
        %v867 = vld [vmem:[%s772 + $0x178] sm:$0xf]
        %v868 = vld [vmem:[%s772 + $0x17c] sm:$0xf]
        %v869 = vld [vmem:[%s772 + $0x180] sm:$0xf]
        %v870 = vld [vmem:[%s772 + $0x184] sm:$0xf]
        %v871 = vld [vmem:[%s772 + $0x188] sm:$0xf]
        %v872 = vld [vmem:[%s772 + $0x18c] sm:$0xf]
        %v873 = vld [vmem:[%s772 + $0x190] sm:$0xf]
        %v874 = vld [vmem:[%s772 + $0x194] sm:$0xf]
        %v875 = vld [vmem:[%s772 + $0x198] sm:$0xf]
        %v876 = vld [vmem:[%s772 + $0x19c] sm:$0xf]
        %v877 = vld [vmem:[%s772 + $0x1a0] sm:$0xf]
        %v878 = vld [vmem:[%s772 + $0x1a4] sm:$0xf]
        %v879 = vld [vmem:[%s772 + $0x1a8] sm:$0xf]
        %v880 = vld [vmem:[%s772 + $0x1ac] sm:$0xf]
        %v881 = vld [vmem:[%s772 + $0x1b0] sm:$0xf]
        %v882 = vld [vmem:[%s772 + $0x1b4] sm:$0xf]
        %v883 = vld [vmem:[%s772 + $0x1b8] sm:$0xf]
        %v884 = vld [vmem:[%s772 + $0x1bc] sm:$0xf]
        %v885 = vld [vmem:[%s772 + $0x1c0] sm:$0xf]
        %v886 = vld [vmem:[%s772 + $0x1c4] sm:$0xf]
        %v887 = vld [vmem:[%s772 + $0x1c8] sm:$0xf]
        %v888 = vld [vmem:[%s772 + $0x1cc] sm:$0xf]
        %v889 = vld [vmem:[%s772 + $0x1d0] sm:$0xf]
        %v890 = vld [vmem:[%s772 + $0x1d4] sm:$0xf]
        %v891 = vld [vmem:[%s772 + $0x1d8] sm:$0xf]
        %v892 = vld [vmem:[%s772 + $0x1dc] sm:$0xf]
        %v893 = vld [vmem:[%s772 + $0x1e0] sm:$0xf]
        %v894 = vld [vmem:[%s772 + $0x1e4] sm:$0xf]
        %v895 = vld [vmem:[%s772 + $0x1e8] sm:$0xf]
        %v896 = vld [vmem:[%s772 + $0x1ec] sm:$0xf]
        %v897 = vld [vmem:[%s772 + $0x1f0] sm:$0xf]
        %v898 = vld [vmem:[%s772 + $0x1f4] sm:$0xf]
        %v899 = vld [vmem:[%s772 + $0x1f8] sm:$0xf]
        %v900 = vld [vmem:[%s772 + $0x1fc] sm:$0xf]
        %v1157 = vunpack.c.l.b16 %v513
        %v1158 = vunpack.c.h.b16 %v513
        %v1159 = vunpack.c.l.b16 %v514
        %v1160 = vunpack.c.h.b16 %v514
        %v1161 = vunpack.c.l.b16 %v515
        %v1162 = vunpack.c.h.b16 %v515
        %v1163 = vunpack.c.l.b16 %v516
        %v1164 = vunpack.c.h.b16 %v516
        %v1165 = vunpack.c.l.b16 %v517
        %v1166 = vunpack.c.h.b16 %v517
        %v1167 = vunpack.c.l.b16 %v518
        %v1168 = vunpack.c.h.b16 %v518
        %v1169 = vunpack.c.l.b16 %v519
        %v1170 = vunpack.c.h.b16 %v519
        %v1171 = vunpack.c.l.b16 %v520
        %v1172 = vunpack.c.h.b16 %v520
        %v1173 = vunpack.c.l.b16 %v521
        %v1174 = vunpack.c.h.b16 %v521
        %v1175 = vunpack.c.l.b16 %v522
        %v1176 = vunpack.c.h.b16 %v522
        %v1177 = vunpack.c.l.b16 %v523
        %v1178 = vunpack.c.h.b16 %v523
        %v1179 = vunpack.c.l.b16 %v524
        %v1180 = vunpack.c.h.b16 %v524
        %v1181 = vunpack.c.l.b16 %v525
        %v1182 = vunpack.c.h.b16 %v525
        %v1183 = vunpack.c.l.b16 %v526
        %v1184 = vunpack.c.h.b16 %v526
        %v1185 = vunpack.c.l.b16 %v527
        %v1186 = vunpack.c.h.b16 %v527
        %v1187 = vunpack.c.l.b16 %v528
        %v1188 = vunpack.c.h.b16 %v528
        %v1189 = vunpack.c.l.b16 %v529
        %v1190 = vunpack.c.h.b16 %v529
        %v1191 = vunpack.c.l.b16 %v530
        %v1192 = vunpack.c.h.b16 %v530
        %v1193 = vunpack.c.l.b16 %v531
        %v1194 = vunpack.c.h.b16 %v531
        %v1195 = vunpack.c.l.b16 %v532
        %v1196 = vunpack.c.h.b16 %v532
        %v1197 = vunpack.c.l.b16 %v533
        %v1198 = vunpack.c.h.b16 %v533
        %v1199 = vunpack.c.l.b16 %v534
        %v1200 = vunpack.c.h.b16 %v534
        %v1201 = vunpack.c.l.b16 %v535
        %v1202 = vunpack.c.h.b16 %v535
        %v1203 = vunpack.c.l.b16 %v536
        %v1204 = vunpack.c.h.b16 %v536
        %v1205 = vunpack.c.l.b16 %v537
        %v1206 = vunpack.c.h.b16 %v537
        %v1207 = vunpack.c.l.b16 %v538
        %v1208 = vunpack.c.h.b16 %v538
        %v1209 = vunpack.c.l.b16 %v539
        %v1210 = vunpack.c.h.b16 %v539
        %v1211 = vunpack.c.l.b16 %v540
        %v1212 = vunpack.c.h.b16 %v540
        %v1213 = vunpack.c.l.b16 %v541
        %v1214 = vunpack.c.h.b16 %v541
        %v1215 = vunpack.c.l.b16 %v542
        %v1216 = vunpack.c.h.b16 %v542
        %v1217 = vunpack.c.l.b16 %v543
        %v1218 = vunpack.c.h.b16 %v543
        %v1219 = vunpack.c.l.b16 %v544
        %v1220 = vunpack.c.h.b16 %v544
        %v1221 = vunpack.c.l.b16 %v545
        %v1222 = vunpack.c.h.b16 %v545
        %v1223 = vunpack.c.l.b16 %v546
        %v1224 = vunpack.c.h.b16 %v546
        %v1225 = vunpack.c.l.b16 %v547
        %v1226 = vunpack.c.h.b16 %v547
        %v1227 = vunpack.c.l.b16 %v548
        %v1228 = vunpack.c.h.b16 %v548
        %v1229 = vunpack.c.l.b16 %v549
        %v1230 = vunpack.c.h.b16 %v549
        %v1231 = vunpack.c.l.b16 %v550
        %v1232 = vunpack.c.h.b16 %v550
        %v1233 = vunpack.c.l.b16 %v551
        %v1234 = vunpack.c.h.b16 %v551
        %v1235 = vunpack.c.l.b16 %v552
        %v1236 = vunpack.c.h.b16 %v552
        %v1237 = vunpack.c.l.b16 %v553
        %v1238 = vunpack.c.h.b16 %v553
        %v1239 = vunpack.c.l.b16 %v554
        %v1240 = vunpack.c.h.b16 %v554
        %v1241 = vunpack.c.l.b16 %v555
        %v1242 = vunpack.c.h.b16 %v555
        %v1243 = vunpack.c.l.b16 %v556
        %v1244 = vunpack.c.h.b16 %v556
        %v1245 = vunpack.c.l.b16 %v557
        %v1246 = vunpack.c.h.b16 %v557
        %v1247 = vunpack.c.l.b16 %v558
        %v1248 = vunpack.c.h.b16 %v558
        %v1249 = vunpack.c.l.b16 %v559
        %v1250 = vunpack.c.h.b16 %v559
        %v1251 = vunpack.c.l.b16 %v560
        %v1252 = vunpack.c.h.b16 %v560
        %v1253 = vunpack.c.l.b16 %v561
        %v1254 = vunpack.c.h.b16 %v561
        %v1255 = vunpack.c.l.b16 %v562
        %v1256 = vunpack.c.h.b16 %v562
        %v1257 = vunpack.c.l.b16 %v563
        %v1258 = vunpack.c.h.b16 %v563
        %v1259 = vunpack.c.l.b16 %v564
        %v1260 = vunpack.c.h.b16 %v564
        %v1261 = vunpack.c.l.b16 %v565
        %v1262 = vunpack.c.h.b16 %v565
        %v1263 = vunpack.c.l.b16 %v566
        %v1264 = vunpack.c.h.b16 %v566
        %v1265 = vunpack.c.l.b16 %v567
        %v1266 = vunpack.c.h.b16 %v567
        %v1267 = vunpack.c.l.b16 %v568
        %v1268 = vunpack.c.h.b16 %v568
        %v1269 = vunpack.c.l.b16 %v569
        %v1270 = vunpack.c.h.b16 %v569
        %v1271 = vunpack.c.l.b16 %v570
        %v1272 = vunpack.c.h.b16 %v570
        %v1273 = vunpack.c.l.b16 %v571
        %v1274 = vunpack.c.h.b16 %v571
        %v1275 = vunpack.c.l.b16 %v572
        %v1276 = vunpack.c.h.b16 %v572
        %v1277 = vunpack.c.l.b16 %v573
        %v1278 = vunpack.c.h.b16 %v573
        %v1279 = vunpack.c.l.b16 %v574
        %v1280 = vunpack.c.h.b16 %v574
        %v1281 = vunpack.c.l.b16 %v575
        %v1282 = vunpack.c.h.b16 %v575
        %v1283 = vunpack.c.l.b16 %v576
        %v1284 = vunpack.c.h.b16 %v576
        %v1285 = vunpack.c.l.b16 %v577
        %v1286 = vunpack.c.h.b16 %v577
        %v1287 = vunpack.c.l.b16 %v578
        %v1288 = vunpack.c.h.b16 %v578
        %v1289 = vunpack.c.l.b16 %v579
        %v1290 = vunpack.c.h.b16 %v579
        %v1291 = vunpack.c.l.b16 %v580
        %v1292 = vunpack.c.h.b16 %v580
        %v1293 = vunpack.c.l.b16 %v581
        %v1294 = vunpack.c.h.b16 %v581
        %v1295 = vunpack.c.l.b16 %v582
        %v1296 = vunpack.c.h.b16 %v582
        %v1297 = vunpack.c.l.b16 %v583
        %v1298 = vunpack.c.h.b16 %v583
        %v1299 = vunpack.c.l.b16 %v584
        %v1300 = vunpack.c.h.b16 %v584
        %v1301 = vunpack.c.l.b16 %v585
        %v1302 = vunpack.c.h.b16 %v585
        %v1303 = vunpack.c.l.b16 %v586
        %v1304 = vunpack.c.h.b16 %v586
        %v1305 = vunpack.c.l.b16 %v587
        %v1306 = vunpack.c.h.b16 %v587
        %v1307 = vunpack.c.l.b16 %v588
        %v1308 = vunpack.c.h.b16 %v588
        %v1309 = vunpack.c.l.b16 %v589
        %v1310 = vunpack.c.h.b16 %v589
        %v1311 = vunpack.c.l.b16 %v590
        %v1312 = vunpack.c.h.b16 %v590
        %v1313 = vunpack.c.l.b16 %v591
        %v1314 = vunpack.c.h.b16 %v591
        %v1315 = vunpack.c.l.b16 %v592
        %v1316 = vunpack.c.h.b16 %v592
        %v1317 = vunpack.c.l.b16 %v593
        %v1318 = vunpack.c.h.b16 %v593
        %v1319 = vunpack.c.l.b16 %v594
        %v1320 = vunpack.c.h.b16 %v594
        %v1321 = vunpack.c.l.b16 %v595
        %v1322 = vunpack.c.h.b16 %v595
        %v1323 = vunpack.c.l.b16 %v596
        %v1324 = vunpack.c.h.b16 %v596
        %v1325 = vunpack.c.l.b16 %v597
        %v1326 = vunpack.c.h.b16 %v597
        %v1327 = vunpack.c.l.b16 %v598
        %v1328 = vunpack.c.h.b16 %v598
        %v1329 = vunpack.c.l.b16 %v599
        %v1330 = vunpack.c.h.b16 %v599
        %v1331 = vunpack.c.l.b16 %v600
        %v1332 = vunpack.c.h.b16 %v600
        %v1333 = vunpack.c.l.b16 %v601
        %v1334 = vunpack.c.h.b16 %v601
        %v1335 = vunpack.c.l.b16 %v602
        %v1336 = vunpack.c.h.b16 %v602
        %v1337 = vunpack.c.l.b16 %v603
        %v1338 = vunpack.c.h.b16 %v603
        %v1339 = vunpack.c.l.b16 %v604
        %v1340 = vunpack.c.h.b16 %v604
        %v1341 = vunpack.c.l.b16 %v605
        %v1342 = vunpack.c.h.b16 %v605
        %v1343 = vunpack.c.l.b16 %v606
        %v1344 = vunpack.c.h.b16 %v606
        %v1345 = vunpack.c.l.b16 %v607
        %v1346 = vunpack.c.h.b16 %v607
        %v1347 = vunpack.c.l.b16 %v608
        %v1348 = vunpack.c.h.b16 %v608
        %v1349 = vunpack.c.l.b16 %v609
        %v1350 = vunpack.c.h.b16 %v609
        %v1351 = vunpack.c.l.b16 %v610
        %v1352 = vunpack.c.h.b16 %v610
        %v1353 = vunpack.c.l.b16 %v611
        %v1354 = vunpack.c.h.b16 %v611
        %v1355 = vunpack.c.l.b16 %v612
        %v1356 = vunpack.c.h.b16 %v612
        %v1357 = vunpack.c.l.b16 %v613
        %v1358 = vunpack.c.h.b16 %v613
        %v1359 = vunpack.c.l.b16 %v614
        %v1360 = vunpack.c.h.b16 %v614
        %v1361 = vunpack.c.l.b16 %v615
        %v1362 = vunpack.c.h.b16 %v615
        %v1363 = vunpack.c.l.b16 %v616
        %v1364 = vunpack.c.h.b16 %v616
        %v1365 = vunpack.c.l.b16 %v617
        %v1366 = vunpack.c.h.b16 %v617
        %v1367 = vunpack.c.l.b16 %v618
        %v1368 = vunpack.c.h.b16 %v618
        %v1369 = vunpack.c.l.b16 %v619
        %v1370 = vunpack.c.h.b16 %v619
        %v1371 = vunpack.c.l.b16 %v620
        %v1372 = vunpack.c.h.b16 %v620
        %v1373 = vunpack.c.l.b16 %v621
        %v1374 = vunpack.c.h.b16 %v621
        %v1375 = vunpack.c.l.b16 %v622
        %v1376 = vunpack.c.h.b16 %v622
        %v1377 = vunpack.c.l.b16 %v623
        %v1378 = vunpack.c.h.b16 %v623
        %v1379 = vunpack.c.l.b16 %v624
        %v1380 = vunpack.c.h.b16 %v624
        %v1381 = vunpack.c.l.b16 %v625
        %v1382 = vunpack.c.h.b16 %v625
        %v1383 = vunpack.c.l.b16 %v626
        %v1384 = vunpack.c.h.b16 %v626
        %v1385 = vunpack.c.l.b16 %v627
        %v1386 = vunpack.c.h.b16 %v627
        %v1387 = vunpack.c.l.b16 %v628
        %v1388 = vunpack.c.h.b16 %v628
        %v1389 = vunpack.c.l.b16 %v629
        %v1390 = vunpack.c.h.b16 %v629
        %v1391 = vunpack.c.l.b16 %v630
        %v1392 = vunpack.c.h.b16 %v630
        %v1393 = vunpack.c.l.b16 %v631
        %v1394 = vunpack.c.h.b16 %v631
        %v1395 = vunpack.c.l.b16 %v632
        %v1396 = vunpack.c.h.b16 %v632
        %v1397 = vunpack.c.l.b16 %v633
        %v1398 = vunpack.c.h.b16 %v633
        %v1399 = vunpack.c.l.b16 %v634
        %v1400 = vunpack.c.h.b16 %v634
        %v1401 = vunpack.c.l.b16 %v635
        %v1402 = vunpack.c.h.b16 %v635
        %v1403 = vunpack.c.l.b16 %v636
        %v1404 = vunpack.c.h.b16 %v636
        %v1405 = vunpack.c.l.b16 %v637
        %v1406 = vunpack.c.h.b16 %v637
        %v1407 = vunpack.c.l.b16 %v638
        %v1408 = vunpack.c.h.b16 %v638
        %v1409 = vunpack.c.l.b16 %v639
        %v1410 = vunpack.c.h.b16 %v639
        %v1411 = vunpack.c.l.b16 %v640
        %v1412 = vunpack.c.h.b16 %v640
        %v1413 = vunpack.c.l.b16 %v641
        %v1414 = vunpack.c.h.b16 %v641
        %v1415 = vunpack.c.l.b16 %v642
        %v1416 = vunpack.c.h.b16 %v642
        %v1417 = vunpack.c.l.b16 %v643
        %v1418 = vunpack.c.h.b16 %v643
        %v1419 = vunpack.c.l.b16 %v644
        %v1420 = vunpack.c.h.b16 %v644
        %v1421 = vunpack.c.l.b16 %v645
        %v1422 = vunpack.c.h.b16 %v645
        %v1423 = vunpack.c.l.b16 %v646
        %v1424 = vunpack.c.h.b16 %v646
        %v1425 = vunpack.c.l.b16 %v647
        %v1426 = vunpack.c.h.b16 %v647
        %v1427 = vunpack.c.l.b16 %v648
        %v1428 = vunpack.c.h.b16 %v648
        %v1429 = vunpack.c.l.b16 %v649
        %v1430 = vunpack.c.h.b16 %v649
        %v1431 = vunpack.c.l.b16 %v650
        %v1432 = vunpack.c.h.b16 %v650
        %v1433 = vunpack.c.l.b16 %v651
        %v1434 = vunpack.c.h.b16 %v651
        %v1435 = vunpack.c.l.b16 %v652
        %v1436 = vunpack.c.h.b16 %v652
        %v1437 = vunpack.c.l.b16 %v653
        %v1438 = vunpack.c.h.b16 %v653
        %v1439 = vunpack.c.l.b16 %v654
        %v1440 = vunpack.c.h.b16 %v654
        %v1441 = vunpack.c.l.b16 %v655
        %v1442 = vunpack.c.h.b16 %v655
        %v1443 = vunpack.c.l.b16 %v656
        %v1444 = vunpack.c.h.b16 %v656
        %v1445 = vunpack.c.l.b16 %v657
        %v1446 = vunpack.c.h.b16 %v657
        %v1447 = vunpack.c.l.b16 %v658
        %v1448 = vunpack.c.h.b16 %v658
        %v1449 = vunpack.c.l.b16 %v659
        %v1450 = vunpack.c.h.b16 %v659
        %v1451 = vunpack.c.l.b16 %v660
        %v1452 = vunpack.c.h.b16 %v660
        %v1453 = vunpack.c.l.b16 %v661
        %v1454 = vunpack.c.h.b16 %v661
        %v1455 = vunpack.c.l.b16 %v662
        %v1456 = vunpack.c.h.b16 %v662
        %v1457 = vunpack.c.l.b16 %v663
        %v1458 = vunpack.c.h.b16 %v663
        %v1459 = vunpack.c.l.b16 %v664
        %v1460 = vunpack.c.h.b16 %v664
        %v1461 = vunpack.c.l.b16 %v665
        %v1462 = vunpack.c.h.b16 %v665
        %v1463 = vunpack.c.l.b16 %v666
        %v1464 = vunpack.c.h.b16 %v666
        %v1465 = vunpack.c.l.b16 %v667
        %v1466 = vunpack.c.h.b16 %v667
        %v1467 = vunpack.c.l.b16 %v668
        %v1468 = vunpack.c.h.b16 %v668
        %v1469 = vunpack.c.l.b16 %v669
        %v1470 = vunpack.c.h.b16 %v669
        %v1471 = vunpack.c.l.b16 %v670
        %v1472 = vunpack.c.h.b16 %v670
        %v1473 = vunpack.c.l.b16 %v671
        %v1474 = vunpack.c.h.b16 %v671
        %v1475 = vunpack.c.l.b16 %v672
        %v1476 = vunpack.c.h.b16 %v672
        %v1477 = vunpack.c.l.b16 %v673
        %v1478 = vunpack.c.h.b16 %v673
        %v1479 = vunpack.c.l.b16 %v674
        %v1480 = vunpack.c.h.b16 %v674
        %v1481 = vunpack.c.l.b16 %v675
        %v1482 = vunpack.c.h.b16 %v675
        %v1483 = vunpack.c.l.b16 %v676
        %v1484 = vunpack.c.h.b16 %v676
        %v1485 = vunpack.c.l.b16 %v677
        %v1486 = vunpack.c.h.b16 %v677
        %v1487 = vunpack.c.l.b16 %v678
        %v1488 = vunpack.c.h.b16 %v678
        %v1489 = vunpack.c.l.b16 %v679
        %v1490 = vunpack.c.h.b16 %v679
        %v1491 = vunpack.c.l.b16 %v680
        %v1492 = vunpack.c.h.b16 %v680
        %v1493 = vunpack.c.l.b16 %v681
        %v1494 = vunpack.c.h.b16 %v681
        %v1495 = vunpack.c.l.b16 %v682
        %v1496 = vunpack.c.h.b16 %v682
        %v1497 = vunpack.c.l.b16 %v683
        %v1498 = vunpack.c.h.b16 %v683
        %v1499 = vunpack.c.l.b16 %v684
        %v1500 = vunpack.c.h.b16 %v684
        %v1501 = vunpack.c.l.b16 %v685
        %v1502 = vunpack.c.h.b16 %v685
        %v1503 = vunpack.c.l.b16 %v686
        %v1504 = vunpack.c.h.b16 %v686
        %v1505 = vunpack.c.l.b16 %v687
        %v1506 = vunpack.c.h.b16 %v687
        %v1507 = vunpack.c.l.b16 %v688
        %v1508 = vunpack.c.h.b16 %v688
        %v1509 = vunpack.c.l.b16 %v689
        %v1510 = vunpack.c.h.b16 %v689
        %v1511 = vunpack.c.l.b16 %v690
        %v1512 = vunpack.c.h.b16 %v690
        %v1513 = vunpack.c.l.b16 %v691
        %v1514 = vunpack.c.h.b16 %v691
        %v1515 = vunpack.c.l.b16 %v692
        %v1516 = vunpack.c.h.b16 %v692
        %v1517 = vunpack.c.l.b16 %v693
        %v1518 = vunpack.c.h.b16 %v693
        %v1519 = vunpack.c.l.b16 %v694
        %v1520 = vunpack.c.h.b16 %v694
        %v1521 = vunpack.c.l.b16 %v695
        %v1522 = vunpack.c.h.b16 %v695
        %v1523 = vunpack.c.l.b16 %v696
        %v1524 = vunpack.c.h.b16 %v696
        %v1525 = vunpack.c.l.b16 %v697
        %v1526 = vunpack.c.h.b16 %v697
        %v1527 = vunpack.c.l.b16 %v698
        %v1528 = vunpack.c.h.b16 %v698
        %v1529 = vunpack.c.l.b16 %v699
        %v1530 = vunpack.c.h.b16 %v699
        %v1531 = vunpack.c.l.b16 %v700
        %v1532 = vunpack.c.h.b16 %v700
        %v1533 = vunpack.c.l.b16 %v701
        %v1534 = vunpack.c.h.b16 %v701
        %v1535 = vunpack.c.l.b16 %v702
        %v1536 = vunpack.c.h.b16 %v702
        %v1537 = vunpack.c.l.b16 %v703
        %v1538 = vunpack.c.h.b16 %v703
        %v1539 = vunpack.c.l.b16 %v704
        %v1540 = vunpack.c.h.b16 %v704
        %v1541 = vunpack.c.l.b16 %v705
        %v1542 = vunpack.c.h.b16 %v705
        %v1543 = vunpack.c.l.b16 %v706
        %v1544 = vunpack.c.h.b16 %v706
        %v1545 = vunpack.c.l.b16 %v707
        %v1546 = vunpack.c.h.b16 %v707
        %v1547 = vunpack.c.l.b16 %v708
        %v1548 = vunpack.c.h.b16 %v708
        %v1549 = vunpack.c.l.b16 %v709
        %v1550 = vunpack.c.h.b16 %v709
        %v1551 = vunpack.c.l.b16 %v710
        %v1552 = vunpack.c.h.b16 %v710
        %v1553 = vunpack.c.l.b16 %v711
        %v1554 = vunpack.c.h.b16 %v711
        %v1555 = vunpack.c.l.b16 %v712
        %v1556 = vunpack.c.h.b16 %v712
        %v1557 = vunpack.c.l.b16 %v713
        %v1558 = vunpack.c.h.b16 %v713
        %v1559 = vunpack.c.l.b16 %v714
        %v1560 = vunpack.c.h.b16 %v714
        %v1561 = vunpack.c.l.b16 %v715
        %v1562 = vunpack.c.h.b16 %v715
        %v1563 = vunpack.c.l.b16 %v716
        %v1564 = vunpack.c.h.b16 %v716
        %v1565 = vunpack.c.l.b16 %v717
        %v1566 = vunpack.c.h.b16 %v717
        %v1567 = vunpack.c.l.b16 %v718
        %v1568 = vunpack.c.h.b16 %v718
        %v1569 = vunpack.c.l.b16 %v719
        %v1570 = vunpack.c.h.b16 %v719
        %v1571 = vunpack.c.l.b16 %v720
        %v1572 = vunpack.c.h.b16 %v720
        %v1573 = vunpack.c.l.b16 %v721
        %v1574 = vunpack.c.h.b16 %v721
        %v1575 = vunpack.c.l.b16 %v722
        %v1576 = vunpack.c.h.b16 %v722
        %v1577 = vunpack.c.l.b16 %v723
        %v1578 = vunpack.c.h.b16 %v723
        %v1579 = vunpack.c.l.b16 %v724
        %v1580 = vunpack.c.h.b16 %v724
        %v1581 = vunpack.c.l.b16 %v725
        %v1582 = vunpack.c.h.b16 %v725
        %v1583 = vunpack.c.l.b16 %v726
        %v1584 = vunpack.c.h.b16 %v726
        %v1585 = vunpack.c.l.b16 %v727
        %v1586 = vunpack.c.h.b16 %v727
        %v1587 = vunpack.c.l.b16 %v728
        %v1588 = vunpack.c.h.b16 %v728
        %v1589 = vunpack.c.l.b16 %v729
        %v1590 = vunpack.c.h.b16 %v729
        %v1591 = vunpack.c.l.b16 %v730
        %v1592 = vunpack.c.h.b16 %v730
        %v1593 = vunpack.c.l.b16 %v731
        %v1594 = vunpack.c.h.b16 %v731
        %v1595 = vunpack.c.l.b16 %v732
        %v1596 = vunpack.c.h.b16 %v732
        %v1597 = vunpack.c.l.b16 %v733
        %v1598 = vunpack.c.h.b16 %v733
        %v1599 = vunpack.c.l.b16 %v734
        %v1600 = vunpack.c.h.b16 %v734
        %v1601 = vunpack.c.l.b16 %v735
        %v1602 = vunpack.c.h.b16 %v735
        %v1603 = vunpack.c.l.b16 %v736
        %v1604 = vunpack.c.h.b16 %v736
        %v1605 = vunpack.c.l.b16 %v737
        %v1606 = vunpack.c.h.b16 %v737
        %v1607 = vunpack.c.l.b16 %v738
        %v1608 = vunpack.c.h.b16 %v738
        %v1609 = vunpack.c.l.b16 %v739
        %v1610 = vunpack.c.h.b16 %v739
        %v1611 = vunpack.c.l.b16 %v740
        %v1612 = vunpack.c.h.b16 %v740
        %v1613 = vunpack.c.l.b16 %v741
        %v1614 = vunpack.c.h.b16 %v741
        %v1615 = vunpack.c.l.b16 %v742
        %v1616 = vunpack.c.h.b16 %v742
        %v1617 = vunpack.c.l.b16 %v743
        %v1618 = vunpack.c.h.b16 %v743
        %v1619 = vunpack.c.l.b16 %v744
        %v1620 = vunpack.c.h.b16 %v744
        %v1621 = vunpack.c.l.b16 %v745
        %v1622 = vunpack.c.h.b16 %v745
        %v1623 = vunpack.c.l.b16 %v746
        %v1624 = vunpack.c.h.b16 %v746
        %v1625 = vunpack.c.l.b16 %v747
        %v1626 = vunpack.c.h.b16 %v747
        %v1627 = vunpack.c.l.b16 %v748
        %v1628 = vunpack.c.h.b16 %v748
        %v1629 = vunpack.c.l.b16 %v749
        %v1630 = vunpack.c.h.b16 %v749
        %v1631 = vunpack.c.l.b16 %v750
        %v1632 = vunpack.c.h.b16 %v750
        %v1633 = vunpack.c.l.b16 %v751
        %v1634 = vunpack.c.h.b16 %v751
        %v1635 = vunpack.c.l.b16 %v752
        %v1636 = vunpack.c.h.b16 %v752
        %v1637 = vunpack.c.l.b16 %v753
        %v1638 = vunpack.c.h.b16 %v753
        %v1639 = vunpack.c.l.b16 %v754
        %v1640 = vunpack.c.h.b16 %v754
        %v1641 = vunpack.c.l.b16 %v755
        %v1642 = vunpack.c.h.b16 %v755
        %v1643 = vunpack.c.l.b16 %v756
        %v1644 = vunpack.c.h.b16 %v756
        %v1645 = vunpack.c.l.b16 %v757
        %v1646 = vunpack.c.h.b16 %v757
        %v1647 = vunpack.c.l.b16 %v758
        %v1648 = vunpack.c.h.b16 %v758
        %v1649 = vunpack.c.l.b16 %v759
        %v1650 = vunpack.c.h.b16 %v759
        %v1651 = vunpack.c.l.b16 %v760
        %v1652 = vunpack.c.h.b16 %v760
        %v1653 = vunpack.c.l.b16 %v761
        %v1654 = vunpack.c.h.b16 %v761
        %v1655 = vunpack.c.l.b16 %v762
        %v1656 = vunpack.c.h.b16 %v762
        %v1657 = vunpack.c.l.b16 %v763
        %v1658 = vunpack.c.h.b16 %v763
        %v1659 = vunpack.c.l.b16 %v764
        %v1660 = vunpack.c.h.b16 %v764
        %v1661 = vunpack.c.l.b16 %v765
        %v1662 = vunpack.c.h.b16 %v765
        %v1663 = vunpack.c.l.b16 %v766
        %v1664 = vunpack.c.h.b16 %v766
        %v1665 = vunpack.c.l.b16 %v767
        %v1666 = vunpack.c.h.b16 %v767
        %v1667 = vunpack.c.l.b16 %v768
        %v1668 = vunpack.c.h.b16 %v768
        %v1669 = vpack.c.b16 %v1165, %v1157
        %v1670 = vpack.c.b16 %v1166, %v1158
        %v1671 = vpack.c.b16 %v1167, %v1159
        %v1672 = vpack.c.b16 %v1168, %v1160
        %v1673 = vpack.c.b16 %v1169, %v1161
        %v1674 = vpack.c.b16 %v1170, %v1162
        %v1675 = vpack.c.b16 %v1171, %v1163
        %v1676 = vpack.c.b16 %v1172, %v1164
        %v1677 = vpack.c.b16 %v1181, %v1173
        %v1678 = vpack.c.b16 %v1182, %v1174
        %v1679 = vpack.c.b16 %v1183, %v1175
        %v1680 = vpack.c.b16 %v1184, %v1176
        %v1681 = vpack.c.b16 %v1185, %v1177
        %v1682 = vpack.c.b16 %v1186, %v1178
        %v1683 = vpack.c.b16 %v1187, %v1179
        %v1684 = vpack.c.b16 %v1188, %v1180
        %v1685 = vpack.c.b16 %v1197, %v1189
        %v1686 = vpack.c.b16 %v1198, %v1190
        %v1687 = vpack.c.b16 %v1199, %v1191
        %v1688 = vpack.c.b16 %v1200, %v1192
        %v1689 = vpack.c.b16 %v1201, %v1193
        %v1690 = vpack.c.b16 %v1202, %v1194
        %v1691 = vpack.c.b16 %v1203, %v1195
        %v1692 = vpack.c.b16 %v1204, %v1196
        %v1693 = vpack.c.b16 %v1213, %v1205
        %v1694 = vpack.c.b16 %v1214, %v1206
        %v1695 = vpack.c.b16 %v1215, %v1207
        %v1696 = vpack.c.b16 %v1216, %v1208
        %v1697 = vpack.c.b16 %v1217, %v1209
        %v1698 = vpack.c.b16 %v1218, %v1210
        %v1699 = vpack.c.b16 %v1219, %v1211
        %v1700 = vpack.c.b16 %v1220, %v1212
        %v1701 = vpack.c.b16 %v1229, %v1221
        %v1702 = vpack.c.b16 %v1230, %v1222
        %v1703 = vpack.c.b16 %v1231, %v1223
        %v1704 = vpack.c.b16 %v1232, %v1224
        %v1705 = vpack.c.b16 %v1233, %v1225
        %v1706 = vpack.c.b16 %v1234, %v1226
        %v1707 = vpack.c.b16 %v1235, %v1227
        %v1708 = vpack.c.b16 %v1236, %v1228
        %v1709 = vpack.c.b16 %v1245, %v1237
        %v1710 = vpack.c.b16 %v1246, %v1238
        %v1711 = vpack.c.b16 %v1247, %v1239
        %v1712 = vpack.c.b16 %v1248, %v1240
        %v1713 = vpack.c.b16 %v1249, %v1241
        %v1714 = vpack.c.b16 %v1250, %v1242
        %v1715 = vpack.c.b16 %v1251, %v1243
        %v1716 = vpack.c.b16 %v1252, %v1244
        %v1717 = vpack.c.b16 %v1261, %v1253
        %v1718 = vpack.c.b16 %v1262, %v1254
        %v1719 = vpack.c.b16 %v1263, %v1255
        %v1720 = vpack.c.b16 %v1264, %v1256
        %v1721 = vpack.c.b16 %v1265, %v1257
        %v1722 = vpack.c.b16 %v1266, %v1258
        %v1723 = vpack.c.b16 %v1267, %v1259
        %v1724 = vpack.c.b16 %v1268, %v1260
        %v1725 = vpack.c.b16 %v1277, %v1269
        %v1726 = vpack.c.b16 %v1278, %v1270
        %v1727 = vpack.c.b16 %v1279, %v1271
        %v1728 = vpack.c.b16 %v1280, %v1272
        %v1729 = vpack.c.b16 %v1281, %v1273
        %v1730 = vpack.c.b16 %v1282, %v1274
        %v1731 = vpack.c.b16 %v1283, %v1275
        %v1732 = vpack.c.b16 %v1284, %v1276
        %v1733 = vpack.c.b16 %v1293, %v1285
        %v1734 = vpack.c.b16 %v1294, %v1286
        %v1735 = vpack.c.b16 %v1295, %v1287
        %v1736 = vpack.c.b16 %v1296, %v1288
        %v1737 = vpack.c.b16 %v1297, %v1289
        %v1738 = vpack.c.b16 %v1298, %v1290
        %v1739 = vpack.c.b16 %v1299, %v1291
        %v1740 = vpack.c.b16 %v1300, %v1292
        %v1741 = vpack.c.b16 %v1309, %v1301
        %v1742 = vpack.c.b16 %v1310, %v1302
        %v1743 = vpack.c.b16 %v1311, %v1303
        %v1744 = vpack.c.b16 %v1312, %v1304
        %v1745 = vpack.c.b16 %v1313, %v1305
        %v1746 = vpack.c.b16 %v1314, %v1306
        %v1747 = vpack.c.b16 %v1315, %v1307
        %v1748 = vpack.c.b16 %v1316, %v1308
        %v1749 = vpack.c.b16 %v1325, %v1317
        %v1750 = vpack.c.b16 %v1326, %v1318
        %v1751 = vpack.c.b16 %v1327, %v1319
        %v1752 = vpack.c.b16 %v1328, %v1320
        %v1753 = vpack.c.b16 %v1329, %v1321
        %v1754 = vpack.c.b16 %v1330, %v1322
        %v1755 = vpack.c.b16 %v1331, %v1323
        %v1756 = vpack.c.b16 %v1332, %v1324
        %v1757 = vpack.c.b16 %v1341, %v1333
        %v1758 = vpack.c.b16 %v1342, %v1334
        %v1759 = vpack.c.b16 %v1343, %v1335
        %v1760 = vpack.c.b16 %v1344, %v1336
        %v1761 = vpack.c.b16 %v1345, %v1337
        %v1762 = vpack.c.b16 %v1346, %v1338
        %v1763 = vpack.c.b16 %v1347, %v1339
        %v1764 = vpack.c.b16 %v1348, %v1340
        %v1765 = vpack.c.b16 %v1357, %v1349
        %v1766 = vpack.c.b16 %v1358, %v1350
        %v1767 = vpack.c.b16 %v1359, %v1351
        %v1768 = vpack.c.b16 %v1360, %v1352
        %v1769 = vpack.c.b16 %v1361, %v1353
        %v1770 = vpack.c.b16 %v1362, %v1354
        %v1771 = vpack.c.b16 %v1363, %v1355
        %v1772 = vpack.c.b16 %v1364, %v1356
        %v1773 = vpack.c.b16 %v1373, %v1365
        %v1774 = vpack.c.b16 %v1374, %v1366
        %v1775 = vpack.c.b16 %v1375, %v1367
        %v1776 = vpack.c.b16 %v1376, %v1368
        %v1777 = vpack.c.b16 %v1377, %v1369
        %v1778 = vpack.c.b16 %v1378, %v1370
        %v1779 = vpack.c.b16 %v1379, %v1371
        %v1780 = vpack.c.b16 %v1380, %v1372
        %v1781 = vpack.c.b16 %v1389, %v1381
        %v1782 = vpack.c.b16 %v1390, %v1382
        %v1783 = vpack.c.b16 %v1391, %v1383
        %v1784 = vpack.c.b16 %v1392, %v1384
        %v1785 = vpack.c.b16 %v1393, %v1385
        %v1786 = vpack.c.b16 %v1394, %v1386
        %v1787 = vpack.c.b16 %v1395, %v1387
        %v1788 = vpack.c.b16 %v1396, %v1388
        %v1789 = vpack.c.b16 %v1405, %v1397
        %v1790 = vpack.c.b16 %v1406, %v1398
        %v1791 = vpack.c.b16 %v1407, %v1399
        %v1792 = vpack.c.b16 %v1408, %v1400
        %v1793 = vpack.c.b16 %v1409, %v1401
        %v1794 = vpack.c.b16 %v1410, %v1402
        %v1795 = vpack.c.b16 %v1411, %v1403
        %v1796 = vpack.c.b16 %v1412, %v1404
        %v1797 = vpack.c.b16 %v1421, %v1413
        %v1798 = vpack.c.b16 %v1422, %v1414
        %v1799 = vpack.c.b16 %v1423, %v1415
        %v1800 = vpack.c.b16 %v1424, %v1416
        %v1801 = vpack.c.b16 %v1425, %v1417
        %v1802 = vpack.c.b16 %v1426, %v1418
        %v1803 = vpack.c.b16 %v1427, %v1419
        %v1804 = vpack.c.b16 %v1428, %v1420
        %v1805 = vpack.c.b16 %v1437, %v1429
        %v1806 = vpack.c.b16 %v1438, %v1430
        %v1807 = vpack.c.b16 %v1439, %v1431
        %v1808 = vpack.c.b16 %v1440, %v1432
        %v1809 = vpack.c.b16 %v1441, %v1433
        %v1810 = vpack.c.b16 %v1442, %v1434
        %v1811 = vpack.c.b16 %v1443, %v1435
        %v1812 = vpack.c.b16 %v1444, %v1436
        %v1813 = vpack.c.b16 %v1453, %v1445
        %v1814 = vpack.c.b16 %v1454, %v1446
        %v1815 = vpack.c.b16 %v1455, %v1447
        %v1816 = vpack.c.b16 %v1456, %v1448
        %v1817 = vpack.c.b16 %v1457, %v1449
        %v1818 = vpack.c.b16 %v1458, %v1450
        %v1819 = vpack.c.b16 %v1459, %v1451
        %v1820 = vpack.c.b16 %v1460, %v1452
        %v1821 = vpack.c.b16 %v1469, %v1461
        %v1822 = vpack.c.b16 %v1470, %v1462
        %v1823 = vpack.c.b16 %v1471, %v1463
        %v1824 = vpack.c.b16 %v1472, %v1464
        %v1825 = vpack.c.b16 %v1473, %v1465
        %v1826 = vpack.c.b16 %v1474, %v1466
        %v1827 = vpack.c.b16 %v1475, %v1467
        %v1828 = vpack.c.b16 %v1476, %v1468
        %v1829 = vpack.c.b16 %v1485, %v1477
        %v1830 = vpack.c.b16 %v1486, %v1478
        %v1831 = vpack.c.b16 %v1487, %v1479
        %v1832 = vpack.c.b16 %v1488, %v1480
        %v1833 = vpack.c.b16 %v1489, %v1481
        %v1834 = vpack.c.b16 %v1490, %v1482
        %v1835 = vpack.c.b16 %v1491, %v1483
        %v1836 = vpack.c.b16 %v1492, %v1484
        %v1837 = vpack.c.b16 %v1501, %v1493
        %v1838 = vpack.c.b16 %v1502, %v1494
        %v1839 = vpack.c.b16 %v1503, %v1495
        %v1840 = vpack.c.b16 %v1504, %v1496
        %v1841 = vpack.c.b16 %v1505, %v1497
        %v1842 = vpack.c.b16 %v1506, %v1498
        %v1843 = vpack.c.b16 %v1507, %v1499
        %v1844 = vpack.c.b16 %v1508, %v1500
        %v1845 = vpack.c.b16 %v1517, %v1509
        %v1846 = vpack.c.b16 %v1518, %v1510
        %v1847 = vpack.c.b16 %v1519, %v1511
        %v1848 = vpack.c.b16 %v1520, %v1512
        %v1849 = vpack.c.b16 %v1521, %v1513
        %v1850 = vpack.c.b16 %v1522, %v1514
        %v1851 = vpack.c.b16 %v1523, %v1515
        %v1852 = vpack.c.b16 %v1524, %v1516
        %v1853 = vpack.c.b16 %v1533, %v1525
        %v1854 = vpack.c.b16 %v1534, %v1526
        %v1855 = vpack.c.b16 %v1535, %v1527
        %v1856 = vpack.c.b16 %v1536, %v1528
        %v1857 = vpack.c.b16 %v1537, %v1529
        %v1858 = vpack.c.b16 %v1538, %v1530
        %v1859 = vpack.c.b16 %v1539, %v1531
        %v1860 = vpack.c.b16 %v1540, %v1532
        %v1861 = vpack.c.b16 %v1549, %v1541
        %v1862 = vpack.c.b16 %v1550, %v1542
        %v1863 = vpack.c.b16 %v1551, %v1543
        %v1864 = vpack.c.b16 %v1552, %v1544
        %v1865 = vpack.c.b16 %v1553, %v1545
        %v1866 = vpack.c.b16 %v1554, %v1546
        %v1867 = vpack.c.b16 %v1555, %v1547
        %v1868 = vpack.c.b16 %v1556, %v1548
        %v1869 = vpack.c.b16 %v1565, %v1557
        %v1870 = vpack.c.b16 %v1566, %v1558
        %v1871 = vpack.c.b16 %v1567, %v1559
        %v1872 = vpack.c.b16 %v1568, %v1560
        %v1873 = vpack.c.b16 %v1569, %v1561
        %v1874 = vpack.c.b16 %v1570, %v1562
        %v1875 = vpack.c.b16 %v1571, %v1563
        %v1876 = vpack.c.b16 %v1572, %v1564
        %v1877 = vpack.c.b16 %v1581, %v1573
        %v1878 = vpack.c.b16 %v1582, %v1574
        %v1879 = vpack.c.b16 %v1583, %v1575
        %v1880 = vpack.c.b16 %v1584, %v1576
        %v1881 = vpack.c.b16 %v1585, %v1577
        %v1882 = vpack.c.b16 %v1586, %v1578
        %v1883 = vpack.c.b16 %v1587, %v1579
        %v1884 = vpack.c.b16 %v1588, %v1580
        %v1885 = vpack.c.b16 %v1597, %v1589
        %v1886 = vpack.c.b16 %v1598, %v1590
        %v1887 = vpack.c.b16 %v1599, %v1591
        %v1888 = vpack.c.b16 %v1600, %v1592
        %v1889 = vpack.c.b16 %v1601, %v1593
        %v1890 = vpack.c.b16 %v1602, %v1594
        %v1891 = vpack.c.b16 %v1603, %v1595
        %v1892 = vpack.c.b16 %v1604, %v1596
        %v1893 = vpack.c.b16 %v1613, %v1605
        %v1894 = vpack.c.b16 %v1614, %v1606
        %v1895 = vpack.c.b16 %v1615, %v1607
        %v1896 = vpack.c.b16 %v1616, %v1608
        %v1897 = vpack.c.b16 %v1617, %v1609
        %v1898 = vpack.c.b16 %v1618, %v1610
        %v1899 = vpack.c.b16 %v1619, %v1611
        %v1900 = vpack.c.b16 %v1620, %v1612
        %v1901 = vpack.c.b16 %v1629, %v1621
        %v1902 = vpack.c.b16 %v1630, %v1622
        %v1903 = vpack.c.b16 %v1631, %v1623
        %v1904 = vpack.c.b16 %v1632, %v1624
        %v1905 = vpack.c.b16 %v1633, %v1625
        %v1906 = vpack.c.b16 %v1634, %v1626
        %v1907 = vpack.c.b16 %v1635, %v1627
        %v1908 = vpack.c.b16 %v1636, %v1628
        %v1909 = vpack.c.b16 %v1645, %v1637
        %v1910 = vpack.c.b16 %v1646, %v1638
        %v1911 = vpack.c.b16 %v1647, %v1639
        %v1912 = vpack.c.b16 %v1648, %v1640
        %v1913 = vpack.c.b16 %v1649, %v1641
        %v1914 = vpack.c.b16 %v1650, %v1642
        %v1915 = vpack.c.b16 %v1651, %v1643
        %v1916 = vpack.c.b16 %v1652, %v1644
        %v1917 = vpack.c.b16 %v1661, %v1653
        %v1918 = vpack.c.b16 %v1662, %v1654
        %v1919 = vpack.c.b16 %v1663, %v1655
        %v1920 = vpack.c.b16 %v1664, %v1656
        %v1921 = vpack.c.b16 %v1665, %v1657
        %v1922 = vpack.c.b16 %v1666, %v1658
        %v1923 = vpack.c.b16 %v1667, %v1659
        %v1924 = vpack.c.b16 %v1668, %v1660
        %v2309 = vunpack.c.l.b16 %v773
        %v2310 = vunpack.c.l.b16 %v774
        %v2311 = vunpack.c.l.b16 %v775
        %v2312 = vunpack.c.l.b16 %v776
        %v2313 = vunpack.c.l.b16 %v777
        %v2314 = vunpack.c.l.b16 %v778
        %v2315 = vunpack.c.l.b16 %v779
        %v2316 = vunpack.c.l.b16 %v780
        %v2317 = vunpack.c.l.b16 %v781
        %v2318 = vunpack.c.l.b16 %v782
        %v2319 = vunpack.c.l.b16 %v783
        %v2320 = vunpack.c.l.b16 %v784
        %v2321 = vunpack.c.l.b16 %v785
        %v2322 = vunpack.c.l.b16 %v786
        %v2323 = vunpack.c.l.b16 %v787
        %v2324 = vunpack.c.l.b16 %v788
        %v2325 = vunpack.c.l.b16 %v789
        %v2326 = vunpack.c.l.b16 %v790
        %v2327 = vunpack.c.l.b16 %v791
        %v2328 = vunpack.c.l.b16 %v792
        %v2329 = vunpack.c.l.b16 %v793
        %v2330 = vunpack.c.l.b16 %v794
        %v2331 = vunpack.c.l.b16 %v795
        %v2332 = vunpack.c.l.b16 %v796
        %v2333 = vunpack.c.l.b16 %v797
        %v2334 = vunpack.c.l.b16 %v798
        %v2335 = vunpack.c.l.b16 %v799
        %v2336 = vunpack.c.l.b16 %v800
        %v2337 = vunpack.c.l.b16 %v801
        %v2338 = vunpack.c.l.b16 %v802
        %v2339 = vunpack.c.l.b16 %v803
        %v2340 = vunpack.c.l.b16 %v804
        %v2341 = vunpack.c.l.b16 %v805
        %v2342 = vunpack.c.l.b16 %v806
        %v2343 = vunpack.c.l.b16 %v807
        %v2344 = vunpack.c.l.b16 %v808
        %v2345 = vunpack.c.l.b16 %v809
        %v2346 = vunpack.c.l.b16 %v810
        %v2347 = vunpack.c.l.b16 %v811
        %v2348 = vunpack.c.l.b16 %v812
        %v2349 = vunpack.c.l.b16 %v813
        %v2350 = vunpack.c.l.b16 %v814
        %v2351 = vunpack.c.l.b16 %v815
        %v2352 = vunpack.c.l.b16 %v816
        %v2353 = vunpack.c.l.b16 %v817
        %v2354 = vunpack.c.l.b16 %v818
        %v2355 = vunpack.c.l.b16 %v819
        %v2356 = vunpack.c.l.b16 %v820
        %v2357 = vunpack.c.l.b16 %v821
        %v2358 = vunpack.c.l.b16 %v822
        %v2359 = vunpack.c.l.b16 %v823
        %v2360 = vunpack.c.l.b16 %v824
        %v2361 = vunpack.c.l.b16 %v825
        %v2362 = vunpack.c.l.b16 %v826
        %v2363 = vunpack.c.l.b16 %v827
        %v2364 = vunpack.c.l.b16 %v828
        %v2365 = vunpack.c.l.b16 %v829
        %v2366 = vunpack.c.l.b16 %v830
        %v2367 = vunpack.c.l.b16 %v831
        %v2368 = vunpack.c.l.b16 %v832
        %v2369 = vunpack.c.l.b16 %v833
        %v2370 = vunpack.c.l.b16 %v834
        %v2371 = vunpack.c.l.b16 %v835
        %v2372 = vunpack.c.l.b16 %v836
        %v2373 = vunpack.c.l.b16 %v837
        %v2374 = vunpack.c.l.b16 %v838
        %v2375 = vunpack.c.l.b16 %v839
        %v2376 = vunpack.c.l.b16 %v840
        %v2377 = vunpack.c.l.b16 %v841
        %v2378 = vunpack.c.l.b16 %v842
        %v2379 = vunpack.c.l.b16 %v843
        %v2380 = vunpack.c.l.b16 %v844
        %v2381 = vunpack.c.l.b16 %v845
        %v2382 = vunpack.c.l.b16 %v846
        %v2383 = vunpack.c.l.b16 %v847
        %v2384 = vunpack.c.l.b16 %v848
        %v2385 = vunpack.c.l.b16 %v849
        %v2386 = vunpack.c.l.b16 %v850
        %v2387 = vunpack.c.l.b16 %v851
        %v2388 = vunpack.c.l.b16 %v852
        %v2389 = vunpack.c.l.b16 %v853
        %v2390 = vunpack.c.l.b16 %v854
        %v2391 = vunpack.c.l.b16 %v855
        %v2392 = vunpack.c.l.b16 %v856
        %v2393 = vunpack.c.l.b16 %v857
        %v2394 = vunpack.c.l.b16 %v858
        %v2395 = vunpack.c.l.b16 %v859
        %v2396 = vunpack.c.l.b16 %v860
        %v2397 = vunpack.c.l.b16 %v861
        %v2398 = vunpack.c.l.b16 %v862
        %v2399 = vunpack.c.l.b16 %v863
        %v2400 = vunpack.c.l.b16 %v864
        %v2401 = vunpack.c.l.b16 %v865
        %v2402 = vunpack.c.l.b16 %v866
        %v2403 = vunpack.c.l.b16 %v867
        %v2404 = vunpack.c.l.b16 %v868
        %v2405 = vunpack.c.l.b16 %v869
        %v2406 = vunpack.c.l.b16 %v870
        %v2407 = vunpack.c.l.b16 %v871
        %v2408 = vunpack.c.l.b16 %v872
        %v2409 = vunpack.c.l.b16 %v873
        %v2410 = vunpack.c.l.b16 %v874
        %v2411 = vunpack.c.l.b16 %v875
        %v2412 = vunpack.c.l.b16 %v876
        %v2413 = vunpack.c.l.b16 %v877
        %v2414 = vunpack.c.l.b16 %v878
        %v2415 = vunpack.c.l.b16 %v879
        %v2416 = vunpack.c.l.b16 %v880
        %v2417 = vunpack.c.l.b16 %v881
        %v2418 = vunpack.c.l.b16 %v882
        %v2419 = vunpack.c.l.b16 %v883
        %v2420 = vunpack.c.l.b16 %v884
        %v2421 = vunpack.c.l.b16 %v885
        %v2422 = vunpack.c.l.b16 %v886
        %v2423 = vunpack.c.l.b16 %v887
        %v2424 = vunpack.c.l.b16 %v888
        %v2425 = vunpack.c.l.b16 %v889
        %v2426 = vunpack.c.l.b16 %v890
        %v2427 = vunpack.c.l.b16 %v891
        %v2428 = vunpack.c.l.b16 %v892
        %v2429 = vunpack.c.l.b16 %v893
        %v2430 = vunpack.c.l.b16 %v894
        %v2431 = vunpack.c.l.b16 %v895
        %v2432 = vunpack.c.l.b16 %v896
        %v2433 = vunpack.c.l.b16 %v897
        %v2434 = vunpack.c.l.b16 %v898
        %v2435 = vunpack.c.l.b16 %v899
        %v2436 = vunpack.c.l.b16 %v900
        %v2437 = vpack.c.b16 %v2310, %v2309
        %v2438 = vpack.c.b16 %v2312, %v2311
        %v2439 = vpack.c.b16 %v2314, %v2313
        %v2440 = vpack.c.b16 %v2316, %v2315
        %v2441 = vpack.c.b16 %v2318, %v2317
        %v2442 = vpack.c.b16 %v2320, %v2319
        %v2443 = vpack.c.b16 %v2322, %v2321
        %v2444 = vpack.c.b16 %v2324, %v2323
        %v2445 = vpack.c.b16 %v2326, %v2325
        %v2446 = vpack.c.b16 %v2328, %v2327
        %v2447 = vpack.c.b16 %v2330, %v2329
        %v2448 = vpack.c.b16 %v2332, %v2331
        %v2449 = vpack.c.b16 %v2334, %v2333
        %v2450 = vpack.c.b16 %v2336, %v2335
        %v2451 = vpack.c.b16 %v2338, %v2337
        %v2452 = vpack.c.b16 %v2340, %v2339
        %v2453 = vpack.c.b16 %v2342, %v2341
        %v2454 = vpack.c.b16 %v2344, %v2343
        %v2455 = vpack.c.b16 %v2346, %v2345
        %v2456 = vpack.c.b16 %v2348, %v2347
        %v2457 = vpack.c.b16 %v2350, %v2349
        %v2458 = vpack.c.b16 %v2352, %v2351
        %v2459 = vpack.c.b16 %v2354, %v2353
        %v2460 = vpack.c.b16 %v2356, %v2355
        %v2461 = vpack.c.b16 %v2358, %v2357
        %v2462 = vpack.c.b16 %v2360, %v2359
        %v2463 = vpack.c.b16 %v2362, %v2361
        %v2464 = vpack.c.b16 %v2364, %v2363
        %v2465 = vpack.c.b16 %v2366, %v2365
        %v2466 = vpack.c.b16 %v2368, %v2367
        %v2467 = vpack.c.b16 %v2370, %v2369
        %v2468 = vpack.c.b16 %v2372, %v2371
        %v2469 = vpack.c.b16 %v2374, %v2373
        %v2470 = vpack.c.b16 %v2376, %v2375
        %v2471 = vpack.c.b16 %v2378, %v2377
        %v2472 = vpack.c.b16 %v2380, %v2379
        %v2473 = vpack.c.b16 %v2382, %v2381
        %v2474 = vpack.c.b16 %v2384, %v2383
        %v2475 = vpack.c.b16 %v2386, %v2385
        %v2476 = vpack.c.b16 %v2388, %v2387
        %v2477 = vpack.c.b16 %v2390, %v2389
        %v2478 = vpack.c.b16 %v2392, %v2391
        %v2479 = vpack.c.b16 %v2394, %v2393
        %v2480 = vpack.c.b16 %v2396, %v2395
        %v2481 = vpack.c.b16 %v2398, %v2397
        %v2482 = vpack.c.b16 %v2400, %v2399
        %v2483 = vpack.c.b16 %v2402, %v2401
        %v2484 = vpack.c.b16 %v2404, %v2403
        %v2485 = vpack.c.b16 %v2406, %v2405
        %v2486 = vpack.c.b16 %v2408, %v2407
        %v2487 = vpack.c.b16 %v2410, %v2409
        %v2488 = vpack.c.b16 %v2412, %v2411
        %v2489 = vpack.c.b16 %v2414, %v2413
        %v2490 = vpack.c.b16 %v2416, %v2415
        %v2491 = vpack.c.b16 %v2418, %v2417
        %v2492 = vpack.c.b16 %v2420, %v2419
        %v2493 = vpack.c.b16 %v2422, %v2421
        %v2494 = vpack.c.b16 %v2424, %v2423
        %v2495 = vpack.c.b16 %v2426, %v2425
        %v2496 = vpack.c.b16 %v2428, %v2427
        %v2497 = vpack.c.b16 %v2430, %v2429
        %v2498 = vpack.c.b16 %v2432, %v2431
        %v2499 = vpack.c.b16 %v2434, %v2433
        %v2500 = vpack.c.b16 %v2436, %v2435
        %2565 = vmatprep.subr.bf16.mxu0 0
        %2566 = vmatpush1.bf16.msra.mxu0 %v2444
        %2567 = vmatprep.subr.bf16.mxu0 0
        %2568 = vmatpush1.bf16.msra.mxu0 %v2443
        %2569 = vmatprep.subr.bf16.mxu0 0
        %2570 = vmatpush1.bf16.msra.mxu0 %v2442
        %2571 = vmatprep.subr.bf16.mxu0 0
        %2572 = vmatpush1.bf16.msra.mxu0 %v2441
        %2573 = vmatprep.subr.bf16.mxu0 0
        %2574 = vmatpush1.bf16.msra.mxu0 %v2440
        %2575 = vmatprep.subr.bf16.mxu0 0
        %2576 = vmatpush1.bf16.msra.mxu0 %v2439
        %2577 = vmatprep.subr.bf16.mxu0 0
        %2578 = vmatpush1.bf16.msra.mxu0 %v2438
        %2579 = vmatprep.subr.bf16.mxu0 0
        %2580 = vmatpush1.bf16.msra.mxu0 %v2437
        %2581 = vmatprep.subr.bf16.mxu0 0
        %2582 = vmatpush2.bf16.msra.mxu0 %v2452
        %2583 = vmatprep.subr.bf16.mxu0 0
        %2584 = vmatpush2.bf16.msra.mxu0 %v2451
        %2585 = vmatprep.subr.bf16.mxu0 0
        %2586 = vmatpush2.bf16.msra.mxu0 %v2450
        %2587 = vmatprep.subr.bf16.mxu0 0
        %2588 = vmatpush2.bf16.msra.mxu0 %v2449
        %2589 = vmatprep.subr.bf16.mxu0 0
        %2590 = vmatpush2.bf16.msra.mxu0 %v2448
        %2591 = vmatprep.subr.bf16.mxu0 0
        %2592 = vmatpush2.bf16.msra.mxu0 %v2447
        %2593 = vmatprep.subr.bf16.mxu0 0
        %2594 = vmatpush2.bf16.msra.mxu0 %v2446
        %2595 = vmatprep.subr.bf16.mxu0 0
        %2596 = vmatpush2.bf16.msra.mxu0 %v2445
        %2597 = vmatprep.mubr.bf16.mxu0 %v1670
        %2598 = vmatmul.mubr.bf16.gmra.mxu0 %v1669
        %v2599 = vpop.f32.mrf.mxu0
        %v2600 = vadd.f32 0.0, %v2599
        %v2601 = vpop.f32.mrf.mxu0
        %v2602 = vpop.f32.mrf.mxu0
        %v2603 = vadd.f32 0.0, %v2602
        %v2604 = vpop.f32.mrf.mxu0
        %2605 = vmatprep.mubr.bf16.mxu0 %v1678
        %2606 = vmatmul.mubr.bf16.gmra.mxu0 %v1677
        %v2607 = vpop.f32.mrf.mxu0
        %v2608 = vadd.f32 0.0, %v2607
        %v2609 = vpop.f32.mrf.mxu0
        %v2610 = vpop.f32.mrf.mxu0
        %v2611 = vadd.f32 0.0, %v2610
        %v2612 = vpop.f32.mrf.mxu0
        %2613 = vmatprep.mubr.bf16.mxu0 %v1686
        %2614 = vmatmul.mubr.bf16.gmra.mxu0 %v1685
        %v2615 = vpop.f32.mrf.mxu0
        %v2616 = vadd.f32 0.0, %v2615
        %v2617 = vpop.f32.mrf.mxu0
        %v2618 = vpop.f32.mrf.mxu0
        %v2619 = vadd.f32 0.0, %v2618
        %v2620 = vpop.f32.mrf.mxu0
        %2621 = vmatprep.mubr.bf16.mxu0 %v1694
        %2622 = vmatmul.mubr.bf16.gmra.mxu0 %v1693
        %v2623 = vpop.f32.mrf.mxu0
        %v2624 = vadd.f32 0.0, %v2623
        %v2625 = vpop.f32.mrf.mxu0
        %v2626 = vpop.f32.mrf.mxu0
        %v2627 = vadd.f32 0.0, %v2626
        %v2628 = vpop.f32.mrf.mxu0
        %2629 = vmatprep.mubr.bf16.mxu0 %v1702
        %2630 = vmatmul.mubr.bf16.gmra.mxu0 %v1701
        %v2631 = vpop.f32.mrf.mxu0
        %v2632 = vadd.f32 0.0, %v2631
        %v2633 = vpop.f32.mrf.mxu0
        %v2634 = vpop.f32.mrf.mxu0
        %v2635 = vadd.f32 0.0, %v2634
        %v2636 = vpop.f32.mrf.mxu0
        %2637 = vmatprep.mubr.bf16.mxu0 %v1710
        %2638 = vmatmul.mubr.bf16.gmra.mxu0 %v1709
        %v2639 = vpop.f32.mrf.mxu0
        %v2640 = vadd.f32 0.0, %v2639
        %v2641 = vpop.f32.mrf.mxu0
        %v2642 = vpop.f32.mrf.mxu0
        %v2643 = vadd.f32 0.0, %v2642
        %v2644 = vpop.f32.mrf.mxu0
        %2645 = vmatprep.mubr.bf16.mxu0 %v1718
        %2646 = vmatmul.mubr.bf16.gmra.mxu0 %v1717
        %v2647 = vpop.f32.mrf.mxu0
        %v2648 = vadd.f32 0.0, %v2647
        %v2649 = vpop.f32.mrf.mxu0
        %v2650 = vpop.f32.mrf.mxu0
        %v2651 = vadd.f32 0.0, %v2650
        %v2652 = vpop.f32.mrf.mxu0
        %2653 = vmatprep.mubr.bf16.mxu0 %v1726
        %2654 = vmatmul.mubr.bf16.gmra.mxu0 %v1725
        %v2655 = vpop.f32.mrf.mxu0
        %v2656 = vadd.f32 0.0, %v2655
        %v2657 = vpop.f32.mrf.mxu0
        %v2658 = vpop.f32.mrf.mxu0
        %v2659 = vadd.f32 0.0, %v2658
        %v2660 = vpop.f32.mrf.mxu0
        %2661 = vmatprep.mubr.bf16.mxu0 %v1734
        %2662 = vmatmul.mubr.bf16.gmra.mxu0 %v1733
        %v2663 = vpop.f32.mrf.mxu0
        %v2664 = vadd.f32 0.0, %v2663
        %v2665 = vpop.f32.mrf.mxu0
        %v2666 = vpop.f32.mrf.mxu0
        %v2667 = vadd.f32 0.0, %v2666
        %v2668 = vpop.f32.mrf.mxu0
        %2669 = vmatprep.mubr.bf16.mxu0 %v1742
        %2670 = vmatmul.mubr.bf16.gmra.mxu0 %v1741
        %v2671 = vpop.f32.mrf.mxu0
        %v2672 = vadd.f32 0.0, %v2671
        %v2673 = vpop.f32.mrf.mxu0
        %v2674 = vpop.f32.mrf.mxu0
        %v2675 = vadd.f32 0.0, %v2674
        %v2676 = vpop.f32.mrf.mxu0
        %2677 = vmatprep.mubr.bf16.mxu0 %v1750
        %2678 = vmatmul.mubr.bf16.gmra.mxu0 %v1749
        %v2679 = vpop.f32.mrf.mxu0
        %v2680 = vadd.f32 0.0, %v2679
        %v2681 = vpop.f32.mrf.mxu0
        %v2682 = vpop.f32.mrf.mxu0
        %v2683 = vadd.f32 0.0, %v2682
        %v2684 = vpop.f32.mrf.mxu0
        %2685 = vmatprep.mubr.bf16.mxu0 %v1758
        %2686 = vmatmul.mubr.bf16.gmra.mxu0 %v1757
        %v2687 = vpop.f32.mrf.mxu0
        %v2688 = vadd.f32 0.0, %v2687
        %v2689 = vpop.f32.mrf.mxu0
        %v2690 = vpop.f32.mrf.mxu0
        %v2691 = vadd.f32 0.0, %v2690
        %v2692 = vpop.f32.mrf.mxu0
        %2693 = vmatprep.mubr.bf16.mxu0 %v1766
        %2694 = vmatmul.mubr.bf16.gmra.mxu0 %v1765
        %v2695 = vpop.f32.mrf.mxu0
        %v2696 = vadd.f32 0.0, %v2695
        %v2697 = vpop.f32.mrf.mxu0
        %v2698 = vpop.f32.mrf.mxu0
        %v2699 = vadd.f32 0.0, %v2698
        %v2700 = vpop.f32.mrf.mxu0
        %2701 = vmatprep.mubr.bf16.mxu0 %v1774
        %2702 = vmatmul.mubr.bf16.gmra.mxu0 %v1773
        %v2703 = vpop.f32.mrf.mxu0
        %v2704 = vadd.f32 0.0, %v2703
        %v2705 = vpop.f32.mrf.mxu0
        %v2706 = vpop.f32.mrf.mxu0
        %v2707 = vadd.f32 0.0, %v2706
        %v2708 = vpop.f32.mrf.mxu0
        %2709 = vmatprep.mubr.bf16.mxu0 %v1782
        %2710 = vmatmul.mubr.bf16.gmra.mxu0 %v1781
        %v2711 = vpop.f32.mrf.mxu0
        %v2712 = vadd.f32 0.0, %v2711
        %v2713 = vpop.f32.mrf.mxu0
        %v2714 = vpop.f32.mrf.mxu0
        %v2715 = vadd.f32 0.0, %v2714
        %v2716 = vpop.f32.mrf.mxu0
        %2717 = vmatprep.mubr.bf16.mxu0 %v1790
        %2718 = vmatmul.mubr.bf16.gmra.mxu0 %v1789
        %v2719 = vpop.f32.mrf.mxu0
        %v2720 = vadd.f32 0.0, %v2719
        %v2721 = vpop.f32.mrf.mxu0
        %v2722 = vpop.f32.mrf.mxu0
        %v2723 = vadd.f32 0.0, %v2722
        %v2724 = vpop.f32.mrf.mxu0
        %2725 = vmatprep.mubr.bf16.mxu0 %v1798
        %2726 = vmatmul.mubr.bf16.gmra.mxu0 %v1797
        %v2727 = vpop.f32.mrf.mxu0
        %v2728 = vadd.f32 0.0, %v2727
        %v2729 = vpop.f32.mrf.mxu0
        %v2730 = vpop.f32.mrf.mxu0
        %v2731 = vadd.f32 0.0, %v2730
        %v2732 = vpop.f32.mrf.mxu0
        %2733 = vmatprep.mubr.bf16.mxu0 %v1806
        %2734 = vmatmul.mubr.bf16.gmra.mxu0 %v1805
        %v2735 = vpop.f32.mrf.mxu0
        %v2736 = vadd.f32 0.0, %v2735
        %v2737 = vpop.f32.mrf.mxu0
        %v2738 = vpop.f32.mrf.mxu0
        %v2739 = vadd.f32 0.0, %v2738
        %v2740 = vpop.f32.mrf.mxu0
        %2741 = vmatprep.mubr.bf16.mxu0 %v1814
        %2742 = vmatmul.mubr.bf16.gmra.mxu0 %v1813
        %v2743 = vpop.f32.mrf.mxu0
        %v2744 = vadd.f32 0.0, %v2743
        %v2745 = vpop.f32.mrf.mxu0
        %v2746 = vpop.f32.mrf.mxu0
        %v2747 = vadd.f32 0.0, %v2746
        %v2748 = vpop.f32.mrf.mxu0
        %2749 = vmatprep.mubr.bf16.mxu0 %v1822
        %2750 = vmatmul.mubr.bf16.gmra.mxu0 %v1821
        %v2751 = vpop.f32.mrf.mxu0
        %v2752 = vadd.f32 0.0, %v2751
        %v2753 = vpop.f32.mrf.mxu0
        %v2754 = vpop.f32.mrf.mxu0
        %v2755 = vadd.f32 0.0, %v2754
        %v2756 = vpop.f32.mrf.mxu0
        %2757 = vmatprep.mubr.bf16.mxu0 %v1830
        %2758 = vmatmul.mubr.bf16.gmra.mxu0 %v1829
        %v2759 = vpop.f32.mrf.mxu0
        %v2760 = vadd.f32 0.0, %v2759
        %v2761 = vpop.f32.mrf.mxu0
        %v2762 = vpop.f32.mrf.mxu0
        %v2763 = vadd.f32 0.0, %v2762
        %v2764 = vpop.f32.mrf.mxu0
        %2765 = vmatprep.mubr.bf16.mxu0 %v1838
        %2766 = vmatmul.mubr.bf16.gmra.mxu0 %v1837
        %v2767 = vpop.f32.mrf.mxu0
        %v2768 = vadd.f32 0.0, %v2767
        %v2769 = vpop.f32.mrf.mxu0
        %v2770 = vpop.f32.mrf.mxu0
        %v2771 = vadd.f32 0.0, %v2770
        %v2772 = vpop.f32.mrf.mxu0
        %2773 = vmatprep.mubr.bf16.mxu0 %v1846
        %2774 = vmatmul.mubr.bf16.gmra.mxu0 %v1845
        %v2775 = vpop.f32.mrf.mxu0
        %v2776 = vadd.f32 0.0, %v2775
        %v2777 = vpop.f32.mrf.mxu0
        %v2778 = vpop.f32.mrf.mxu0
        %v2779 = vadd.f32 0.0, %v2778
        %v2780 = vpop.f32.mrf.mxu0
        %2781 = vmatprep.mubr.bf16.mxu0 %v1854
        %2782 = vmatmul.mubr.bf16.gmra.mxu0 %v1853
        %v2783 = vpop.f32.mrf.mxu0
        %v2784 = vadd.f32 0.0, %v2783
        %v2785 = vpop.f32.mrf.mxu0
        %v2786 = vpop.f32.mrf.mxu0
        %v2787 = vadd.f32 0.0, %v2786
        %v2788 = vpop.f32.mrf.mxu0
        %2789 = vmatprep.mubr.bf16.mxu0 %v1862
        %2790 = vmatmul.mubr.bf16.gmra.mxu0 %v1861
        %v2791 = vpop.f32.mrf.mxu0
        %v2792 = vadd.f32 0.0, %v2791
        %v2793 = vpop.f32.mrf.mxu0
        %v2794 = vpop.f32.mrf.mxu0
        %v2795 = vadd.f32 0.0, %v2794
        %v2796 = vpop.f32.mrf.mxu0
        %2797 = vmatprep.mubr.bf16.mxu0 %v1870
        %2798 = vmatmul.mubr.bf16.gmra.mxu0 %v1869
        %v2799 = vpop.f32.mrf.mxu0
        %v2800 = vadd.f32 0.0, %v2799
        %v2801 = vpop.f32.mrf.mxu0
        %v2802 = vpop.f32.mrf.mxu0
        %v2803 = vadd.f32 0.0, %v2802
        %v2804 = vpop.f32.mrf.mxu0
        %2805 = vmatprep.mubr.bf16.mxu0 %v1878
        %2806 = vmatmul.mubr.bf16.gmra.mxu0 %v1877
        %v2807 = vpop.f32.mrf.mxu0
        %v2808 = vadd.f32 0.0, %v2807
        %v2809 = vpop.f32.mrf.mxu0
        %v2810 = vpop.f32.mrf.mxu0
        %v2811 = vadd.f32 0.0, %v2810
        %v2812 = vpop.f32.mrf.mxu0
        %2813 = vmatprep.mubr.bf16.mxu0 %v1886
        %2814 = vmatmul.mubr.bf16.gmra.mxu0 %v1885
        %v2815 = vpop.f32.mrf.mxu0
        %v2816 = vadd.f32 0.0, %v2815
        %v2817 = vpop.f32.mrf.mxu0
        %v2818 = vpop.f32.mrf.mxu0
        %v2819 = vadd.f32 0.0, %v2818
        %v2820 = vpop.f32.mrf.mxu0
        %2821 = vmatprep.mubr.bf16.mxu0 %v1894
        %2822 = vmatmul.mubr.bf16.gmra.mxu0 %v1893
        %v2823 = vpop.f32.mrf.mxu0
        %v2824 = vadd.f32 0.0, %v2823
        %v2825 = vpop.f32.mrf.mxu0
        %v2826 = vpop.f32.mrf.mxu0
        %v2827 = vadd.f32 0.0, %v2826
        %v2828 = vpop.f32.mrf.mxu0
        %2829 = vmatprep.mubr.bf16.mxu0 %v1902
        %2830 = vmatmul.mubr.bf16.gmra.mxu0 %v1901
        %v2831 = vpop.f32.mrf.mxu0
        %v2832 = vadd.f32 0.0, %v2831
        %v2833 = vpop.f32.mrf.mxu0
        %v2834 = vpop.f32.mrf.mxu0
        %v2835 = vadd.f32 0.0, %v2834
        %v2836 = vpop.f32.mrf.mxu0
        %2837 = vmatprep.mubr.bf16.mxu0 %v1910
        %2838 = vmatmul.mubr.bf16.gmra.mxu0 %v1909
        %v2839 = vpop.f32.mrf.mxu0
        %v2840 = vadd.f32 0.0, %v2839
        %v2841 = vpop.f32.mrf.mxu0
        %v2842 = vpop.f32.mrf.mxu0
        %v2843 = vadd.f32 0.0, %v2842
        %v2844 = vpop.f32.mrf.mxu0
        %2845 = vmatprep.mubr.bf16.mxu0 %v1918
        %2846 = vmatmul.mubr.bf16.gmra.mxu0 %v1917
        %v2847 = vpop.f32.mrf.mxu0
        %v2848 = vadd.f32 0.0, %v2847
        %v2849 = vpop.f32.mrf.mxu0
        %v2850 = vpop.f32.mrf.mxu0
        %v2851 = vadd.f32 0.0, %v2850
        %v2852 = vpop.f32.mrf.mxu0
        %2853 = vdwg.mxu0
        %2854 = vmatprep.subr.bf16.mxu0 0
        %2855 = vmatpush1.bf16.msra.mxu0 %v2460
        %2856 = vmatprep.subr.bf16.mxu0 0
        %2857 = vmatpush1.bf16.msra.mxu0 %v2459
        %2858 = vmatprep.subr.bf16.mxu0 0
        %2859 = vmatpush1.bf16.msra.mxu0 %v2458
        %2860 = vmatprep.subr.bf16.mxu0 0
        %2861 = vmatpush1.bf16.msra.mxu0 %v2457
        %2862 = vmatprep.subr.bf16.mxu0 0
        %2863 = vmatpush1.bf16.msra.mxu0 %v2456
        %2864 = vmatprep.subr.bf16.mxu0 0
        %2865 = vmatpush1.bf16.msra.mxu0 %v2455
        %2866 = vmatprep.subr.bf16.mxu0 0
        %2867 = vmatpush1.bf16.msra.mxu0 %v2454
        %2868 = vmatprep.subr.bf16.mxu0 0
        %2869 = vmatpush1.bf16.msra.mxu0 %v2453
        %2870 = vmatprep.subr.bf16.mxu0 0
        %2871 = vmatpush2.bf16.msra.mxu0 %v2468
        %2872 = vmatprep.subr.bf16.mxu0 0
        %2873 = vmatpush2.bf16.msra.mxu0 %v2467
        %2874 = vmatprep.subr.bf16.mxu0 0
        %2875 = vmatpush2.bf16.msra.mxu0 %v2466
        %2876 = vmatprep.subr.bf16.mxu0 0
        %2877 = vmatpush2.bf16.msra.mxu0 %v2465
        %2878 = vmatprep.subr.bf16.mxu0 0
        %2879 = vmatpush2.bf16.msra.mxu0 %v2464
        %2880 = vmatprep.subr.bf16.mxu0 0
        %2881 = vmatpush2.bf16.msra.mxu0 %v2463
        %2882 = vmatprep.subr.bf16.mxu0 0
        %2883 = vmatpush2.bf16.msra.mxu0 %v2462
        %2884 = vmatprep.subr.bf16.mxu0 0
        %2885 = vmatpush2.bf16.msra.mxu0 %v2461
        %2886 = vmatprep.mubr.bf16.mxu0 %v1672
        %2887 = vmatmul.mubr.bf16.gmra.mxu0 %v1671
        %v2888 = vpop.f32.mrf.mxu0
        %v2889 = vadd.f32 %v2600, %v2888
        %v2890 = vpop.f32.mrf.mxu0
        %v2891 = vpop.f32.mrf.mxu0
        %v2892 = vadd.f32 %v2603, %v2891
        %v2893 = vpop.f32.mrf.mxu0
        %2894 = vmatprep.mubr.bf16.mxu0 %v1680
        %2895 = vmatmul.mubr.bf16.gmra.mxu0 %v1679
        %v2896 = vpop.f32.mrf.mxu0
        %v2897 = vadd.f32 %v2608, %v2896
        %v2898 = vpop.f32.mrf.mxu0
        %v2899 = vpop.f32.mrf.mxu0
        %v2900 = vadd.f32 %v2611, %v2899
        %v2901 = vpop.f32.mrf.mxu0
        %2902 = vmatprep.mubr.bf16.mxu0 %v1688
        %2903 = vmatmul.mubr.bf16.gmra.mxu0 %v1687
        %v2904 = vpop.f32.mrf.mxu0
        %v2905 = vadd.f32 %v2616, %v2904
        %v2906 = vpop.f32.mrf.mxu0
        %v2907 = vpop.f32.mrf.mxu0
        %v2908 = vadd.f32 %v2619, %v2907
        %v2909 = vpop.f32.mrf.mxu0
        %2910 = vmatprep.mubr.bf16.mxu0 %v1696
        %2911 = vmatmul.mubr.bf16.gmra.mxu0 %v1695
        %v2912 = vpop.f32.mrf.mxu0
        %v2913 = vadd.f32 %v2624, %v2912
        %v2914 = vpop.f32.mrf.mxu0
        %v2915 = vpop.f32.mrf.mxu0
        %v2916 = vadd.f32 %v2627, %v2915
        %v2917 = vpop.f32.mrf.mxu0
        %2918 = vmatprep.mubr.bf16.mxu0 %v1704
        %2919 = vmatmul.mubr.bf16.gmra.mxu0 %v1703
        %v2920 = vpop.f32.mrf.mxu0
        %v2921 = vadd.f32 %v2632, %v2920
        %v2922 = vpop.f32.mrf.mxu0
        %v2923 = vpop.f32.mrf.mxu0
        %v2924 = vadd.f32 %v2635, %v2923
        %v2925 = vpop.f32.mrf.mxu0
        %2926 = vmatprep.mubr.bf16.mxu0 %v1712
        %2927 = vmatmul.mubr.bf16.gmra.mxu0 %v1711
        %v2928 = vpop.f32.mrf.mxu0
        %v2929 = vadd.f32 %v2640, %v2928
        %v2930 = vpop.f32.mrf.mxu0
        %v2931 = vpop.f32.mrf.mxu0
        %v2932 = vadd.f32 %v2643, %v2931
        %v2933 = vpop.f32.mrf.mxu0
        %2934 = vmatprep.mubr.bf16.mxu0 %v1720
        %2935 = vmatmul.mubr.bf16.gmra.mxu0 %v1719
        %v2936 = vpop.f32.mrf.mxu0
        %v2937 = vadd.f32 %v2648, %v2936
        %v2938 = vpop.f32.mrf.mxu0
        %v2939 = vpop.f32.mrf.mxu0
        %v2940 = vadd.f32 %v2651, %v2939
        %v2941 = vpop.f32.mrf.mxu0
        %2942 = vmatprep.mubr.bf16.mxu0 %v1728
        %2943 = vmatmul.mubr.bf16.gmra.mxu0 %v1727
        %v2944 = vpop.f32.mrf.mxu0
        %v2945 = vadd.f32 %v2656, %v2944
        %v2946 = vpop.f32.mrf.mxu0
        %v2947 = vpop.f32.mrf.mxu0
        %v2948 = vadd.f32 %v2659, %v2947
        %v2949 = vpop.f32.mrf.mxu0
        %2950 = vmatprep.mubr.bf16.mxu0 %v1736
        %2951 = vmatmul.mubr.bf16.gmra.mxu0 %v1735
        %v2952 = vpop.f32.mrf.mxu0
        %v2953 = vadd.f32 %v2664, %v2952
        %v2954 = vpop.f32.mrf.mxu0
        %v2955 = vpop.f32.mrf.mxu0
        %v2956 = vadd.f32 %v2667, %v2955
        %v2957 = vpop.f32.mrf.mxu0
        %2958 = vmatprep.mubr.bf16.mxu0 %v1744
        %2959 = vmatmul.mubr.bf16.gmra.mxu0 %v1743
        %v2960 = vpop.f32.mrf.mxu0
        %v2961 = vadd.f32 %v2672, %v2960
        %v2962 = vpop.f32.mrf.mxu0
        %v2963 = vpop.f32.mrf.mxu0
        %v2964 = vadd.f32 %v2675, %v2963
        %v2965 = vpop.f32.mrf.mxu0
        %2966 = vmatprep.mubr.bf16.mxu0 %v1752
        %2967 = vmatmul.mubr.bf16.gmra.mxu0 %v1751
        %v2968 = vpop.f32.mrf.mxu0
        %v2969 = vadd.f32 %v2680, %v2968
        %v2970 = vpop.f32.mrf.mxu0
        %v2971 = vpop.f32.mrf.mxu0
        %v2972 = vadd.f32 %v2683, %v2971
        %v2973 = vpop.f32.mrf.mxu0
        %2974 = vmatprep.mubr.bf16.mxu0 %v1760
        %2975 = vmatmul.mubr.bf16.gmra.mxu0 %v1759
        %v2976 = vpop.f32.mrf.mxu0
        %v2977 = vadd.f32 %v2688, %v2976
        %v2978 = vpop.f32.mrf.mxu0
        %v2979 = vpop.f32.mrf.mxu0
        %v2980 = vadd.f32 %v2691, %v2979
        %v2981 = vpop.f32.mrf.mxu0
        %2982 = vmatprep.mubr.bf16.mxu0 %v1768
        %2983 = vmatmul.mubr.bf16.gmra.mxu0 %v1767
        %v2984 = vpop.f32.mrf.mxu0
        %v2985 = vadd.f32 %v2696, %v2984
        %v2986 = vpop.f32.mrf.mxu0
        %v2987 = vpop.f32.mrf.mxu0
        %v2988 = vadd.f32 %v2699, %v2987
        %v2989 = vpop.f32.mrf.mxu0
        %2990 = vmatprep.mubr.bf16.mxu0 %v1776
        %2991 = vmatmul.mubr.bf16.gmra.mxu0 %v1775
        %v2992 = vpop.f32.mrf.mxu0
        %v2993 = vadd.f32 %v2704, %v2992
        %v2994 = vpop.f32.mrf.mxu0
        %v2995 = vpop.f32.mrf.mxu0
        %v2996 = vadd.f32 %v2707, %v2995
        %v2997 = vpop.f32.mrf.mxu0
        %2998 = vmatprep.mubr.bf16.mxu0 %v1784
        %2999 = vmatmul.mubr.bf16.gmra.mxu0 %v1783
        %v3000 = vpop.f32.mrf.mxu0
        %v3001 = vadd.f32 %v2712, %v3000
        %v3002 = vpop.f32.mrf.mxu0
        %v3003 = vpop.f32.mrf.mxu0
        %v3004 = vadd.f32 %v2715, %v3003
        %v3005 = vpop.f32.mrf.mxu0
        %3006 = vmatprep.mubr.bf16.mxu0 %v1792
        %3007 = vmatmul.mubr.bf16.gmra.mxu0 %v1791
        %v3008 = vpop.f32.mrf.mxu0
        %v3009 = vadd.f32 %v2720, %v3008
        %v3010 = vpop.f32.mrf.mxu0
        %v3011 = vpop.f32.mrf.mxu0
        %v3012 = vadd.f32 %v2723, %v3011
        %v3013 = vpop.f32.mrf.mxu0
        %3014 = vmatprep.mubr.bf16.mxu0 %v1800
        %3015 = vmatmul.mubr.bf16.gmra.mxu0 %v1799
        %v3016 = vpop.f32.mrf.mxu0
        %v3017 = vadd.f32 %v2728, %v3016
        %v3018 = vpop.f32.mrf.mxu0
        %v3019 = vpop.f32.mrf.mxu0
        %v3020 = vadd.f32 %v2731, %v3019
        %v3021 = vpop.f32.mrf.mxu0
        %3022 = vmatprep.mubr.bf16.mxu0 %v1808
        %3023 = vmatmul.mubr.bf16.gmra.mxu0 %v1807
        %v3024 = vpop.f32.mrf.mxu0
        %v3025 = vadd.f32 %v2736, %v3024
        %v3026 = vpop.f32.mrf.mxu0
        %v3027 = vpop.f32.mrf.mxu0
        %v3028 = vadd.f32 %v2739, %v3027
        %v3029 = vpop.f32.mrf.mxu0
        %3030 = vmatprep.mubr.bf16.mxu0 %v1816
        %3031 = vmatmul.mubr.bf16.gmra.mxu0 %v1815
        %v3032 = vpop.f32.mrf.mxu0
        %v3033 = vadd.f32 %v2744, %v3032
        %v3034 = vpop.f32.mrf.mxu0
        %v3035 = vpop.f32.mrf.mxu0
        %v3036 = vadd.f32 %v2747, %v3035
        %v3037 = vpop.f32.mrf.mxu0
        %3038 = vmatprep.mubr.bf16.mxu0 %v1824
        %3039 = vmatmul.mubr.bf16.gmra.mxu0 %v1823
        %v3040 = vpop.f32.mrf.mxu0
        %v3041 = vadd.f32 %v2752, %v3040
        %v3042 = vpop.f32.mrf.mxu0
        %v3043 = vpop.f32.mrf.mxu0
        %v3044 = vadd.f32 %v2755, %v3043
        %v3045 = vpop.f32.mrf.mxu0
        %3046 = vmatprep.mubr.bf16.mxu0 %v1832
        %3047 = vmatmul.mubr.bf16.gmra.mxu0 %v1831
        %v3048 = vpop.f32.mrf.mxu0
        %v3049 = vadd.f32 %v2760, %v3048
        %v3050 = vpop.f32.mrf.mxu0
        %v3051 = vpop.f32.mrf.mxu0
        %v3052 = vadd.f32 %v2763, %v3051
        %v3053 = vpop.f32.mrf.mxu0
        %3054 = vmatprep.mubr.bf16.mxu0 %v1840
        %3055 = vmatmul.mubr.bf16.gmra.mxu0 %v1839
        %v3056 = vpop.f32.mrf.mxu0
        %v3057 = vadd.f32 %v2768, %v3056
        %v3058 = vpop.f32.mrf.mxu0
        %v3059 = vpop.f32.mrf.mxu0
        %v3060 = vadd.f32 %v2771, %v3059
        %v3061 = vpop.f32.mrf.mxu0
        %3062 = vmatprep.mubr.bf16.mxu0 %v1848
        %3063 = vmatmul.mubr.bf16.gmra.mxu0 %v1847
        %v3064 = vpop.f32.mrf.mxu0
        %v3065 = vadd.f32 %v2776, %v3064
        %v3066 = vpop.f32.mrf.mxu0
        %v3067 = vpop.f32.mrf.mxu0
        %v3068 = vadd.f32 %v2779, %v3067
        %v3069 = vpop.f32.mrf.mxu0
        %3070 = vmatprep.mubr.bf16.mxu0 %v1856
        %3071 = vmatmul.mubr.bf16.gmra.mxu0 %v1855
        %v3072 = vpop.f32.mrf.mxu0
        %v3073 = vadd.f32 %v2784, %v3072
        %v3074 = vpop.f32.mrf.mxu0
        %v3075 = vpop.f32.mrf.mxu0
        %v3076 = vadd.f32 %v2787, %v3075
        %v3077 = vpop.f32.mrf.mxu0
        %3078 = vmatprep.mubr.bf16.mxu0 %v1864
        %3079 = vmatmul.mubr.bf16.gmra.mxu0 %v1863
        %v3080 = vpop.f32.mrf.mxu0
        %v3081 = vadd.f32 %v2792, %v3080
        %v3082 = vpop.f32.mrf.mxu0
        %v3083 = vpop.f32.mrf.mxu0
        %v3084 = vadd.f32 %v2795, %v3083
        %v3085 = vpop.f32.mrf.mxu0
        %3086 = vmatprep.mubr.bf16.mxu0 %v1872
        %3087 = vmatmul.mubr.bf16.gmra.mxu0 %v1871
        %v3088 = vpop.f32.mrf.mxu0
        %v3089 = vadd.f32 %v2800, %v3088
        %v3090 = vpop.f32.mrf.mxu0
        %v3091 = vpop.f32.mrf.mxu0
        %v3092 = vadd.f32 %v2803, %v3091
        %v3093 = vpop.f32.mrf.mxu0
        %3094 = vmatprep.mubr.bf16.mxu0 %v1880
        %3095 = vmatmul.mubr.bf16.gmra.mxu0 %v1879
        %v3096 = vpop.f32.mrf.mxu0
        %v3097 = vadd.f32 %v2808, %v3096
        %v3098 = vpop.f32.mrf.mxu0
        %v3099 = vpop.f32.mrf.mxu0
        %v3100 = vadd.f32 %v2811, %v3099
        %v3101 = vpop.f32.mrf.mxu0
        %3102 = vmatprep.mubr.bf16.mxu0 %v1888
        %3103 = vmatmul.mubr.bf16.gmra.mxu0 %v1887
        %v3104 = vpop.f32.mrf.mxu0
        %v3105 = vadd.f32 %v2816, %v3104
        %v3106 = vpop.f32.mrf.mxu0
        %v3107 = vpop.f32.mrf.mxu0
        %v3108 = vadd.f32 %v2819, %v3107
        %v3109 = vpop.f32.mrf.mxu0
        %3110 = vmatprep.mubr.bf16.mxu0 %v1896
        %3111 = vmatmul.mubr.bf16.gmra.mxu0 %v1895
        %v3112 = vpop.f32.mrf.mxu0
        %v3113 = vadd.f32 %v2824, %v3112
        %v3114 = vpop.f32.mrf.mxu0
        %v3115 = vpop.f32.mrf.mxu0
        %v3116 = vadd.f32 %v2827, %v3115
        %v3117 = vpop.f32.mrf.mxu0
        %3118 = vmatprep.mubr.bf16.mxu0 %v1904
        %3119 = vmatmul.mubr.bf16.gmra.mxu0 %v1903
        %v3120 = vpop.f32.mrf.mxu0
        %v3121 = vadd.f32 %v2832, %v3120
        %v3122 = vpop.f32.mrf.mxu0
        %v3123 = vpop.f32.mrf.mxu0
        %v3124 = vadd.f32 %v2835, %v3123
        %v3125 = vpop.f32.mrf.mxu0
        %3126 = vmatprep.mubr.bf16.mxu0 %v1912
        %3127 = vmatmul.mubr.bf16.gmra.mxu0 %v1911
        %v3128 = vpop.f32.mrf.mxu0
        %v3129 = vadd.f32 %v2840, %v3128
        %v3130 = vpop.f32.mrf.mxu0
        %v3131 = vpop.f32.mrf.mxu0
        %v3132 = vadd.f32 %v2843, %v3131
        %v3133 = vpop.f32.mrf.mxu0
        %3134 = vmatprep.mubr.bf16.mxu0 %v1920
        %3135 = vmatmul.mubr.bf16.gmra.mxu0 %v1919
        %v3136 = vpop.f32.mrf.mxu0
        %v3137 = vadd.f32 %v2848, %v3136
        %v3138 = vpop.f32.mrf.mxu0
        %v3139 = vpop.f32.mrf.mxu0
        %v3140 = vadd.f32 %v2851, %v3139
        %v3141 = vpop.f32.mrf.mxu0
        %3142 = vdwg.mxu0
        %3143 = vmatprep.subr.bf16.mxu0 0
        %3144 = vmatpush1.bf16.msra.mxu0 %v2476
        %3145 = vmatprep.subr.bf16.mxu0 0
        %3146 = vmatpush1.bf16.msra.mxu0 %v2475
        %3147 = vmatprep.subr.bf16.mxu0 0
        %3148 = vmatpush1.bf16.msra.mxu0 %v2474
        %3149 = vmatprep.subr.bf16.mxu0 0
        %3150 = vmatpush1.bf16.msra.mxu0 %v2473
        %3151 = vmatprep.subr.bf16.mxu0 0
        %3152 = vmatpush1.bf16.msra.mxu0 %v2472
        %3153 = vmatprep.subr.bf16.mxu0 0
        %3154 = vmatpush1.bf16.msra.mxu0 %v2471
        %3155 = vmatprep.subr.bf16.mxu0 0
        %3156 = vmatpush1.bf16.msra.mxu0 %v2470
        %3157 = vmatprep.subr.bf16.mxu0 0
        %3158 = vmatpush1.bf16.msra.mxu0 %v2469
        %3159 = vmatprep.subr.bf16.mxu0 0
        %3160 = vmatpush2.bf16.msra.mxu0 %v2484
        %3161 = vmatprep.subr.bf16.mxu0 0
        %3162 = vmatpush2.bf16.msra.mxu0 %v2483
        %3163 = vmatprep.subr.bf16.mxu0 0
        %3164 = vmatpush2.bf16.msra.mxu0 %v2482
        %3165 = vmatprep.subr.bf16.mxu0 0
        %3166 = vmatpush2.bf16.msra.mxu0 %v2481
        %3167 = vmatprep.subr.bf16.mxu0 0
        %3168 = vmatpush2.bf16.msra.mxu0 %v2480
        %3169 = vmatprep.subr.bf16.mxu0 0
        %3170 = vmatpush2.bf16.msra.mxu0 %v2479
        %3171 = vmatprep.subr.bf16.mxu0 0
        %3172 = vmatpush2.bf16.msra.mxu0 %v2478
        %3173 = vmatprep.subr.bf16.mxu0 0
        %3174 = vmatpush2.bf16.msra.mxu0 %v2477
        %3175 = vmatprep.mubr.bf16.mxu0 %v1674
        %3176 = vmatmul.mubr.bf16.gmra.mxu0 %v1673
        %v3177 = vpop.f32.mrf.mxu0
        %v3178 = vadd.f32 %v2889, %v3177
        %v3179 = vpop.f32.mrf.mxu0
        %v3180 = vpop.f32.mrf.mxu0
        %v3181 = vadd.f32 %v2892, %v3180
        %v3182 = vpop.f32.mrf.mxu0
        %3183 = vmatprep.mubr.bf16.mxu0 %v1682
        %3184 = vmatmul.mubr.bf16.gmra.mxu0 %v1681
        %v3185 = vpop.f32.mrf.mxu0
        %v3186 = vadd.f32 %v2897, %v3185
        %v3187 = vpop.f32.mrf.mxu0
        %v3188 = vpop.f32.mrf.mxu0
        %v3189 = vadd.f32 %v2900, %v3188
        %v3190 = vpop.f32.mrf.mxu0
        %3191 = vmatprep.mubr.bf16.mxu0 %v1690
        %3192 = vmatmul.mubr.bf16.gmra.mxu0 %v1689
        %v3193 = vpop.f32.mrf.mxu0
        %v3194 = vadd.f32 %v2905, %v3193
        %v3195 = vpop.f32.mrf.mxu0
        %v3196 = vpop.f32.mrf.mxu0
        %v3197 = vadd.f32 %v2908, %v3196
        %v3198 = vpop.f32.mrf.mxu0
        %3199 = vmatprep.mubr.bf16.mxu0 %v1698
        %3200 = vmatmul.mubr.bf16.gmra.mxu0 %v1697
        %v3201 = vpop.f32.mrf.mxu0
        %v3202 = vadd.f32 %v2913, %v3201
        %v3203 = vpop.f32.mrf.mxu0
        %v3204 = vpop.f32.mrf.mxu0
        %v3205 = vadd.f32 %v2916, %v3204
        %v3206 = vpop.f32.mrf.mxu0
        %3207 = vmatprep.mubr.bf16.mxu0 %v1706
        %3208 = vmatmul.mubr.bf16.gmra.mxu0 %v1705
        %v3209 = vpop.f32.mrf.mxu0
        %v3210 = vadd.f32 %v2921, %v3209
        %v3211 = vpop.f32.mrf.mxu0
        %v3212 = vpop.f32.mrf.mxu0
        %v3213 = vadd.f32 %v2924, %v3212
        %v3214 = vpop.f32.mrf.mxu0
        %3215 = vmatprep.mubr.bf16.mxu0 %v1714
        %3216 = vmatmul.mubr.bf16.gmra.mxu0 %v1713
        %v3217 = vpop.f32.mrf.mxu0
        %v3218 = vadd.f32 %v2929, %v3217
        %v3219 = vpop.f32.mrf.mxu0
        %v3220 = vpop.f32.mrf.mxu0
        %v3221 = vadd.f32 %v2932, %v3220
        %v3222 = vpop.f32.mrf.mxu0
        %3223 = vmatprep.mubr.bf16.mxu0 %v1722
        %3224 = vmatmul.mubr.bf16.gmra.mxu0 %v1721
        %v3225 = vpop.f32.mrf.mxu0
        %v3226 = vadd.f32 %v2937, %v3225
        %v3227 = vpop.f32.mrf.mxu0
        %v3228 = vpop.f32.mrf.mxu0
        %v3229 = vadd.f32 %v2940, %v3228
        %v3230 = vpop.f32.mrf.mxu0
        %3231 = vmatprep.mubr.bf16.mxu0 %v1730
        %3232 = vmatmul.mubr.bf16.gmra.mxu0 %v1729
        %v3233 = vpop.f32.mrf.mxu0
        %v3234 = vadd.f32 %v2945, %v3233
        %v3235 = vpop.f32.mrf.mxu0
        %v3236 = vpop.f32.mrf.mxu0
        %v3237 = vadd.f32 %v2948, %v3236
        %v3238 = vpop.f32.mrf.mxu0
        %3239 = vmatprep.mubr.bf16.mxu0 %v1738
        %3240 = vmatmul.mubr.bf16.gmra.mxu0 %v1737
        %v3241 = vpop.f32.mrf.mxu0
        %v3242 = vadd.f32 %v2953, %v3241
        %v3243 = vpop.f32.mrf.mxu0
        %v3244 = vpop.f32.mrf.mxu0
        %v3245 = vadd.f32 %v2956, %v3244
        %v3246 = vpop.f32.mrf.mxu0
        %3247 = vmatprep.mubr.bf16.mxu0 %v1746
        %3248 = vmatmul.mubr.bf16.gmra.mxu0 %v1745
        %v3249 = vpop.f32.mrf.mxu0
        %v3250 = vadd.f32 %v2961, %v3249
        %v3251 = vpop.f32.mrf.mxu0
        %v3252 = vpop.f32.mrf.mxu0
        %v3253 = vadd.f32 %v2964, %v3252
        %v3254 = vpop.f32.mrf.mxu0
        %3255 = vmatprep.mubr.bf16.mxu0 %v1754
        %3256 = vmatmul.mubr.bf16.gmra.mxu0 %v1753
        %v3257 = vpop.f32.mrf.mxu0
        %v3258 = vadd.f32 %v2969, %v3257
        %v3259 = vpop.f32.mrf.mxu0
        %v3260 = vpop.f32.mrf.mxu0
        %v3261 = vadd.f32 %v2972, %v3260
        %v3262 = vpop.f32.mrf.mxu0
        %3263 = vmatprep.mubr.bf16.mxu0 %v1762
        %3264 = vmatmul.mubr.bf16.gmra.mxu0 %v1761
        %v3265 = vpop.f32.mrf.mxu0
        %v3266 = vadd.f32 %v2977, %v3265
        %v3267 = vpop.f32.mrf.mxu0
        %v3268 = vpop.f32.mrf.mxu0
        %v3269 = vadd.f32 %v2980, %v3268
        %v3270 = vpop.f32.mrf.mxu0
        %3271 = vmatprep.mubr.bf16.mxu0 %v1770
        %3272 = vmatmul.mubr.bf16.gmra.mxu0 %v1769
        %v3273 = vpop.f32.mrf.mxu0
        %v3274 = vadd.f32 %v2985, %v3273
        %v3275 = vpop.f32.mrf.mxu0
        %v3276 = vpop.f32.mrf.mxu0
        %v3277 = vadd.f32 %v2988, %v3276
        %v3278 = vpop.f32.mrf.mxu0
        %3279 = vmatprep.mubr.bf16.mxu0 %v1778
        %3280 = vmatmul.mubr.bf16.gmra.mxu0 %v1777
        %v3281 = vpop.f32.mrf.mxu0
        %v3282 = vadd.f32 %v2993, %v3281
        %v3283 = vpop.f32.mrf.mxu0
        %v3284 = vpop.f32.mrf.mxu0
        %v3285 = vadd.f32 %v2996, %v3284
        %v3286 = vpop.f32.mrf.mxu0
        %3287 = vmatprep.mubr.bf16.mxu0 %v1786
        %3288 = vmatmul.mubr.bf16.gmra.mxu0 %v1785
        %v3289 = vpop.f32.mrf.mxu0
        %v3290 = vadd.f32 %v3001, %v3289
        %v3291 = vpop.f32.mrf.mxu0
        %v3292 = vpop.f32.mrf.mxu0
        %v3293 = vadd.f32 %v3004, %v3292
        %v3294 = vpop.f32.mrf.mxu0
        %3295 = vmatprep.mubr.bf16.mxu0 %v1794
        %3296 = vmatmul.mubr.bf16.gmra.mxu0 %v1793
        %v3297 = vpop.f32.mrf.mxu0
        %v3298 = vadd.f32 %v3009, %v3297
        %v3299 = vpop.f32.mrf.mxu0
        %v3300 = vpop.f32.mrf.mxu0
        %v3301 = vadd.f32 %v3012, %v3300
        %v3302 = vpop.f32.mrf.mxu0
        %3303 = vmatprep.mubr.bf16.mxu0 %v1802
        %3304 = vmatmul.mubr.bf16.gmra.mxu0 %v1801
        %v3305 = vpop.f32.mrf.mxu0
        %v3306 = vadd.f32 %v3017, %v3305
        %v3307 = vpop.f32.mrf.mxu0
        %v3308 = vpop.f32.mrf.mxu0
        %v3309 = vadd.f32 %v3020, %v3308
        %v3310 = vpop.f32.mrf.mxu0
        %3311 = vmatprep.mubr.bf16.mxu0 %v1810
        %3312 = vmatmul.mubr.bf16.gmra.mxu0 %v1809
        %v3313 = vpop.f32.mrf.mxu0
        %v3314 = vadd.f32 %v3025, %v3313
        %v3315 = vpop.f32.mrf.mxu0
        %v3316 = vpop.f32.mrf.mxu0
        %v3317 = vadd.f32 %v3028, %v3316
        %v3318 = vpop.f32.mrf.mxu0
        %3319 = vmatprep.mubr.bf16.mxu0 %v1818
        %3320 = vmatmul.mubr.bf16.gmra.mxu0 %v1817
        %v3321 = vpop.f32.mrf.mxu0
        %v3322 = vadd.f32 %v3033, %v3321
        %v3323 = vpop.f32.mrf.mxu0
        %v3324 = vpop.f32.mrf.mxu0
        %v3325 = vadd.f32 %v3036, %v3324
        %v3326 = vpop.f32.mrf.mxu0
        %3327 = vmatprep.mubr.bf16.mxu0 %v1826
        %3328 = vmatmul.mubr.bf16.gmra.mxu0 %v1825
        %v3329 = vpop.f32.mrf.mxu0
        %v3330 = vadd.f32 %v3041, %v3329
        %v3331 = vpop.f32.mrf.mxu0
        %v3332 = vpop.f32.mrf.mxu0
        %v3333 = vadd.f32 %v3044, %v3332
        %v3334 = vpop.f32.mrf.mxu0
        %3335 = vmatprep.mubr.bf16.mxu0 %v1834
        %3336 = vmatmul.mubr.bf16.gmra.mxu0 %v1833
        %v3337 = vpop.f32.mrf.mxu0
        %v3338 = vadd.f32 %v3049, %v3337
        %v3339 = vpop.f32.mrf.mxu0
        %v3340 = vpop.f32.mrf.mxu0
        %v3341 = vadd.f32 %v3052, %v3340
        %v3342 = vpop.f32.mrf.mxu0
        %3343 = vmatprep.mubr.bf16.mxu0 %v1842
        %3344 = vmatmul.mubr.bf16.gmra.mxu0 %v1841
        %v3345 = vpop.f32.mrf.mxu0
        %v3346 = vadd.f32 %v3057, %v3345
        %v3347 = vpop.f32.mrf.mxu0
        %v3348 = vpop.f32.mrf.mxu0
        %v3349 = vadd.f32 %v3060, %v3348
        %v3350 = vpop.f32.mrf.mxu0
        %3351 = vmatprep.mubr.bf16.mxu0 %v1850
        %3352 = vmatmul.mubr.bf16.gmra.mxu0 %v1849
        %v3353 = vpop.f32.mrf.mxu0
        %v3354 = vadd.f32 %v3065, %v3353
        %v3355 = vpop.f32.mrf.mxu0
        %v3356 = vpop.f32.mrf.mxu0
        %v3357 = vadd.f32 %v3068, %v3356
        %v3358 = vpop.f32.mrf.mxu0
        %3359 = vmatprep.mubr.bf16.mxu0 %v1858
        %3360 = vmatmul.mubr.bf16.gmra.mxu0 %v1857
        %v3361 = vpop.f32.mrf.mxu0
        %v3362 = vadd.f32 %v3073, %v3361
        %v3363 = vpop.f32.mrf.mxu0
        %v3364 = vpop.f32.mrf.mxu0
        %v3365 = vadd.f32 %v3076, %v3364
        %v3366 = vpop.f32.mrf.mxu0
        %3367 = vmatprep.mubr.bf16.mxu0 %v1866
        %3368 = vmatmul.mubr.bf16.gmra.mxu0 %v1865
        %v3369 = vpop.f32.mrf.mxu0
        %v3370 = vadd.f32 %v3081, %v3369
        %v3371 = vpop.f32.mrf.mxu0
        %v3372 = vpop.f32.mrf.mxu0
        %v3373 = vadd.f32 %v3084, %v3372
        %v3374 = vpop.f32.mrf.mxu0
        %3375 = vmatprep.mubr.bf16.mxu0 %v1874
        %3376 = vmatmul.mubr.bf16.gmra.mxu0 %v1873
        %v3377 = vpop.f32.mrf.mxu0
        %v3378 = vadd.f32 %v3089, %v3377
        %v3379 = vpop.f32.mrf.mxu0
        %v3380 = vpop.f32.mrf.mxu0
        %v3381 = vadd.f32 %v3092, %v3380
        %v3382 = vpop.f32.mrf.mxu0
        %3383 = vmatprep.mubr.bf16.mxu0 %v1882
        %3384 = vmatmul.mubr.bf16.gmra.mxu0 %v1881
        %v3385 = vpop.f32.mrf.mxu0
        %v3386 = vadd.f32 %v3097, %v3385
        %v3387 = vpop.f32.mrf.mxu0
        %v3388 = vpop.f32.mrf.mxu0
        %v3389 = vadd.f32 %v3100, %v3388
        %v3390 = vpop.f32.mrf.mxu0
        %3391 = vmatprep.mubr.bf16.mxu0 %v1890
        %3392 = vmatmul.mubr.bf16.gmra.mxu0 %v1889
        %v3393 = vpop.f32.mrf.mxu0
        %v3394 = vadd.f32 %v3105, %v3393
        %v3395 = vpop.f32.mrf.mxu0
        %v3396 = vpop.f32.mrf.mxu0
        %v3397 = vadd.f32 %v3108, %v3396
        %v3398 = vpop.f32.mrf.mxu0
        %3399 = vmatprep.mubr.bf16.mxu0 %v1898
        %3400 = vmatmul.mubr.bf16.gmra.mxu0 %v1897
        %v3401 = vpop.f32.mrf.mxu0
        %v3402 = vadd.f32 %v3113, %v3401
        %v3403 = vpop.f32.mrf.mxu0
        %v3404 = vpop.f32.mrf.mxu0
        %v3405 = vadd.f32 %v3116, %v3404
        %v3406 = vpop.f32.mrf.mxu0
        %3407 = vmatprep.mubr.bf16.mxu0 %v1906
        %3408 = vmatmul.mubr.bf16.gmra.mxu0 %v1905
        %v3409 = vpop.f32.mrf.mxu0
        %v3410 = vadd.f32 %v3121, %v3409
        %v3411 = vpop.f32.mrf.mxu0
        %v3412 = vpop.f32.mrf.mxu0
        %v3413 = vadd.f32 %v3124, %v3412
        %v3414 = vpop.f32.mrf.mxu0
        %3415 = vmatprep.mubr.bf16.mxu0 %v1914
        %3416 = vmatmul.mubr.bf16.gmra.mxu0 %v1913
        %v3417 = vpop.f32.mrf.mxu0
        %v3418 = vadd.f32 %v3129, %v3417
        %v3419 = vpop.f32.mrf.mxu0
        %v3420 = vpop.f32.mrf.mxu0
        %v3421 = vadd.f32 %v3132, %v3420
        %v3422 = vpop.f32.mrf.mxu0
        %3423 = vmatprep.mubr.bf16.mxu0 %v1922
        %3424 = vmatmul.mubr.bf16.gmra.mxu0 %v1921
        %v3425 = vpop.f32.mrf.mxu0
        %v3426 = vadd.f32 %v3137, %v3425
        %v3427 = vpop.f32.mrf.mxu0
        %v3428 = vpop.f32.mrf.mxu0
        %v3429 = vadd.f32 %v3140, %v3428
        %v3430 = vpop.f32.mrf.mxu0
        %3431 = vdwg.mxu0
        %3432 = vmatprep.subr.bf16.mxu0 0
        %3433 = vmatpush1.bf16.msra.mxu0 %v2492
        %3434 = vmatprep.subr.bf16.mxu0 0
        %3435 = vmatpush1.bf16.msra.mxu0 %v2491
        %3436 = vmatprep.subr.bf16.mxu0 0
        %3437 = vmatpush1.bf16.msra.mxu0 %v2490
        %3438 = vmatprep.subr.bf16.mxu0 0
        %3439 = vmatpush1.bf16.msra.mxu0 %v2489
        %3440 = vmatprep.subr.bf16.mxu0 0
        %3441 = vmatpush1.bf16.msra.mxu0 %v2488
        %3442 = vmatprep.subr.bf16.mxu0 0
        %3443 = vmatpush1.bf16.msra.mxu0 %v2487
        %3444 = vmatprep.subr.bf16.mxu0 0
        %3445 = vmatpush1.bf16.msra.mxu0 %v2486
        %3446 = vmatprep.subr.bf16.mxu0 0
        %3447 = vmatpush1.bf16.msra.mxu0 %v2485
        %3448 = vmatprep.subr.bf16.mxu0 0
        %3449 = vmatpush2.bf16.msra.mxu0 %v2500
        %3450 = vmatprep.subr.bf16.mxu0 0
        %3451 = vmatpush2.bf16.msra.mxu0 %v2499
        %3452 = vmatprep.subr.bf16.mxu0 0
        %3453 = vmatpush2.bf16.msra.mxu0 %v2498
        %3454 = vmatprep.subr.bf16.mxu0 0
        %3455 = vmatpush2.bf16.msra.mxu0 %v2497
        %3456 = vmatprep.subr.bf16.mxu0 0
        %3457 = vmatpush2.bf16.msra.mxu0 %v2496
        %3458 = vmatprep.subr.bf16.mxu0 0
        %3459 = vmatpush2.bf16.msra.mxu0 %v2495
        %3460 = vmatprep.subr.bf16.mxu0 0
        %3461 = vmatpush2.bf16.msra.mxu0 %v2494
        %3462 = vmatprep.subr.bf16.mxu0 0
        %3463 = vmatpush2.bf16.msra.mxu0 %v2493
        %3464 = vmatprep.mubr.bf16.mxu0 %v1676
        %3465 = vmatmul.mubr.bf16.gmra.mxu0 %v1675
        %v3466 = vpop.f32.mrf.mxu0
        %v3467 = vadd.f32 %v3178, %v3466
        %v3468 = vpop.f32.mrf.mxu0
        %v3469 = vpop.f32.mrf.mxu0
        %v3470 = vadd.f32 %v3181, %v3469
        %v3471 = vpop.f32.mrf.mxu0
        %3472 = vmatprep.mubr.bf16.mxu0 %v1684
        %3473 = vmatmul.mubr.bf16.gmra.mxu0 %v1683
        %v3474 = vpop.f32.mrf.mxu0
        %v3475 = vadd.f32 %v3186, %v3474
        %v3476 = vpop.f32.mrf.mxu0
        %v3477 = vpop.f32.mrf.mxu0
        %v3478 = vadd.f32 %v3189, %v3477
        %v3479 = vpop.f32.mrf.mxu0
        %3480 = vmatprep.mubr.bf16.mxu0 %v1692
        %3481 = vmatmul.mubr.bf16.gmra.mxu0 %v1691
        %v3482 = vpop.f32.mrf.mxu0
        %v3483 = vadd.f32 %v3194, %v3482
        %v3484 = vpop.f32.mrf.mxu0
        %v3485 = vpop.f32.mrf.mxu0
        %v3486 = vadd.f32 %v3197, %v3485
        %v3487 = vpop.f32.mrf.mxu0
        %3488 = vmatprep.mubr.bf16.mxu0 %v1700
        %3489 = vmatmul.mubr.bf16.gmra.mxu0 %v1699
        %v3490 = vpop.f32.mrf.mxu0
        %v3491 = vadd.f32 %v3202, %v3490
        %v3492 = vpop.f32.mrf.mxu0
        %v3493 = vpop.f32.mrf.mxu0
        %v3494 = vadd.f32 %v3205, %v3493
        %v3495 = vpop.f32.mrf.mxu0
        %3496 = vmatprep.mubr.bf16.mxu0 %v1708
        %3497 = vmatmul.mubr.bf16.gmra.mxu0 %v1707
        %v3498 = vpop.f32.mrf.mxu0
        %v3499 = vadd.f32 %v3210, %v3498
        %v3500 = vpop.f32.mrf.mxu0
        %v3501 = vpop.f32.mrf.mxu0
        %v3502 = vadd.f32 %v3213, %v3501
        %v3503 = vpop.f32.mrf.mxu0
        %3504 = vmatprep.mubr.bf16.mxu0 %v1716
        %3505 = vmatmul.mubr.bf16.gmra.mxu0 %v1715
        %v3506 = vpop.f32.mrf.mxu0
        %v3507 = vadd.f32 %v3218, %v3506
        %v3508 = vpop.f32.mrf.mxu0
        %v3509 = vpop.f32.mrf.mxu0
        %v3510 = vadd.f32 %v3221, %v3509
        %v3511 = vpop.f32.mrf.mxu0
        %3512 = vmatprep.mubr.bf16.mxu0 %v1724
        %3513 = vmatmul.mubr.bf16.gmra.mxu0 %v1723
        %v3514 = vpop.f32.mrf.mxu0
        %v3515 = vadd.f32 %v3226, %v3514
        %v3516 = vpop.f32.mrf.mxu0
        %v3517 = vpop.f32.mrf.mxu0
        %v3518 = vadd.f32 %v3229, %v3517
        %v3519 = vpop.f32.mrf.mxu0
        %3520 = vmatprep.mubr.bf16.mxu0 %v1732
        %3521 = vmatmul.mubr.bf16.gmra.mxu0 %v1731
        %v3522 = vpop.f32.mrf.mxu0
        %v3523 = vadd.f32 %v3234, %v3522
        %v3524 = vpop.f32.mrf.mxu0
        %v3525 = vpop.f32.mrf.mxu0
        %v3526 = vadd.f32 %v3237, %v3525
        %v3527 = vpop.f32.mrf.mxu0
        %3528 = vmatprep.mubr.bf16.mxu0 %v1740
        %3529 = vmatmul.mubr.bf16.gmra.mxu0 %v1739
        %v3530 = vpop.f32.mrf.mxu0
        %v3531 = vadd.f32 %v3242, %v3530
        %v3532 = vpop.f32.mrf.mxu0
        %v3533 = vpop.f32.mrf.mxu0
        %v3534 = vadd.f32 %v3245, %v3533
        %v3535 = vpop.f32.mrf.mxu0
        %3536 = vmatprep.mubr.bf16.mxu0 %v1748
        %3537 = vmatmul.mubr.bf16.gmra.mxu0 %v1747
        %v3538 = vpop.f32.mrf.mxu0
        %v3539 = vadd.f32 %v3250, %v3538
        %v3540 = vpop.f32.mrf.mxu0
        %v3541 = vpop.f32.mrf.mxu0
        %v3542 = vadd.f32 %v3253, %v3541
        %v3543 = vpop.f32.mrf.mxu0
        %3544 = vmatprep.mubr.bf16.mxu0 %v1756
        %3545 = vmatmul.mubr.bf16.gmra.mxu0 %v1755
        %v3546 = vpop.f32.mrf.mxu0
        %v3547 = vadd.f32 %v3258, %v3546
        %v3548 = vpop.f32.mrf.mxu0
        %v3549 = vpop.f32.mrf.mxu0
        %v3550 = vadd.f32 %v3261, %v3549
        %v3551 = vpop.f32.mrf.mxu0
        %3552 = vmatprep.mubr.bf16.mxu0 %v1764
        %3553 = vmatmul.mubr.bf16.gmra.mxu0 %v1763
        %v3554 = vpop.f32.mrf.mxu0
        %v3555 = vadd.f32 %v3266, %v3554
        %v3556 = vpop.f32.mrf.mxu0
        %v3557 = vpop.f32.mrf.mxu0
        %v3558 = vadd.f32 %v3269, %v3557
        %v3559 = vpop.f32.mrf.mxu0
        %3560 = vmatprep.mubr.bf16.mxu0 %v1772
        %3561 = vmatmul.mubr.bf16.gmra.mxu0 %v1771
        %v3562 = vpop.f32.mrf.mxu0
        %v3563 = vadd.f32 %v3274, %v3562
        %v3564 = vpop.f32.mrf.mxu0
        %v3565 = vpop.f32.mrf.mxu0
        %v3566 = vadd.f32 %v3277, %v3565
        %v3567 = vpop.f32.mrf.mxu0
        %3568 = vmatprep.mubr.bf16.mxu0 %v1780
        %3569 = vmatmul.mubr.bf16.gmra.mxu0 %v1779
        %v3570 = vpop.f32.mrf.mxu0
        %v3571 = vadd.f32 %v3282, %v3570
        %v3572 = vpop.f32.mrf.mxu0
        %v3573 = vpop.f32.mrf.mxu0
        %v3574 = vadd.f32 %v3285, %v3573
        %v3575 = vpop.f32.mrf.mxu0
        %3576 = vmatprep.mubr.bf16.mxu0 %v1788
        %3577 = vmatmul.mubr.bf16.gmra.mxu0 %v1787
        %v3578 = vpop.f32.mrf.mxu0
        %v3579 = vadd.f32 %v3290, %v3578
        %v3580 = vpop.f32.mrf.mxu0
        %v3581 = vpop.f32.mrf.mxu0
        %v3582 = vadd.f32 %v3293, %v3581
        %v3583 = vpop.f32.mrf.mxu0
        %3584 = vmatprep.mubr.bf16.mxu0 %v1796
        %3585 = vmatmul.mubr.bf16.gmra.mxu0 %v1795
        %v3586 = vpop.f32.mrf.mxu0
        %v3587 = vadd.f32 %v3298, %v3586
        %v3588 = vpop.f32.mrf.mxu0
        %v3589 = vpop.f32.mrf.mxu0
        %v3590 = vadd.f32 %v3301, %v3589
        %v3591 = vpop.f32.mrf.mxu0
        %3592 = vmatprep.mubr.bf16.mxu0 %v1804
        %3593 = vmatmul.mubr.bf16.gmra.mxu0 %v1803
        %v3594 = vpop.f32.mrf.mxu0
        %v3595 = vadd.f32 %v3306, %v3594
        %v3596 = vpop.f32.mrf.mxu0
        %v3597 = vpop.f32.mrf.mxu0
        %v3598 = vadd.f32 %v3309, %v3597
        %v3599 = vpop.f32.mrf.mxu0
        %3600 = vmatprep.mubr.bf16.mxu0 %v1812
        %3601 = vmatmul.mubr.bf16.gmra.mxu0 %v1811
        %v3602 = vpop.f32.mrf.mxu0
        %v3603 = vadd.f32 %v3314, %v3602
        %v3604 = vpop.f32.mrf.mxu0
        %v3605 = vpop.f32.mrf.mxu0
        %v3606 = vadd.f32 %v3317, %v3605
        %v3607 = vpop.f32.mrf.mxu0
        %3608 = vmatprep.mubr.bf16.mxu0 %v1820
        %3609 = vmatmul.mubr.bf16.gmra.mxu0 %v1819
        %v3610 = vpop.f32.mrf.mxu0
        %v3611 = vadd.f32 %v3322, %v3610
        %v3612 = vpop.f32.mrf.mxu0
        %v3613 = vpop.f32.mrf.mxu0
        %v3614 = vadd.f32 %v3325, %v3613
        %v3615 = vpop.f32.mrf.mxu0
        %3616 = vmatprep.mubr.bf16.mxu0 %v1828
        %3617 = vmatmul.mubr.bf16.gmra.mxu0 %v1827
        %v3618 = vpop.f32.mrf.mxu0
        %v3619 = vadd.f32 %v3330, %v3618
        %v3620 = vpop.f32.mrf.mxu0
        %v3621 = vpop.f32.mrf.mxu0
        %v3622 = vadd.f32 %v3333, %v3621
        %v3623 = vpop.f32.mrf.mxu0
        %3624 = vmatprep.mubr.bf16.mxu0 %v1836
        %3625 = vmatmul.mubr.bf16.gmra.mxu0 %v1835
        %v3626 = vpop.f32.mrf.mxu0
        %v3627 = vadd.f32 %v3338, %v3626
        %v3628 = vpop.f32.mrf.mxu0
        %v3629 = vpop.f32.mrf.mxu0
        %v3630 = vadd.f32 %v3341, %v3629
        %v3631 = vpop.f32.mrf.mxu0
        %3632 = vmatprep.mubr.bf16.mxu0 %v1844
        %3633 = vmatmul.mubr.bf16.gmra.mxu0 %v1843
        %v3634 = vpop.f32.mrf.mxu0
        %v3635 = vadd.f32 %v3346, %v3634
        %v3636 = vpop.f32.mrf.mxu0
        %v3637 = vpop.f32.mrf.mxu0
        %v3638 = vadd.f32 %v3349, %v3637
        %v3639 = vpop.f32.mrf.mxu0
        %3640 = vmatprep.mubr.bf16.mxu0 %v1852
        %3641 = vmatmul.mubr.bf16.gmra.mxu0 %v1851
        %v3642 = vpop.f32.mrf.mxu0
        %v3643 = vadd.f32 %v3354, %v3642
        %v3644 = vpop.f32.mrf.mxu0
        %v3645 = vpop.f32.mrf.mxu0
        %v3646 = vadd.f32 %v3357, %v3645
        %v3647 = vpop.f32.mrf.mxu0
        %3648 = vmatprep.mubr.bf16.mxu0 %v1860
        %3649 = vmatmul.mubr.bf16.gmra.mxu0 %v1859
        %v3650 = vpop.f32.mrf.mxu0
        %v3651 = vadd.f32 %v3362, %v3650
        %v3652 = vpop.f32.mrf.mxu0
        %v3653 = vpop.f32.mrf.mxu0
        %v3654 = vadd.f32 %v3365, %v3653
        %v3655 = vpop.f32.mrf.mxu0
        %3656 = vmatprep.mubr.bf16.mxu0 %v1868
        %3657 = vmatmul.mubr.bf16.gmra.mxu0 %v1867
        %v3658 = vpop.f32.mrf.mxu0
        %v3659 = vadd.f32 %v3370, %v3658
        %v3660 = vpop.f32.mrf.mxu0
        %v3661 = vpop.f32.mrf.mxu0
        %v3662 = vadd.f32 %v3373, %v3661
        %v3663 = vpop.f32.mrf.mxu0
        %3664 = vmatprep.mubr.bf16.mxu0 %v1876
        %3665 = vmatmul.mubr.bf16.gmra.mxu0 %v1875
        %v3666 = vpop.f32.mrf.mxu0
        %v3667 = vadd.f32 %v3378, %v3666
        %v3668 = vpop.f32.mrf.mxu0
        %v3669 = vpop.f32.mrf.mxu0
        %v3670 = vadd.f32 %v3381, %v3669
        %v3671 = vpop.f32.mrf.mxu0
        %3672 = vmatprep.mubr.bf16.mxu0 %v1884
        %3673 = vmatmul.mubr.bf16.gmra.mxu0 %v1883
        %v3674 = vpop.f32.mrf.mxu0
        %v3675 = vadd.f32 %v3386, %v3674
        %v3676 = vpop.f32.mrf.mxu0
        %v3677 = vpop.f32.mrf.mxu0
        %v3678 = vadd.f32 %v3389, %v3677
        %v3679 = vpop.f32.mrf.mxu0
        %3680 = vmatprep.mubr.bf16.mxu0 %v1892
        %3681 = vmatmul.mubr.bf16.gmra.mxu0 %v1891
        %v3682 = vpop.f32.mrf.mxu0
        %v3683 = vadd.f32 %v3394, %v3682
        %v3684 = vpop.f32.mrf.mxu0
        %v3685 = vpop.f32.mrf.mxu0
        %v3686 = vadd.f32 %v3397, %v3685
        %v3687 = vpop.f32.mrf.mxu0
        %3688 = vmatprep.mubr.bf16.mxu0 %v1900
        %3689 = vmatmul.mubr.bf16.gmra.mxu0 %v1899
        %v3690 = vpop.f32.mrf.mxu0
        %v3691 = vadd.f32 %v3402, %v3690
        %v3692 = vpop.f32.mrf.mxu0
        %v3693 = vpop.f32.mrf.mxu0
        %v3694 = vadd.f32 %v3405, %v3693
        %v3695 = vpop.f32.mrf.mxu0
        %3696 = vmatprep.mubr.bf16.mxu0 %v1908
        %3697 = vmatmul.mubr.bf16.gmra.mxu0 %v1907
        %v3698 = vpop.f32.mrf.mxu0
        %v3699 = vadd.f32 %v3410, %v3698
        %v3700 = vpop.f32.mrf.mxu0
        %v3701 = vpop.f32.mrf.mxu0
        %v3702 = vadd.f32 %v3413, %v3701
        %v3703 = vpop.f32.mrf.mxu0
        %3704 = vmatprep.mubr.bf16.mxu0 %v1916
        %3705 = vmatmul.mubr.bf16.gmra.mxu0 %v1915
        %v3706 = vpop.f32.mrf.mxu0
        %v3707 = vadd.f32 %v3418, %v3706
        %v3708 = vpop.f32.mrf.mxu0
        %v3709 = vpop.f32.mrf.mxu0
        %v3710 = vadd.f32 %v3421, %v3709
        %v3711 = vpop.f32.mrf.mxu0
        %3712 = vmatprep.mubr.bf16.mxu0 %v1924
        %3713 = vmatmul.mubr.bf16.gmra.mxu0 %v1923
        %v3714 = vpop.f32.mrf.mxu0
        %v3715 = vadd.f32 %v3426, %v3714
        %v3716 = vpop.f32.mrf.mxu0
        %v3717 = vpop.f32.mrf.mxu0
        %v3718 = vadd.f32 %v3429, %v3717
        %v3719 = vpop.f32.mrf.mxu0
        %3720 = vdwg.mxu0
        %v3721 = vadd.f32 %v449, %v3467
        %v3722 = vadd.f32 %v450, %v3470
        %v3723 = vadd.f32 %v451, %v3475
        %v3724 = vadd.f32 %v452, %v3478
        %v3725 = vadd.f32 %v453, %v3483
        %v3726 = vadd.f32 %v454, %v3486
        %v3727 = vadd.f32 %v455, %v3491
        %v3728 = vadd.f32 %v456, %v3494
        %v3729 = vadd.f32 %v457, %v3499
        %v3730 = vadd.f32 %v458, %v3502
        %v3731 = vadd.f32 %v459, %v3507
        %v3732 = vadd.f32 %v460, %v3510
        %v3733 = vadd.f32 %v461, %v3515
        %v3734 = vadd.f32 %v462, %v3518
        %v3735 = vadd.f32 %v463, %v3523
        %v3736 = vadd.f32 %v464, %v3526
        %v3737 = vadd.f32 %v465, %v3531
        %v3738 = vadd.f32 %v466, %v3534
        %v3739 = vadd.f32 %v467, %v3539
        %v3740 = vadd.f32 %v468, %v3542
        %v3741 = vadd.f32 %v469, %v3547
        %v3742 = vadd.f32 %v470, %v3550
        %v3743 = vadd.f32 %v471, %v3555
        %v3744 = vadd.f32 %v472, %v3558
        %v3745 = vadd.f32 %v473, %v3563
        %v3746 = vadd.f32 %v474, %v3566
        %v3747 = vadd.f32 %v475, %v3571
        %v3748 = vadd.f32 %v476, %v3574
        %v3749 = vadd.f32 %v477, %v3579
        %v3750 = vadd.f32 %v478, %v3582
        %v3751 = vadd.f32 %v479, %v3587
        %v3752 = vadd.f32 %v480, %v3590
        %v3753 = vadd.f32 %v481, %v3595
        %v3754 = vadd.f32 %v482, %v3598
        %v3755 = vadd.f32 %v483, %v3603
        %v3756 = vadd.f32 %v484, %v3606
        %v3757 = vadd.f32 %v485, %v3611
        %v3758 = vadd.f32 %v486, %v3614
        %v3759 = vadd.f32 %v487, %v3619
        %v3760 = vadd.f32 %v488, %v3622
        %v3761 = vadd.f32 %v489, %v3627
        %v3762 = vadd.f32 %v490, %v3630
        %v3763 = vadd.f32 %v491, %v3635
        %v3764 = vadd.f32 %v492, %v3638
        %v3765 = vadd.f32 %v493, %v3643
        %v3766 = vadd.f32 %v494, %v3646
        %v3767 = vadd.f32 %v495, %v3651
        %v3768 = vadd.f32 %v496, %v3654
        %v3769 = vadd.f32 %v497, %v3659
        %v3770 = vadd.f32 %v498, %v3662
        %v3771 = vadd.f32 %v499, %v3667
        %v3772 = vadd.f32 %v500, %v3670
        %v3773 = vadd.f32 %v501, %v3675
        %v3774 = vadd.f32 %v502, %v3678
        %v3775 = vadd.f32 %v503, %v3683
        %v3776 = vadd.f32 %v504, %v3686
        %v3777 = vadd.f32 %v505, %v3691
        %v3778 = vadd.f32 %v506, %v3694
        %v3779 = vadd.f32 %v507, %v3699
        %v3780 = vadd.f32 %v508, %v3702
        %v3781 = vadd.f32 %v509, %v3707
        %v3782 = vadd.f32 %v510, %v3710
        %v3783 = vadd.f32 %v511, %v3715
        %v3784 = vadd.f32 %v512, %v3718
        %3785 = vst [vmem:[#allocation2] sm:$0xff] %v3721
        %3786 = vst [vmem:[#allocation2 + $0x8] sm:$0xff] %v3722
        %3787 = vst [vmem:[#allocation2 + $0x10] sm:$0xff] %v3723
        %3788 = vst [vmem:[#allocation2 + $0x18] sm:$0xff] %v3724
        %3789 = vst [vmem:[#allocation2 + $0x20] sm:$0xff] %v3725
        %3790 = vst [vmem:[#allocation2 + $0x28] sm:$0xff] %v3726
        %3791 = vst [vmem:[#allocation2 + $0x30] sm:$0xff] %v3727
        %3792 = vst [vmem:[#allocation2 + $0x38] sm:$0xff] %v3728
        %3793 = vst [vmem:[#allocation2 + $0x40] sm:$0xff] %v3729
        %3794 = vst [vmem:[#allocation2 + $0x48] sm:$0xff] %v3730
        %3795 = vst [vmem:[#allocation2 + $0x50] sm:$0xff] %v3731
        %3796 = vst [vmem:[#allocation2 + $0x58] sm:$0xff] %v3732
        %3797 = vst [vmem:[#allocation2 + $0x60] sm:$0xff] %v3733
        %3798 = vst [vmem:[#allocation2 + $0x68] sm:$0xff] %v3734
        %3799 = vst [vmem:[#allocation2 + $0x70] sm:$0xff] %v3735
        %3800 = vst [vmem:[#allocation2 + $0x78] sm:$0xff] %v3736
        %3801 = vst [vmem:[#allocation2 + $0x80] sm:$0xff] %v3737
        %3802 = vst [vmem:[#allocation2 + $0x88] sm:$0xff] %v3738
        %3803 = vst [vmem:[#allocation2 + $0x90] sm:$0xff] %v3739
        %3804 = vst [vmem:[#allocation2 + $0x98] sm:$0xff] %v3740
        %3805 = vst [vmem:[#allocation2 + $0xa0] sm:$0xff] %v3741
        %3806 = vst [vmem:[#allocation2 + $0xa8] sm:$0xff] %v3742
        %3807 = vst [vmem:[#allocation2 + $0xb0] sm:$0xff] %v3743
        %3808 = vst [vmem:[#allocation2 + $0xb8] sm:$0xff] %v3744
        %3809 = vst [vmem:[#allocation2 + $0xc0] sm:$0xff] %v3745
        %3810 = vst [vmem:[#allocation2 + $0xc8] sm:$0xff] %v3746
        %3811 = vst [vmem:[#allocation2 + $0xd0] sm:$0xff] %v3747
        %3812 = vst [vmem:[#allocation2 + $0xd8] sm:$0xff] %v3748
        %3813 = vst [vmem:[#allocation2 + $0xe0] sm:$0xff] %v3749
        %3814 = vst [vmem:[#allocation2 + $0xe8] sm:$0xff] %v3750
        %3815 = vst [vmem:[#allocation2 + $0xf0] sm:$0xff] %v3751
        %3816 = vst [vmem:[#allocation2 + $0xf8] sm:$0xff] %v3752
        %3817 = vst [vmem:[#allocation2 + $0x100] sm:$0xff] %v3753
        %3818 = vst [vmem:[#allocation2 + $0x108] sm:$0xff] %v3754
        %3819 = vst [vmem:[#allocation2 + $0x110] sm:$0xff] %v3755
        %3820 = vst [vmem:[#allocation2 + $0x118] sm:$0xff] %v3756
        %3821 = vst [vmem:[#allocation2 + $0x120] sm:$0xff] %v3757
        %3822 = vst [vmem:[#allocation2 + $0x128] sm:$0xff] %v3758
        %3823 = vst [vmem:[#allocation2 + $0x130] sm:$0xff] %v3759
        %3824 = vst [vmem:[#allocation2 + $0x138] sm:$0xff] %v3760
        %3825 = vst [vmem:[#allocation2 + $0x140] sm:$0xff] %v3761
        %3826 = vst [vmem:[#allocation2 + $0x148] sm:$0xff] %v3762
        %3827 = vst [vmem:[#allocation2 + $0x150] sm:$0xff] %v3763
        %3828 = vst [vmem:[#allocation2 + $0x158] sm:$0xff] %v3764
        %3829 = vst [vmem:[#allocation2 + $0x160] sm:$0xff] %v3765
        %3830 = vst [vmem:[#allocation2 + $0x168] sm:$0xff] %v3766
        %3831 = vst [vmem:[#allocation2 + $0x170] sm:$0xff] %v3767
        %3832 = vst [vmem:[#allocation2 + $0x178] sm:$0xff] %v3768
        %3833 = vst [vmem:[#allocation2 + $0x180] sm:$0xff] %v3769
        %3834 = vst [vmem:[#allocation2 + $0x188] sm:$0xff] %v3770
        %3835 = vst [vmem:[#allocation2 + $0x190] sm:$0xff] %v3771
        %3836 = vst [vmem:[#allocation2 + $0x198] sm:$0xff] %v3772
        %3837 = vst [vmem:[#allocation2 + $0x1a0] sm:$0xff] %v3773
        %3838 = vst [vmem:[#allocation2 + $0x1a8] sm:$0xff] %v3774
        %3839 = vst [vmem:[#allocation2 + $0x1b0] sm:$0xff] %v3775
        %3840 = vst [vmem:[#allocation2 + $0x1b8] sm:$0xff] %v3776
        %3841 = vst [vmem:[#allocation2 + $0x1c0] sm:$0xff] %v3777
        %3842 = vst [vmem:[#allocation2 + $0x1c8] sm:$0xff] %v3778
        %3843 = vst [vmem:[#allocation2 + $0x1d0] sm:$0xff] %v3779
        %3844 = vst [vmem:[#allocation2 + $0x1d8] sm:$0xff] %v3780
        %3845 = vst [vmem:[#allocation2 + $0x1e0] sm:$0xff] %v3781
        %3846 = vst [vmem:[#allocation2 + $0x1e8] sm:$0xff] %v3782
        %3847 = vst [vmem:[#allocation2 + $0x1f0] sm:$0xff] %v3783
        %3848 = vst [vmem:[#allocation2 + $0x1f8] sm:$0xff] %v3784
        // Predicated region
        $region45: #{tpu_custom_call.1} parent=31 // pred_check
          %p3849 = pneg %p247
        $region46: #{tpu_custom_call.1} parent=31 // pred_check_branch
          %3851 = sbr.rel (%p3849) target = $region48
        $region47: #{tpu_custom_call.1} parent=31 // pred_region
          %v3852 = vld [vmem:[%s243] sm:$0xff]
          %v3853 = vld [vmem:[%s243 + $0x8] sm:$0xff]
          %v3854 = vld [vmem:[%s243 + $0x10] sm:$0xff]
          %v3855 = vld [vmem:[%s243 + $0x18] sm:$0xff]
          %v3856 = vld [vmem:[%s243 + $0x20] sm:$0xff]
          %v3857 = vld [vmem:[%s243 + $0x28] sm:$0xff]
          %v3858 = vld [vmem:[%s243 + $0x30] sm:$0xff]
          %v3859 = vld [vmem:[%s243 + $0x38] sm:$0xff]
          %v3860 = vld [vmem:[%s243 + $0x40] sm:$0xff]
          %v3861 = vld [vmem:[%s243 + $0x48] sm:$0xff]
          %v3862 = vld [vmem:[%s243 + $0x50] sm:$0xff]
          %v3863 = vld [vmem:[%s243 + $0x58] sm:$0xff]
          %v3864 = vld [vmem:[%s243 + $0x60] sm:$0xff]
          %v3865 = vld [vmem:[%s243 + $0x68] sm:$0xff]
          %v3866 = vld [vmem:[%s243 + $0x70] sm:$0xff]
          %v3867 = vld [vmem:[%s243 + $0x78] sm:$0xff]
          %v3868 = vld [vmem:[%s243 + $0x80] sm:$0xff]
          %v3869 = vld [vmem:[%s243 + $0x88] sm:$0xff]
          %v3870 = vld [vmem:[%s243 + $0x90] sm:$0xff]
          %v3871 = vld [vmem:[%s243 + $0x98] sm:$0xff]
          %v3872 = vld [vmem:[%s243 + $0xa0] sm:$0xff]
          %v3873 = vld [vmem:[%s243 + $0xa8] sm:$0xff]
          %v3874 = vld [vmem:[%s243 + $0xb0] sm:$0xff]
          %v3875 = vld [vmem:[%s243 + $0xb8] sm:$0xff]
          %v3876 = vld [vmem:[%s243 + $0xc0] sm:$0xff]
          %v3877 = vld [vmem:[%s243 + $0xc8] sm:$0xff]
          %v3878 = vld [vmem:[%s243 + $0xd0] sm:$0xff]
          %v3879 = vld [vmem:[%s243 + $0xd8] sm:$0xff]
          %v3880 = vld [vmem:[%s243 + $0xe0] sm:$0xff]
          %v3881 = vld [vmem:[%s243 + $0xe8] sm:$0xff]
          %v3882 = vld [vmem:[%s243 + $0xf0] sm:$0xff]
          %v3883 = vld [vmem:[%s243 + $0xf8] sm:$0xff]
          %v3884 = vld [vmem:[%s243 + $0x100] sm:$0xff]
          %v3885 = vld [vmem:[%s243 + $0x108] sm:$0xff]
          %v3886 = vld [vmem:[%s243 + $0x110] sm:$0xff]
          %v3887 = vld [vmem:[%s243 + $0x118] sm:$0xff]
          %v3888 = vld [vmem:[%s243 + $0x120] sm:$0xff]
          %v3889 = vld [vmem:[%s243 + $0x128] sm:$0xff]
          %v3890 = vld [vmem:[%s243 + $0x130] sm:$0xff]
          %v3891 = vld [vmem:[%s243 + $0x138] sm:$0xff]
          %v3892 = vld [vmem:[%s243 + $0x140] sm:$0xff]
          %v3893 = vld [vmem:[%s243 + $0x148] sm:$0xff]
          %v3894 = vld [vmem:[%s243 + $0x150] sm:$0xff]
          %v3895 = vld [vmem:[%s243 + $0x158] sm:$0xff]
          %v3896 = vld [vmem:[%s243 + $0x160] sm:$0xff]
          %v3897 = vld [vmem:[%s243 + $0x168] sm:$0xff]
          %v3898 = vld [vmem:[%s243 + $0x170] sm:$0xff]
          %v3899 = vld [vmem:[%s243 + $0x178] sm:$0xff]
          %v3900 = vld [vmem:[%s243 + $0x180] sm:$0xff]
          %v3901 = vld [vmem:[%s243 + $0x188] sm:$0xff]
          %v3902 = vld [vmem:[%s243 + $0x190] sm:$0xff]
          %v3903 = vld [vmem:[%s243 + $0x198] sm:$0xff]
          %v3904 = vld [vmem:[%s243 + $0x1a0] sm:$0xff]
          %v3905 = vld [vmem:[%s243 + $0x1a8] sm:$0xff]
          %v3906 = vld [vmem:[%s243 + $0x1b0] sm:$0xff]
          %v3907 = vld [vmem:[%s243 + $0x1b8] sm:$0xff]
          %v3908 = vld [vmem:[%s243 + $0x1c0] sm:$0xff]
          %v3909 = vld [vmem:[%s243 + $0x1c8] sm:$0xff]
          %v3910 = vld [vmem:[%s243 + $0x1d0] sm:$0xff]
          %v3911 = vld [vmem:[%s243 + $0x1d8] sm:$0xff]
          %v3912 = vld [vmem:[%s243 + $0x1e0] sm:$0xff]
          %v3913 = vld [vmem:[%s243 + $0x1e8] sm:$0xff]
          %v3914 = vld [vmem:[%s243 + $0x1f0] sm:$0xff]
          %v3915 = vld [vmem:[%s243 + $0x1f8] sm:$0xff]
          %v3916 = vld [vmem:[#allocation2] sm:$0xff]
          %v3917 = vld [vmem:[#allocation2 + $0x8] sm:$0xff]
          %v3918 = vld [vmem:[#allocation2 + $0x10] sm:$0xff]
          %v3919 = vld [vmem:[#allocation2 + $0x18] sm:$0xff]
          %v3920 = vld [vmem:[#allocation2 + $0x20] sm:$0xff]
          %v3921 = vld [vmem:[#allocation2 + $0x28] sm:$0xff]
          %v3922 = vld [vmem:[#allocation2 + $0x30] sm:$0xff]
          %v3923 = vld [vmem:[#allocation2 + $0x38] sm:$0xff]
          %v3924 = vld [vmem:[#allocation2 + $0x40] sm:$0xff]
          %v3925 = vld [vmem:[#allocation2 + $0x48] sm:$0xff]
          %v3926 = vld [vmem:[#allocation2 + $0x50] sm:$0xff]
          %v3927 = vld [vmem:[#allocation2 + $0x58] sm:$0xff]
          %v3928 = vld [vmem:[#allocation2 + $0x60] sm:$0xff]
          %v3929 = vld [vmem:[#allocation2 + $0x68] sm:$0xff]
          %v3930 = vld [vmem:[#allocation2 + $0x70] sm:$0xff]
          %v3931 = vld [vmem:[#allocation2 + $0x78] sm:$0xff]
          %v3932 = vld [vmem:[#allocation2 + $0x80] sm:$0xff]
          %v3933 = vld [vmem:[#allocation2 + $0x88] sm:$0xff]
          %v3934 = vld [vmem:[#allocation2 + $0x90] sm:$0xff]
          %v3935 = vld [vmem:[#allocation2 + $0x98] sm:$0xff]
          %v3936 = vld [vmem:[#allocation2 + $0xa0] sm:$0xff]
          %v3937 = vld [vmem:[#allocation2 + $0xa8] sm:$0xff]
          %v3938 = vld [vmem:[#allocation2 + $0xb0] sm:$0xff]
          %v3939 = vld [vmem:[#allocation2 + $0xb8] sm:$0xff]
          %v3940 = vld [vmem:[#allocation2 + $0xc0] sm:$0xff]
          %v3941 = vld [vmem:[#allocation2 + $0xc8] sm:$0xff]
          %v3942 = vld [vmem:[#allocation2 + $0xd0] sm:$0xff]
          %v3943 = vld [vmem:[#allocation2 + $0xd8] sm:$0xff]
          %v3944 = vld [vmem:[#allocation2 + $0xe0] sm:$0xff]
          %v3945 = vld [vmem:[#allocation2 + $0xe8] sm:$0xff]
          %v3946 = vld [vmem:[#allocation2 + $0xf0] sm:$0xff]
          %v3947 = vld [vmem:[#allocation2 + $0xf8] sm:$0xff]
          %v3948 = vld [vmem:[#allocation2 + $0x100] sm:$0xff]
          %v3949 = vld [vmem:[#allocation2 + $0x108] sm:$0xff]
          %v3950 = vld [vmem:[#allocation2 + $0x110] sm:$0xff]
          %v3951 = vld [vmem:[#allocation2 + $0x118] sm:$0xff]
          %v3952 = vld [vmem:[#allocation2 + $0x120] sm:$0xff]
          %v3953 = vld [vmem:[#allocation2 + $0x128] sm:$0xff]
          %v3954 = vld [vmem:[#allocation2 + $0x130] sm:$0xff]
          %v3955 = vld [vmem:[#allocation2 + $0x138] sm:$0xff]
          %v3956 = vld [vmem:[#allocation2 + $0x140] sm:$0xff]
          %v3957 = vld [vmem:[#allocation2 + $0x148] sm:$0xff]
          %v3958 = vld [vmem:[#allocation2 + $0x150] sm:$0xff]
          %v3959 = vld [vmem:[#allocation2 + $0x158] sm:$0xff]
          %v3960 = vld [vmem:[#allocation2 + $0x160] sm:$0xff]
          %v3961 = vld [vmem:[#allocation2 + $0x168] sm:$0xff]
          %v3962 = vld [vmem:[#allocation2 + $0x170] sm:$0xff]
          %v3963 = vld [vmem:[#allocation2 + $0x178] sm:$0xff]
          %v3964 = vld [vmem:[#allocation2 + $0x180] sm:$0xff]
          %v3965 = vld [vmem:[#allocation2 + $0x188] sm:$0xff]
          %v3966 = vld [vmem:[#allocation2 + $0x190] sm:$0xff]
          %v3967 = vld [vmem:[#allocation2 + $0x198] sm:$0xff]
          %v3968 = vld [vmem:[#allocation2 + $0x1a0] sm:$0xff]
          %v3969 = vld [vmem:[#allocation2 + $0x1a8] sm:$0xff]
          %v3970 = vld [vmem:[#allocation2 + $0x1b0] sm:$0xff]
          %v3971 = vld [vmem:[#allocation2 + $0x1b8] sm:$0xff]
          %v3972 = vld [vmem:[#allocation2 + $0x1c0] sm:$0xff]
          %v3973 = vld [vmem:[#allocation2 + $0x1c8] sm:$0xff]
          %v3974 = vld [vmem:[#allocation2 + $0x1d0] sm:$0xff]
          %v3975 = vld [vmem:[#allocation2 + $0x1d8] sm:$0xff]
          %v3976 = vld [vmem:[#allocation2 + $0x1e0] sm:$0xff]
          %v3977 = vld [vmem:[#allocation2 + $0x1e8] sm:$0xff]
          %v3978 = vld [vmem:[#allocation2 + $0x1f0] sm:$0xff]
          %v3979 = vld [vmem:[#allocation2 + $0x1f8] sm:$0xff]
          %3981 = vset.pattern.permute.xlu0 0
          %3982 = vperm.xlu0 %3981, %v3852
          %v3983 = vpop.permute.xlu0 %3982
          %3986 = vset.pattern.permute.xlu0 0
          %3987 = vperm.xlu0 %3986, %v3853
          %v3988 = vpop.permute.xlu0 %3987
          %3991 = vset.pattern.permute.xlu0 0
          %3992 = vperm.xlu0 %3991, %v3854
          %v3993 = vpop.permute.xlu0 %3992
          %3996 = vset.pattern.permute.xlu0 0
          %3997 = vperm.xlu0 %3996, %v3855
          %v3998 = vpop.permute.xlu0 %3997
          %4001 = vset.pattern.permute.xlu0 0
          %4002 = vperm.xlu0 %4001, %v3856
          %v4003 = vpop.permute.xlu0 %4002
          %4006 = vset.pattern.permute.xlu0 0
          %4007 = vperm.xlu0 %4006, %v3857
          %v4008 = vpop.permute.xlu0 %4007
          %4011 = vset.pattern.permute.xlu0 0
          %4012 = vperm.xlu0 %4011, %v3858
          %v4013 = vpop.permute.xlu0 %4012
          %4016 = vset.pattern.permute.xlu0 0
          %4017 = vperm.xlu0 %4016, %v3859
          %v4018 = vpop.permute.xlu0 %4017
          %4021 = vset.pattern.permute.xlu0 0
          %4022 = vperm.xlu0 %4021, %v3860
          %v4023 = vpop.permute.xlu0 %4022
          %4026 = vset.pattern.permute.xlu0 0
          %4027 = vperm.xlu0 %4026, %v3861
          %v4028 = vpop.permute.xlu0 %4027
          %4031 = vset.pattern.permute.xlu0 0
          %4032 = vperm.xlu0 %4031, %v3862
          %v4033 = vpop.permute.xlu0 %4032
          %4036 = vset.pattern.permute.xlu0 0
          %4037 = vperm.xlu0 %4036, %v3863
          %v4038 = vpop.permute.xlu0 %4037
          %4041 = vset.pattern.permute.xlu0 0
          %4042 = vperm.xlu0 %4041, %v3864
          %v4043 = vpop.permute.xlu0 %4042
          %4046 = vset.pattern.permute.xlu0 0
          %4047 = vperm.xlu0 %4046, %v3865
          %v4048 = vpop.permute.xlu0 %4047
          %4051 = vset.pattern.permute.xlu0 0
          %4052 = vperm.xlu0 %4051, %v3866
          %v4053 = vpop.permute.xlu0 %4052
          %4056 = vset.pattern.permute.xlu0 0
          %4057 = vperm.xlu0 %4056, %v3867
          %v4058 = vpop.permute.xlu0 %4057
          %4061 = vset.pattern.permute.xlu0 0
          %4062 = vperm.xlu0 %4061, %v3868
          %v4063 = vpop.permute.xlu0 %4062
          %4066 = vset.pattern.permute.xlu0 0
          %4067 = vperm.xlu0 %4066, %v3869
          %v4068 = vpop.permute.xlu0 %4067
          %4071 = vset.pattern.permute.xlu0 0
          %4072 = vperm.xlu0 %4071, %v3870
          %v4073 = vpop.permute.xlu0 %4072
          %4076 = vset.pattern.permute.xlu0 0
          %4077 = vperm.xlu0 %4076, %v3871
          %v4078 = vpop.permute.xlu0 %4077
          %4081 = vset.pattern.permute.xlu0 0
          %4082 = vperm.xlu0 %4081, %v3872
          %v4083 = vpop.permute.xlu0 %4082
          %4086 = vset.pattern.permute.xlu0 0
          %4087 = vperm.xlu0 %4086, %v3873
          %v4088 = vpop.permute.xlu0 %4087
          %4091 = vset.pattern.permute.xlu0 0
          %4092 = vperm.xlu0 %4091, %v3874
          %v4093 = vpop.permute.xlu0 %4092
          %4096 = vset.pattern.permute.xlu0 0
          %4097 = vperm.xlu0 %4096, %v3875
          %v4098 = vpop.permute.xlu0 %4097
          %4101 = vset.pattern.permute.xlu0 0
          %4102 = vperm.xlu0 %4101, %v3876
          %v4103 = vpop.permute.xlu0 %4102
          %4106 = vset.pattern.permute.xlu0 0
          %4107 = vperm.xlu0 %4106, %v3877
          %v4108 = vpop.permute.xlu0 %4107
          %4111 = vset.pattern.permute.xlu0 0
          %4112 = vperm.xlu0 %4111, %v3878
          %v4113 = vpop.permute.xlu0 %4112
          %4116 = vset.pattern.permute.xlu0 0
          %4117 = vperm.xlu0 %4116, %v3879
          %v4118 = vpop.permute.xlu0 %4117
          %4121 = vset.pattern.permute.xlu0 0
          %4122 = vperm.xlu0 %4121, %v3880
          %v4123 = vpop.permute.xlu0 %4122
          %4126 = vset.pattern.permute.xlu0 0
          %4127 = vperm.xlu0 %4126, %v3881
          %v4128 = vpop.permute.xlu0 %4127
          %4131 = vset.pattern.permute.xlu0 0
          %4132 = vperm.xlu0 %4131, %v3882
          %v4133 = vpop.permute.xlu0 %4132
          %4136 = vset.pattern.permute.xlu0 0
          %4137 = vperm.xlu0 %4136, %v3883
          %v4138 = vpop.permute.xlu0 %4137
          %4141 = vset.pattern.permute.xlu0 0
          %4142 = vperm.xlu0 %4141, %v3884
          %v4143 = vpop.permute.xlu0 %4142
          %4146 = vset.pattern.permute.xlu0 0
          %4147 = vperm.xlu0 %4146, %v3885
          %v4148 = vpop.permute.xlu0 %4147
          %4151 = vset.pattern.permute.xlu0 0
          %4152 = vperm.xlu0 %4151, %v3886
          %v4153 = vpop.permute.xlu0 %4152
          %4156 = vset.pattern.permute.xlu0 0
          %4157 = vperm.xlu0 %4156, %v3887
          %v4158 = vpop.permute.xlu0 %4157
          %4161 = vset.pattern.permute.xlu0 0
          %4162 = vperm.xlu0 %4161, %v3888
          %v4163 = vpop.permute.xlu0 %4162
          %4166 = vset.pattern.permute.xlu0 0
          %4167 = vperm.xlu0 %4166, %v3889
          %v4168 = vpop.permute.xlu0 %4167
          %4171 = vset.pattern.permute.xlu0 0
          %4172 = vperm.xlu0 %4171, %v3890
          %v4173 = vpop.permute.xlu0 %4172
          %4176 = vset.pattern.permute.xlu0 0
          %4177 = vperm.xlu0 %4176, %v3891
          %v4178 = vpop.permute.xlu0 %4177
          %4181 = vset.pattern.permute.xlu0 0
          %4182 = vperm.xlu0 %4181, %v3892
          %v4183 = vpop.permute.xlu0 %4182
          %4186 = vset.pattern.permute.xlu0 0
          %4187 = vperm.xlu0 %4186, %v3893
          %v4188 = vpop.permute.xlu0 %4187
          %4191 = vset.pattern.permute.xlu0 0
          %4192 = vperm.xlu0 %4191, %v3894
          %v4193 = vpop.permute.xlu0 %4192
          %4196 = vset.pattern.permute.xlu0 0
          %4197 = vperm.xlu0 %4196, %v3895
          %v4198 = vpop.permute.xlu0 %4197
          %4201 = vset.pattern.permute.xlu0 0
          %4202 = vperm.xlu0 %4201, %v3896
          %v4203 = vpop.permute.xlu0 %4202
          %4206 = vset.pattern.permute.xlu0 0
          %4207 = vperm.xlu0 %4206, %v3897
          %v4208 = vpop.permute.xlu0 %4207
          %4211 = vset.pattern.permute.xlu0 0
          %4212 = vperm.xlu0 %4211, %v3898
          %v4213 = vpop.permute.xlu0 %4212
          %4216 = vset.pattern.permute.xlu0 0
          %4217 = vperm.xlu0 %4216, %v3899
          %v4218 = vpop.permute.xlu0 %4217
          %4221 = vset.pattern.permute.xlu0 0
          %4222 = vperm.xlu0 %4221, %v3900
          %v4223 = vpop.permute.xlu0 %4222
          %4226 = vset.pattern.permute.xlu0 0
          %4227 = vperm.xlu0 %4226, %v3901
          %v4228 = vpop.permute.xlu0 %4227
          %4231 = vset.pattern.permute.xlu0 0
          %4232 = vperm.xlu0 %4231, %v3902
          %v4233 = vpop.permute.xlu0 %4232
          %4236 = vset.pattern.permute.xlu0 0
          %4237 = vperm.xlu0 %4236, %v3903
          %v4238 = vpop.permute.xlu0 %4237
          %4241 = vset.pattern.permute.xlu0 0
          %4242 = vperm.xlu0 %4241, %v3904
          %v4243 = vpop.permute.xlu0 %4242
          %4246 = vset.pattern.permute.xlu0 0
          %4247 = vperm.xlu0 %4246, %v3905
          %v4248 = vpop.permute.xlu0 %4247
          %4251 = vset.pattern.permute.xlu0 0
          %4252 = vperm.xlu0 %4251, %v3906
          %v4253 = vpop.permute.xlu0 %4252
          %4256 = vset.pattern.permute.xlu0 0
          %4257 = vperm.xlu0 %4256, %v3907
          %v4258 = vpop.permute.xlu0 %4257
          %4261 = vset.pattern.permute.xlu0 0
          %4262 = vperm.xlu0 %4261, %v3908
          %v4263 = vpop.permute.xlu0 %4262
          %4266 = vset.pattern.permute.xlu0 0
          %4267 = vperm.xlu0 %4266, %v3909
          %v4268 = vpop.permute.xlu0 %4267
          %4271 = vset.pattern.permute.xlu0 0
          %4272 = vperm.xlu0 %4271, %v3910
          %v4273 = vpop.permute.xlu0 %4272
          %4276 = vset.pattern.permute.xlu0 0
          %4277 = vperm.xlu0 %4276, %v3911
          %v4278 = vpop.permute.xlu0 %4277
          %4281 = vset.pattern.permute.xlu0 0
          %4282 = vperm.xlu0 %4281, %v3912
          %v4283 = vpop.permute.xlu0 %4282
          %4286 = vset.pattern.permute.xlu0 0
          %4287 = vperm.xlu0 %4286, %v3913
          %v4288 = vpop.permute.xlu0 %4287
          %4291 = vset.pattern.permute.xlu0 0
          %4292 = vperm.xlu0 %4291, %v3914
          %v4293 = vpop.permute.xlu0 %4292
          %4296 = vset.pattern.permute.xlu0 0
          %4297 = vperm.xlu0 %4296, %v3915
          %v4298 = vpop.permute.xlu0 %4297
          %v4300 = vmul.f32 %v3983, %v3916
          %v4301 = vmul.f32 %v3988, %v3917
          %v4302 = vmul.f32 %v3993, %v3918
          %v4303 = vmul.f32 %v3998, %v3919
          %v4304 = vmul.f32 %v4003, %v3920
          %v4305 = vmul.f32 %v4008, %v3921
          %v4306 = vmul.f32 %v4013, %v3922
          %v4307 = vmul.f32 %v4018, %v3923
          %v4308 = vmul.f32 %v4023, %v3924
          %v4309 = vmul.f32 %v4028, %v3925
          %v4310 = vmul.f32 %v4033, %v3926
          %v4311 = vmul.f32 %v4038, %v3927
          %v4312 = vmul.f32 %v4043, %v3928
          %v4313 = vmul.f32 %v4048, %v3929
          %v4314 = vmul.f32 %v4053, %v3930
          %v4315 = vmul.f32 %v4058, %v3931
          %v4316 = vmul.f32 %v4063, %v3932
          %v4317 = vmul.f32 %v4068, %v3933
          %v4318 = vmul.f32 %v4073, %v3934
          %v4319 = vmul.f32 %v4078, %v3935
          %v4320 = vmul.f32 %v4083, %v3936
          %v4321 = vmul.f32 %v4088, %v3937
          %v4322 = vmul.f32 %v4093, %v3938
          %v4323 = vmul.f32 %v4098, %v3939
          %v4324 = vmul.f32 %v4103, %v3940
          %v4325 = vmul.f32 %v4108, %v3941
          %v4326 = vmul.f32 %v4113, %v3942
          %v4327 = vmul.f32 %v4118, %v3943
          %v4328 = vmul.f32 %v4123, %v3944
          %v4329 = vmul.f32 %v4128, %v3945
          %v4330 = vmul.f32 %v4133, %v3946
          %v4331 = vmul.f32 %v4138, %v3947
          %v4332 = vmul.f32 %v4143, %v3948
          %v4333 = vmul.f32 %v4148, %v3949
          %v4334 = vmul.f32 %v4153, %v3950
          %v4335 = vmul.f32 %v4158, %v3951
          %v4336 = vmul.f32 %v4163, %v3952
          %v4337 = vmul.f32 %v4168, %v3953
          %v4338 = vmul.f32 %v4173, %v3954
          %v4339 = vmul.f32 %v4178, %v3955
          %v4340 = vmul.f32 %v4183, %v3956
          %v4341 = vmul.f32 %v4188, %v3957
          %v4342 = vmul.f32 %v4193, %v3958
          %v4343 = vmul.f32 %v4198, %v3959
          %v4344 = vmul.f32 %v4203, %v3960
          %v4345 = vmul.f32 %v4208, %v3961
          %v4346 = vmul.f32 %v4213, %v3962
          %v4347 = vmul.f32 %v4218, %v3963
          %v4348 = vmul.f32 %v4223, %v3964
          %v4349 = vmul.f32 %v4228, %v3965
          %v4350 = vmul.f32 %v4233, %v3966
          %v4351 = vmul.f32 %v4238, %v3967
          %v4352 = vmul.f32 %v4243, %v3968
          %v4353 = vmul.f32 %v4248, %v3969
          %v4354 = vmul.f32 %v4253, %v3970
          %v4355 = vmul.f32 %v4258, %v3971
          %v4356 = vmul.f32 %v4263, %v3972
          %v4357 = vmul.f32 %v4268, %v3973
          %v4358 = vmul.f32 %v4273, %v3974
          %v4359 = vmul.f32 %v4278, %v3975
          %v4360 = vmul.f32 %v4283, %v3976
          %v4361 = vmul.f32 %v4288, %v3977
          %v4362 = vmul.f32 %v4293, %v3978
          %v4363 = vmul.f32 %v4298, %v3979
          %4364 = vst [vmem:[%s236] sm:$0xff] %v4300
          %4365 = vst [vmem:[%s236 + $0x8] sm:$0xff] %v4301
          %4366 = vst [vmem:[%s236 + $0x10] sm:$0xff] %v4302
          %4367 = vst [vmem:[%s236 + $0x18] sm:$0xff] %v4303
          %4368 = vst [vmem:[%s236 + $0x20] sm:$0xff] %v4304
          %4369 = vst [vmem:[%s236 + $0x28] sm:$0xff] %v4305
          %4370 = vst [vmem:[%s236 + $0x30] sm:$0xff] %v4306
          %4371 = vst [vmem:[%s236 + $0x38] sm:$0xff] %v4307
          %4372 = vst [vmem:[%s236 + $0x40] sm:$0xff] %v4308
          %4373 = vst [vmem:[%s236 + $0x48] sm:$0xff] %v4309
          %4374 = vst [vmem:[%s236 + $0x50] sm:$0xff] %v4310
          %4375 = vst [vmem:[%s236 + $0x58] sm:$0xff] %v4311
          %4376 = vst [vmem:[%s236 + $0x60] sm:$0xff] %v4312
          %4377 = vst [vmem:[%s236 + $0x68] sm:$0xff] %v4313
          %4378 = vst [vmem:[%s236 + $0x70] sm:$0xff] %v4314
          %4379 = vst [vmem:[%s236 + $0x78] sm:$0xff] %v4315
          %4380 = vst [vmem:[%s236 + $0x80] sm:$0xff] %v4316
          %4381 = vst [vmem:[%s236 + $0x88] sm:$0xff] %v4317
          %4382 = vst [vmem:[%s236 + $0x90] sm:$0xff] %v4318
          %4383 = vst [vmem:[%s236 + $0x98] sm:$0xff] %v4319
          %4384 = vst [vmem:[%s236 + $0xa0] sm:$0xff] %v4320
          %4385 = vst [vmem:[%s236 + $0xa8] sm:$0xff] %v4321
          %4386 = vst [vmem:[%s236 + $0xb0] sm:$0xff] %v4322
          %4387 = vst [vmem:[%s236 + $0xb8] sm:$0xff] %v4323
          %4388 = vst [vmem:[%s236 + $0xc0] sm:$0xff] %v4324
          %4389 = vst [vmem:[%s236 + $0xc8] sm:$0xff] %v4325
          %4390 = vst [vmem:[%s236 + $0xd0] sm:$0xff] %v4326
          %4391 = vst [vmem:[%s236 + $0xd8] sm:$0xff] %v4327
          %4392 = vst [vmem:[%s236 + $0xe0] sm:$0xff] %v4328
          %4393 = vst [vmem:[%s236 + $0xe8] sm:$0xff] %v4329
          %4394 = vst [vmem:[%s236 + $0xf0] sm:$0xff] %v4330
          %4395 = vst [vmem:[%s236 + $0xf8] sm:$0xff] %v4331
          %4396 = vst [vmem:[%s236 + $0x100] sm:$0xff] %v4332
          %4397 = vst [vmem:[%s236 + $0x108] sm:$0xff] %v4333
          %4398 = vst [vmem:[%s236 + $0x110] sm:$0xff] %v4334
          %4399 = vst [vmem:[%s236 + $0x118] sm:$0xff] %v4335
          %4400 = vst [vmem:[%s236 + $0x120] sm:$0xff] %v4336
          %4401 = vst [vmem:[%s236 + $0x128] sm:$0xff] %v4337
          %4402 = vst [vmem:[%s236 + $0x130] sm:$0xff] %v4338
          %4403 = vst [vmem:[%s236 + $0x138] sm:$0xff] %v4339
          %4404 = vst [vmem:[%s236 + $0x140] sm:$0xff] %v4340
          %4405 = vst [vmem:[%s236 + $0x148] sm:$0xff] %v4341
          %4406 = vst [vmem:[%s236 + $0x150] sm:$0xff] %v4342
          %4407 = vst [vmem:[%s236 + $0x158] sm:$0xff] %v4343
          %4408 = vst [vmem:[%s236 + $0x160] sm:$0xff] %v4344
          %4409 = vst [vmem:[%s236 + $0x168] sm:$0xff] %v4345
          %4410 = vst [vmem:[%s236 + $0x170] sm:$0xff] %v4346
          %4411 = vst [vmem:[%s236 + $0x178] sm:$0xff] %v4347
          %4412 = vst [vmem:[%s236 + $0x180] sm:$0xff] %v4348
          %4413 = vst [vmem:[%s236 + $0x188] sm:$0xff] %v4349
          %4414 = vst [vmem:[%s236 + $0x190] sm:$0xff] %v4350
          %4415 = vst [vmem:[%s236 + $0x198] sm:$0xff] %v4351
          %4416 = vst [vmem:[%s236 + $0x1a0] sm:$0xff] %v4352
          %4417 = vst [vmem:[%s236 + $0x1a8] sm:$0xff] %v4353
          %4418 = vst [vmem:[%s236 + $0x1b0] sm:$0xff] %v4354
          %4419 = vst [vmem:[%s236 + $0x1b8] sm:$0xff] %v4355
          %4420 = vst [vmem:[%s236 + $0x1c0] sm:$0xff] %v4356
          %4421 = vst [vmem:[%s236 + $0x1c8] sm:$0xff] %v4357
          %4422 = vst [vmem:[%s236 + $0x1d0] sm:$0xff] %v4358
          %4423 = vst [vmem:[%s236 + $0x1d8] sm:$0xff] %v4359
          %4424 = vst [vmem:[%s236 + $0x1e0] sm:$0xff] %v4360
          %4425 = vst [vmem:[%s236 + $0x1e8] sm:$0xff] %v4361
          %4426 = vst [vmem:[%s236 + $0x1f0] sm:$0xff] %v4362
          %4427 = vst [vmem:[%s236 + $0x1f8] sm:$0xff] %v4363
        $region48: #{tpu_custom_call.1} parent=31 // pred_fallthru
          _
        %s4428 = sand.u32 %s116, 1
        %s4429 = scalar_lea.sflag [#allocation5], %s4428
        %s4430 = sand.u32 %s116, 1
        %s4431 = smul.addr %s4430, 512
        %s4432 = scalar_lea.vmem [#allocation8], %s4431
        // Predicated region
        $region49: #{tpu_custom_call.1} parent=31 // pred_check
          %p4433 = pneg %p126
        $region50: #{tpu_custom_call.1} parent=31 // pred_check_branch
          %4435 = sbr.rel (%p4433) target = $region52
        $region51: #{tpu_custom_call.1} parent=31 // pred_region
          %s4436 = smul.u32 64, %s25
          %s4438 = ssub.s32 8192, 8192
          %4439 = vsyncadd %s4429, %s4438
          %s4440 = smul.addr %s4436, 128
          %s4441 = scalar_lea.hbm %s3, %s4440
          %s4442 = sshll.u32 %s4432, 4
          %s4443 = int_to_ptr.vmem [resolvable:$true] %s4442
          %4448 = dma.vmem_to_hbm [thread:$0]  %s4443, 8192, %s4441, %s4429, 128, 128, 8
        $region52: #{tpu_custom_call.1} parent=31 // pred_fallthru
          _
      $region32: #{tpu_custom_call.1} parent=5 // pred_fallthru
        _
      %p4449 = scmp.le.s32.totalorder 2, %s16
      // Predicated region
      $region53: #{tpu_custom_call.1} parent=5 // pred_check
        %p4450 = pneg %p4449
      $region54: #{tpu_custom_call.1} parent=5 // pred_check_branch
        %4452 = sbr.rel (%p4450) target = $region56
      $region55: #{tpu_custom_call.1} parent=5 // pred_region
        %s4453 = ssub.s32 %s16, 2
        // Predicated region
        $region57: #{tpu_custom_call.1} parent=55 // pred_check
          %p4454 = pneg %p132
        $region58: #{tpu_custom_call.1} parent=55 // pred_check_branch
          %4456 = sbr.rel (%p4454) target = $region60
        $region59: #{tpu_custom_call.1} parent=55 // pred_region
          %s4457 = sand.u32 %s117, 1
          %s4458 = scalar_lea.sflag [#allocation5], %s4457
          %s4459 = sand.u32 %s117, 1
          %s4460 = smul.addr %s4459, 512
          %s4461 = scalar_lea.vmem [#allocation8], %s4460
          %4462 = dma.done %s4458, 8192
        $region60: #{tpu_custom_call.1} parent=55 // pred_fallthru
          _
      $region56: #{tpu_custom_call.1} parent=5 // pred_fallthru
        _
    $region6: #{tpu_custom_call.1} parent=1 // loop_footer
      %s20 = sadd.s32 1, %s16
    $region7: #{tpu_custom_call.1} parent=1 // loop_footer_branch
      %15 = sbr.rel target = $region3
    $region8: #{tpu_custom_call.1} parent=1 // loop_exit
      _
    %4463 = vsyncpa [#allocation4], 1
    %s4464 = scalar_lea.sflag [#allocation4], 1
    %4465 = vsyncpa %s4464, 1
    %4466 = vsyncpa [#allocation7], 1
    %4467 = vsyncpa [#allocation5], 1
    %s4468 = scalar_lea.sflag [#allocation5], 1
    %4469 = vsyncpa %s4468, 1

</llo_original>
